<compile_context>
chip_gen: v7x
topology: tpu7x:2x2x1
jax: 0.10.0
libtpu: 0.0.40
codegen_flags: <defaults>
</compile_context>

<pallas_src>
import functools

import jax
import jax.numpy as jnp
from jax.experimental import pallas as pl
from jax.experimental.pallas import tpu as pltpu


# Lane-dense (multiple-of-128) feature widths.
C_MID = 128          # CNN-branch conv channels (padded to one vreg lane width)
D_EMBED = 128        # ViT-branch embedding dim (padded to one vreg lane width)
CNN_FEAT = 2048      # resnet50 feature width (matches original fc)
VIT_FEAT = 768       # deit_small feature width (matches original fc)
NC_PAD = 128         # padded classifier width; real classes sliced off outside


# ---------------------------------------------------------------------------
# Pallas kernel: fused CNN-branch, ViT-branch and split classifier fc.
# Grid: (batch_block b, cnn_token_chunk t).  Token axis accumulates the CNN
# global-average-pool into VMEM scratch; the ViT branch + its fc half run on
# t == 0, the CNN projection + its fc half on the last t.
# ---------------------------------------------------------------------------
def cnn_vit_kernel(cnn_patches_ref,   # (Bb, Tc, 9*C)    bf16  im2col chunk
                   vit_patches_ref,   # (Bb, NP, P*P*C)  bf16  all ViT patches
                   w_conv_ref, b_conv_ref,      # (9*C, C_MID) bf16, (1, C_MID) f32
                   w_cproj_ref, b_cproj_ref,    # (C_MID, 2048) bf16, (1, 2048) f32
                   w_embed_ref, b_embed_ref,    # (P*P*C, D_EMBED) bf16, (1, D_EMBED) f32
                   w_vproj_ref, b_vproj_ref,    # (D_EMBED, 768) bf16, (1, 768) f32
                   w_fc_cnn_ref, w_fc_vit_ref,  # (2048, NC_PAD) bf16, (768, NC_PAD) bf16
                   b_fc_ref,                    # (1, NC_PAD) f32
                   out_ref,                     # (Bb, NC_PAD) f32
                   cnn_acc_ref,                 # (Bb, C_MID) f32 scratch
                   logit_acc_ref,               # (Bb, NC_PAD) f32 scratch
                   *, hw_tokens, vit_tokens):
    t = pl.program_id(1)
    n_t = pl.num_programs(1)

    @pl.when(t == 0)
    def _init_and_vit_branch():
        cnn_acc_ref[...] = jnp.zeros_like(cnn_acc_ref)

        # ----- ViT branch (stand-in for deit_small): patch-embed -> GELU ->
        #       token mean -> projection to 768 -> its half of the fc head.
        #       Independent of the CNN pool, so it runs on the first step to
        #       overlap with the CNN chunks streamed on later steps.
        # TODO(synk): tanh-approximate GELU; timm DeiT uses exact (erf) GELU.
        emb = jnp.einsum('bpk,kd->bpd', vit_patches_ref[...], w_embed_ref[...],
                         preferred_element_type=jnp.float32) + b_embed_ref[...]
        emb = jax.nn.gelu(emb, approximate=True)
        tok = jnp.sum(emb, axis=1) * (1.0 / float(vit_tokens))          # (Bb, D)
        vit_feat = jnp.dot(tok.astype(jnp.bfloat16), w_vproj_ref[...],
                           preferred_element_type=jnp.float32) + b_vproj_ref[...]
        logit_acc_ref[...] = jnp.dot(vit_feat.astype(jnp.bfloat16), w_fc_vit_ref[...],
                                     preferred_element_type=jnp.float32) + b_fc_ref[...]

    # ----- CNN branch (stand-in for resnet50): conv3x3-as-matmul -> ReLU ->
    #       running global-average-pool accumulated per token chunk.
    conv = jnp.einsum('btk,kc->btc', cnn_patches_ref[...], w_conv_ref[...],
                      preferred_element_type=jnp.float32)
    conv = jnp.maximum(conv + b_conv_ref[...], 0.0)          # f32 elementwise
    cnn_acc_ref[...] += jnp.sum(conv, axis=1)                # (Bb, C_MID)

    @pl.when(t == n_t - 1)
    def _finalize():
        # CNN branch: GAP -> projection to 2048 -> ReLU -> its fc half.
        pooled = cnn_acc_ref[...] * (1.0 / float(hw_tokens))            # f32
        cnn_feat = jnp.dot(pooled.astype(jnp.bfloat16), w_cproj_ref[...],
                           preferred_element_type=jnp.float32) + b_cproj_ref[...]
        cnn_feat = jnp.maximum(cnn_feat, 0.0)                           # (Bb, 2048)

        # head: split fc == torch.cat + Linear, without the concat copy.
        out_ref[...] = logit_acc_ref[...] + jnp.dot(
            cnn_feat.astype(jnp.bfloat16), w_fc_cnn_ref[...],
            preferred_element_type=jnp.float32)


# ---------------------------------------------------------------------------
# JAX glue: patch extraction (reshapes only) and parameter construction.
# ---------------------------------------------------------------------------
def im2col_3x3(x_nhwc):
    """3x3 / stride 1 / pad 1 im2col -> (B, H*W, 9*C)."""
    # TODO(synk): this is a 9x HBM expansion of the image; at real image sizes
    # the CNN branch becomes HBM-bandwidth-bound. An in-kernel neighborhood
    # gather (shifted slices / pltpu.roll on an NHWC tile) would remove it.
    B, H, W, C = x_nhwc.shape
    xp = jnp.pad(x_nhwc, ((0, 0), (1, 1), (1, 1), (0, 0)))
    cols = [xp[:, dh:dh + H, dw:dw + W, :] for dh in range(3) for dw in range(3)]
    patches = jnp.stack(cols, axis=3)                 # (B, H, W, 9, C)
    return patches.reshape(B, H * W, 9 * C)


def extract_vit_patches(x_nhwc, p):
    """Non-overlapping p x p patches -> (B, (H/p)*(W/p), p*p*C)."""
    B, H, W, C = x_nhwc.shape
    x = x_nhwc.reshape(B, H // p, p, W // p, p, C)
    x = x.transpose(0, 1, 3, 2, 4, 5)
    return x.reshape(B, (H // p) * (W // p), p * p * C)


def make_params(key, c_in=3, patch=8, num_classes=10):
    ks = jax.random.split(key, 6)

    def lin(k, fan_in, shape):
        return jax.random.normal(k, shape, jnp.float32) / jnp.sqrt(fan_in)

    # Classifier: built at (2816, num_classes), zero-padded to NC_PAD lanes and
    # split into the CNN / ViT halves (kills the in-kernel concatenate).
    w_fc = lin(ks[4], CNN_FEAT + VIT_FEAT, (CNN_FEAT + VIT_FEAT, num_classes))
    w_fc = jnp.pad(w_fc, ((0, 0), (0, NC_PAD - num_classes)))
    b_fc = jnp.zeros((1, NC_PAD), jnp.float32)

    return dict(
        w_conv=lin(ks[0], 9 * c_in, (9 * c_in, C_MID)).astype(jnp.bfloat16),
        b_conv=jnp.zeros((1, C_MID), jnp.float32),
        w_cproj=lin(ks[1], C_MID, (C_MID, CNN_FEAT)).astype(jnp.bfloat16),
        b_cproj=jnp.zeros((1, CNN_FEAT), jnp.float32),
        w_embed=lin(ks[2], patch * patch * c_in,
                    (patch * patch * c_in, D_EMBED)).astype(jnp.bfloat16),
        b_embed=jnp.zeros((1, D_EMBED), jnp.float32),
        w_vproj=lin(ks[3], D_EMBED, (D_EMBED, VIT_FEAT)).astype(jnp.bfloat16),
        b_vproj=jnp.zeros((1, VIT_FEAT), jnp.float32),
        w_fc_cnn=w_fc[:CNN_FEAT].astype(jnp.bfloat16),
        w_fc_vit=w_fc[CNN_FEAT:].astype(jnp.bfloat16),
        b_fc=b_fc,
    )


def _pick_token_chunk(total, cap=512):
    """Largest multiple-of-8 divisor of `total` that is <= cap (or `total`)."""
    if total <= cap:
        return total
    start = cap - (cap % 8)
    for c in range(start, 7, -8):
        if total % c == 0:
            return c
    return total


def cnn_vit_forward(x_nchw, params, patch=8, num_classes=10,
                    batch_block=8, token_chunk=512):
    # PyTorch-style NCHW input -> NHWC, bf16 activations (f32 accumulation in-kernel).
    x_nhwc = jnp.transpose(x_nchw, (0, 2, 3, 1)).astype(jnp.bfloat16)
    B, H, W, C = x_nhwc.shape

    cnn_patches = im2col_3x3(x_nhwc)                  # (B, H*W, 9*C)   bf16
    vit_patches = extract_vit_patches(x_nhwc, patch)  # (B, NP, P*P*C)  bf16

    hw = H * W
    np_tok = (H // patch) * (W // patch)
    k_cnn = 9 * C
    k_vit = patch * patch * C

    token_chunk = _pick_token_chunk(hw, cap=token_chunk)
    n_tchunks = hw // token_chunk

    # Small batches: shrink the batch block to B (block == full dim is legal)
    # so we don't pay padded DMA / compute.  Larger batches: pad up to a
    # multiple of batch_block and slice the padding off at the end.
    if B <= batch_block:
        batch_block = B
        b_pad = B
    else:
        b_pad = pl.cdiv(B, batch_block) * batch_block
    if b_pad != B:
        cnn_patches = jnp.pad(cnn_patches, ((0, b_pad - B), (0, 0), (0, 0)))
        vit_patches = jnp.pad(vit_patches, ((0, b_pad - B), (0, 0), (0, 0)))
    n_bblocks = b_pad // batch_block

    const2 = lambda b, t: (0, 0)   # weights/biases stay resident in VMEM

    kernel = functools.partial(cnn_vit_kernel,
                               hw_tokens=hw, vit_tokens=np_tok)

    out = pl.pallas_call(
        kernel,
        out_shape=jax.ShapeDtypeStruct((b_pad, NC_PAD), jnp.float32),
        grid=(n_bblocks, n_tchunks),
        in_specs=[
            # streamed activations
            pl.BlockSpec((batch_block, token_chunk, k_cnn), lambda b, t: (b, t, 0)),
            pl.BlockSpec((batch_block, np_tok, k_vit), lambda b, t: (b, 0, 0)),
            # resident weights / biases
            pl.BlockSpec((k_cnn, C_MID), const2),
            pl.BlockSpec((1, C_MID), const2),
            pl.BlockSpec((C_MID, CNN_FEAT), const2),
            pl.BlockSpec((1, CNN_FEAT), const2),
            pl.BlockSpec((k_vit, D_EMBED), const2),
            pl.BlockSpec((1, D_EMBED), const2),
            pl.BlockSpec((D_EMBED, VIT_FEAT), const2),
            pl.BlockSpec((1, VIT_FEAT), const2),
            pl.BlockSpec((CNN_FEAT, NC_PAD), const2),
            pl.BlockSpec((VIT_FEAT, NC_PAD), const2),
            pl.BlockSpec((1, NC_PAD), const2),
        ],
        out_specs=pl.BlockSpec((batch_block, NC_PAD), lambda b, t: (b, 0)),
        scratch_shapes=[pltpu.VMEM((batch_block, C_MID), jnp.float32),
                        pltpu.VMEM((batch_block, NC_PAD), jnp.float32)],
        compiler_params=pltpu.CompilerParams(
            dimension_semantics=("parallel", "arbitrary"),
            vmem_limit_bytes=32 << 20),
    )(cnn_patches, vit_patches,
      params['w_conv'], params['b_conv'],
      params['w_cproj'], params['b_cproj'],
      params['w_embed'], params['b_embed'],
      params['w_vproj'], params['b_vproj'],
      params['w_fc_cnn'], params['w_fc_vit'], params['b_fc'])

    # Drop batch padding and the zero-padded classes.
    return out[:B, :num_classes]


if __name__ == "__main__":
    key = jax.random.PRNGKey(0)
    k_x, k_p = jax.random.split(key)

    B, C, H, W = 2, 3, 32, 32
    num_classes = 10
    x = jax.random.normal(k_x, (B, C, H, W), jnp.float32)   # NCHW, PyTorch-style
    params = make_params(k_p, c_in=C, patch=8, num_classes=num_classes)

    out = cnn_vit_forward(x, params, patch=8, num_classes=num_classes)
    out = jax.block_until_ready(out)
    assert out.shape == (B, num_classes)
    assert bool(jnp.all(jnp.isfinite(out)))
    print("KERNEL_OK")
</pallas_src>

<mosaic_0001>
module attributes {stable_mosaic.version = 11 : i64} {
  func.func @cnn_vit_kernel(%arg0: i32, %arg1: i32, %arg2: memref<2x512x27xbf16, #tpu.memory_space<vmem>>, %arg3: memref<2x16x192xbf16, #tpu.memory_space<vmem>>, %arg4: memref<27x128xbf16, #tpu.memory_space<vmem>>, %arg5: memref<1x128xf32, #tpu.memory_space<vmem>>, %arg6: memref<128x2048xbf16, #tpu.memory_space<vmem>>, %arg7: memref<1x2048xf32, #tpu.memory_space<vmem>>, %arg8: memref<192x128xbf16, #tpu.memory_space<vmem>>, %arg9: memref<1x128xf32, #tpu.memory_space<vmem>>, %arg10: memref<128x768xbf16, #tpu.memory_space<vmem>>, %arg11: memref<1x768xf32, #tpu.memory_space<vmem>>, %arg12: memref<2048x128xbf16, #tpu.memory_space<vmem>>, %arg13: memref<768x128xbf16, #tpu.memory_space<vmem>>, %arg14: memref<1x128xf32, #tpu.memory_space<vmem>>, %arg15: memref<2x128xf32, #tpu.memory_space<vmem>>, %arg16: memref<2x128xf32, #tpu.memory_space<vmem>>, %arg17: memref<2x128xf32, #tpu.memory_space<vmem>>) attributes {dimension_semantics = [#tpu.dimension_semantics<parallel>, #tpu.dimension_semantics<arbitrary>], iteration_bounds = array<i64: 1, 2>, scalar_prefetch = 0 : i64, scratch_operands = 2 : i64, tpu.core_type = #tpu.core_type<tc>, window_params = [{transform_indices = @transform_0, window_bounds = array<i64: 2, 512, 27>}, {transform_indices = @transform_1, window_bounds = array<i64: 2, 16, 192>}, {pipeline_mode = #tpu.pipeline_mode<synchronous>, transform_indices = @transform_2, window_bounds = array<i64: 27, 128>}, {pipeline_mode = #tpu.pipeline_mode<synchronous>, transform_indices = @transform_3, window_bounds = array<i64: 1, 128>}, {pipeline_mode = #tpu.pipeline_mode<synchronous>, transform_indices = @transform_4, window_bounds = array<i64: 128, 2048>}, {pipeline_mode = #tpu.pipeline_mode<synchronous>, transform_indices = @transform_5, window_bounds = array<i64: 1, 2048>}, {pipeline_mode = #tpu.pipeline_mode<synchronous>, transform_indices = @transform_6, window_bounds = array<i64: 192, 128>}, {pipeline_mode = #tpu.pipeline_mode<synchronous>, transform_indices = @transform_7, window_bounds = array<i64: 1, 128>}, {pipeline_mode = #tpu.pipeline_mode<synchronous>, transform_indices = @transform_8, window_bounds = array<i64: 128, 768>}, {pipeline_mode = #tpu.pipeline_mode<synchronous>, transform_indices = @transform_9, window_bounds = array<i64: 1, 768>}, {pipeline_mode = #tpu.pipeline_mode<synchronous>, transform_indices = @transform_10, window_bounds = array<i64: 2048, 128>}, {pipeline_mode = #tpu.pipeline_mode<synchronous>, transform_indices = @transform_11, window_bounds = array<i64: 768, 128>}, {pipeline_mode = #tpu.pipeline_mode<synchronous>, transform_indices = @transform_12, window_bounds = array<i64: 1, 128>}, {transform_indices = @transform_13, window_bounds = array<i64: 2, 128>}]} {
    %c0_i32 = arith.constant 0 : i32
    %0 = arith.cmpi eq, %arg1, %c0_i32 : i32
    %1 = arith.extui %0 : i1 to i32
    %c0_i32_0 = arith.constant 0 : i32
    %2 = arith.cmpi ne, %1, %c0_i32_0 : i32
    scf.if %2 {
      %cst_14 = arith.constant 0.000000e+00 : f32
      %19 = vector.broadcast %cst_14 : f32 to vector<2x128xf32>
      %c0_15 = arith.constant 0 : index
      %c0_16 = arith.constant 0 : index
      %20 = vector.load %arg16[%c0_15, %c0_16] : memref<2x128xf32, #tpu.memory_space<vmem>>, vector<2x128xf32>
      tpu.vector_store %arg16[%c0_15, %c0_16], %19 {strides = array<i32>} : memref<2x128xf32, #tpu.memory_space<vmem>>, vector<2x128xf32>,
      %c0_17 = arith.constant 0 : index
      %c0_18 = arith.constant 0 : index
      %c0_19 = arith.constant 0 : index
      %21 = vector.load %arg3[%c0_17, %c0_18, %c0_19] : memref<2x16x192xbf16, #tpu.memory_space<vmem>>, vector<2x16x192xbf16>
      %c0_20 = arith.constant 0 : index
      %c0_21 = arith.constant 0 : index
      %22 = vector.load %arg8[%c0_20, %c0_21] : memref<192x128xbf16, #tpu.memory_space<vmem>>, vector<192x128xbf16>
      "tpu.trace_start"() <{level = 10 : i32, message = "bpk,kd->bpd"}> : () -> ()
      %cst_22 = arith.constant dense<0.000000e+00> : vector<2x16x128xf32>
      %23 = tpu.matmul %21, %22, %cst_22 {dimension_numbers = #tpu.dot_dimension_numbers<[2], [0], [0, 1], [1], [0, 0, 0, 1, 1, 1], [], []>} : vector<2x16x192xbf16>, vector<192x128xbf16>, vector<2x16x128xf32> -> vector<2x16x128xf32>
      "tpu.trace_stop"() : () -> ()
      %c0_23 = arith.constant 0 : index
      %c0_24 = arith.constant 0 : index
      %24 = vector.load %arg9[%c0_23, %c0_24] : memref<1x128xf32, #tpu.memory_space<vmem>>, vector<1x128xf32>
      %25 = vector.shape_cast %24 : vector<1x128xf32> to vector<1x1x128xf32>
      %26 = vector.broadcast %25 : vector<1x1x128xf32> to vector<2x16x128xf32>
      %27 = arith.addf %23, %26 : vector<2x16x128xf32>
      %28 = arith.mulf %27, %27 : vector<2x16x128xf32>
      %29 = arith.mulf %27, %28 : vector<2x16x128xf32>
      %cst_25 = arith.constant 4.471500e-02 : f32
      %30 = vector.broadcast %cst_25 : f32 to vector<2x16x128xf32>
      %31 = arith.mulf %30, %29 : vector<2x16x128xf32>
      %32 = arith.addf %27, %31 : vector<2x16x128xf32>
      %cst_26 = arith.constant 0.797884583 : f32
      %33 = vector.broadcast %cst_26 : f32 to vector<2x16x128xf32>
      %34 = arith.mulf %33, %32 : vector<2x16x128xf32>
      %35 = math.tanh %34 : vector<2x16x128xf32>
      %cst_27 = arith.constant 1.000000e+00 : f32
      %36 = vector.broadcast %cst_27 : f32 to vector<2x16x128xf32>
      %37 = arith.addf %36, %35 : vector<2x16x128xf32>
      %cst_28 = arith.constant 5.000000e-01 : f32
      %38 = vector.broadcast %cst_28 : f32 to vector<2x16x128xf32>
      %39 = arith.mulf %38, %37 : vector<2x16x128xf32>
      %40 = arith.mulf %27, %39 : vector<2x16x128xf32>
      %cst_29 = arith.constant dense<0.000000e+00> : vector<2x128xf32>
      %41 = vector.multi_reduction <add>, %40, %cst_29 [1] : vector<2x16x128xf32> to vector<2x128xf32>
      %cst_30 = arith.constant 6.250000e-02 : f32
      %42 = vector.broadcast %cst_30 : f32 to vector<2x128xf32>
      %43 = arith.mulf %41, %42 : vector<2x128xf32>
      %44 = arith.truncf %43 : vector<2x128xf32> to vector<2x128xbf16>
      %c0_31 = arith.constant 0 : index
      %c0_32 = arith.constant 0 : index
      %45 = vector.load %arg10[%c0_31, %c0_32] : memref<128x768xbf16, #tpu.memory_space<vmem>>, vector<128x768xbf16>
      %cst_33 = arith.constant dense<0.000000e+00> : vector<2x768xf32>
      %46 = tpu.matmul %44, %45, %cst_33 {dimension_numbers = #tpu.dot_dimension_numbers<[1], [0], [0], [1], [0, 0, 1, 1], [], []>} : vector<2x128xbf16>, vector<128x768xbf16>, vector<2x768xf32> -> vector<2x768xf32>
      %c0_34 = arith.constant 0 : index
      %c0_35 = arith.constant 0 : index
      %47 = vector.load %arg11[%c0_34, %c0_35] : memref<1x768xf32, #tpu.memory_space<vmem>>, vector<1x768xf32>
      %48 = vector.broadcast %47 : vector<1x768xf32> to vector<2x768xf32>
      %49 = arith.addf %46, %48 : vector<2x768xf32>
      %50 = arith.truncf %49 : vector<2x768xf32> to vector<2x768xbf16>
      %c0_36 = arith.constant 0 : index
      %c0_37 = arith.constant 0 : index
      %51 = vector.load %arg13[%c0_36, %c0_37] : memref<768x128xbf16, #tpu.memory_space<vmem>>, vector<768x128xbf16>
      %cst_38 = arith.constant dense<0.000000e+00> : vector<2x128xf32>
      %52 = tpu.matmul %50, %51, %cst_38 {dimension_numbers = #tpu.dot_dimension_numbers<[1], [0], [0], [1], [0, 0, 1, 1], [], []>} : vector<2x768xbf16>, vector<768x128xbf16>, vector<2x128xf32> -> vector<2x128xf32>
      %c0_39 = arith.constant 0 : index
      %c0_40 = arith.constant 0 : index
      %53 = vector.load %arg14[%c0_39, %c0_40] : memref<1x128xf32, #tpu.memory_space<vmem>>, vector<1x128xf32>
      %54 = vector.broadcast %53 : vector<1x128xf32> to vector<2x128xf32>
      %55 = arith.addf %52, %54 : vector<2x128xf32>
      %c0_41 = arith.constant 0 : index
      %c0_42 = arith.constant 0 : index
      %56 = vector.load %arg17[%c0_41, %c0_42] : memref<2x128xf32, #tpu.memory_space<vmem>>, vector<2x128xf32>
      tpu.vector_store %arg17[%c0_41, %c0_42], %55 {strides = array<i32>} : memref<2x128xf32, #tpu.memory_space<vmem>>, vector<2x128xf32>,
    } else {
    }
    %c0 = arith.constant 0 : index
    %c0_1 = arith.constant 0 : index
    %c0_2 = arith.constant 0 : index
    %3 = vector.load %arg2[%c0, %c0_1, %c0_2] : memref<2x512x27xbf16, #tpu.memory_space<vmem>>, vector<2x512x27xbf16>
    %c0_3 = arith.constant 0 : index
    %c0_4 = arith.constant 0 : index
    %4 = vector.load %arg4[%c0_3, %c0_4] : memref<27x128xbf16, #tpu.memory_space<vmem>>, vector<27x128xbf16>
    "tpu.trace_start"() <{level = 10 : i32, message = "btk,kc->btc"}> : () -> ()
    %cst = arith.constant dense<0.000000e+00> : vector<2x512x128xf32>
    %5 = tpu.matmul %3, %4, %cst {dimension_numbers = #tpu.dot_dimension_numbers<[2], [0], [0, 1], [1], [0, 0, 0, 1, 1, 1], [], []>} : vector<2x512x27xbf16>, vector<27x128xbf16>, vector<2x512x128xf32> -> vector<2x512x128xf32>
    "tpu.trace_stop"() : () -> ()
    %c0_5 = arith.constant 0 : index
    %c0_6 = arith.constant 0 : index
    %6 = vector.load %arg5[%c0_5, %c0_6] : memref<1x128xf32, #tpu.memory_space<vmem>>, vector<1x128xf32>
    %7 = vector.shape_cast %6 : vector<1x128xf32> to vector<1x1x128xf32>
    %8 = vector.broadcast %7 : vector<1x1x128xf32> to vector<2x512x128xf32>
    %9 = arith.addf %5, %8 : vector<2x512x128xf32>
    %cst_7 = arith.constant 0.000000e+00 : f32
    %10 = vector.broadcast %cst_7 : f32 to vector<2x512x128xf32>
    %11 = arith.maximumf %9, %10 : vector<2x512x128xf32>
    %c0_8 = arith.constant 0 : index
    %c0_9 = arith.constant 0 : index
    %12 = vector.load %arg16[%c0_8, %c0_9] : memref<2x128xf32, #tpu.memory_space<vmem>>, vector<2x128xf32>
    %cst_10 = arith.constant dense<0.000000e+00> : vector<2x128xf32>
    %13 = vector.multi_reduction <add>, %11, %cst_10 [1] : vector<2x512x128xf32> to vector<2x128xf32>
    %14 = arith.addf %12, %13 : vector<2x128xf32>
    %c0_11 = arith.constant 0 : index
    %c0_12 = arith.constant 0 : index
    %15 = vector.load %arg16[%c0_11, %c0_12] : memref<2x128xf32, #tpu.memory_space<vmem>>, vector<2x128xf32>
    tpu.vector_store %arg16[%c0_11, %c0_12], %14 {strides = array<i32>} : memref<2x128xf32, #tpu.memory_space<vmem>>, vector<2x128xf32>,
    %c1_i32 = arith.constant 1 : i32
    %16 = arith.cmpi eq, %arg1, %c1_i32 : i32
    %17 = arith.extui %16 : i1 to i32
    %c0_i32_13 = arith.constant 0 : i32
    %18 = arith.cmpi ne, %17, %c0_i32_13 : i32
    scf.if %18 {
      %c0_14 = arith.constant 0 : index
      %c0_15 = arith.constant 0 : index
      %19 = vector.load %arg16[%c0_14, %c0_15] : memref<2x128xf32, #tpu.memory_space<vmem>>, vector<2x128xf32>
      %cst_16 = arith.constant 9.765625E-4 : f32
      %20 = vector.broadcast %cst_16 : f32 to vector<2x128xf32>
      %21 = arith.mulf %19, %20 : vector<2x128xf32>
      %22 = arith.truncf %21 : vector<2x128xf32> to vector<2x128xbf16>
      %c0_17 = arith.constant 0 : index
      %c0_18 = arith.constant 0 : index
      %23 = vector.load %arg6[%c0_17, %c0_18] : memref<128x2048xbf16, #tpu.memory_space<vmem>>, vector<128x2048xbf16>
      %cst_19 = arith.constant dense<0.000000e+00> : vector<2x2048xf32>
      %24 = tpu.matmul %22, %23, %cst_19 {dimension_numbers = #tpu.dot_dimension_numbers<[1], [0], [0], [1], [0, 0, 1, 1], [], []>} : vector<2x128xbf16>, vector<128x2048xbf16>, vector<2x2048xf32> -> vector<2x2048xf32>
      %c0_20 = arith.constant 0 : index
      %c0_21 = arith.constant 0 : index
      %25 = vector.load %arg7[%c0_20, %c0_21] : memref<1x2048xf32, #tpu.memory_space<vmem>>, vector<1x2048xf32>
      %26 = vector.broadcast %25 : vector<1x2048xf32> to vector<2x2048xf32>
      %27 = arith.addf %24, %26 : vector<2x2048xf32>
      %cst_22 = arith.constant 0.000000e+00 : f32
      %28 = vector.broadcast %cst_22 : f32 to vector<2x2048xf32>
      %29 = arith.maximumf %27, %28 : vector<2x2048xf32>
      %c0_23 = arith.constant 0 : index
      %c0_24 = arith.constant 0 : index
      %30 = vector.load %arg17[%c0_23, %c0_24] : memref<2x128xf32, #tpu.memory_space<vmem>>, vector<2x128xf32>
      %31 = arith.truncf %29 : vector<2x2048xf32> to vector<2x2048xbf16>
      %c0_25 = arith.constant 0 : index
      %c0_26 = arith.constant 0 : index
      %32 = vector.load %arg12[%c0_25, %c0_26] : memref<2048x128xbf16, #tpu.memory_space<vmem>>, vector<2048x128xbf16>
      %cst_27 = arith.constant dense<0.000000e+00> : vector<2x128xf32>
      %33 = tpu.matmul %31, %32, %cst_27 {dimension_numbers = #tpu.dot_dimension_numbers<[1], [0], [0], [1], [0, 0, 1, 1], [], []>} : vector<2x2048xbf16>, vector<2048x128xbf16>, vector<2x128xf32> -> vector<2x128xf32>
      %34 = arith.addf %30, %33 : vector<2x128xf32>
      %c0_28 = arith.constant 0 : index
      %c0_29 = arith.constant 0 : index
      %35 = vector.load %arg15[%c0_28, %c0_29] : memref<2x128xf32, #tpu.memory_space<vmem>>, vector<2x128xf32>
      tpu.vector_store %arg15[%c0_28, %c0_29], %34 {strides = array<i32>} : memref<2x128xf32, #tpu.memory_space<vmem>>, vector<2x128xf32>,
    } else {
    }
    return
  }
  func.func @transform_0(%arg0: i32, %arg1: i32) -> (i32, i32, i32) {
    %c0_i32 = arith.constant 0 : i32
    %c0_i32_0 = arith.constant 0 : i32
    return %arg0, %arg1, %c0_i32 : i32, i32, i32
  }
  func.func @transform_1(%arg0: i32, %arg1: i32) -> (i32, i32, i32) {
    %c0_i32 = arith.constant 0 : i32
    %c0_i32_0 = arith.constant 0 : i32
    %c0_i32_1 = arith.constant 0 : i32
    return %arg0, %c0_i32, %c0_i32_0 : i32, i32, i32
  }
  func.func @transform_2(%arg0: i32, %arg1: i32) -> (i32, i32) {
    %c0_i32 = arith.constant 0 : i32
    %c0_i32_0 = arith.constant 0 : i32
    %c0_i32_1 = arith.constant 0 : i32
    return %c0_i32, %c0_i32_0 : i32, i32
  }
  func.func @transform_3(%arg0: i32, %arg1: i32) -> (i32, i32) {
    %c0_i32 = arith.constant 0 : i32
    %c0_i32_0 = arith.constant 0 : i32
    %c0_i32_1 = arith.constant 0 : i32
    return %c0_i32, %c0_i32_0 : i32, i32
  }
  func.func @transform_4(%arg0: i32, %arg1: i32) -> (i32, i32) {
    %c0_i32 = arith.constant 0 : i32
    %c0_i32_0 = arith.constant 0 : i32
    %c0_i32_1 = arith.constant 0 : i32
    return %c0_i32, %c0_i32_0 : i32, i32
  }
  func.func @transform_5(%arg0: i32, %arg1: i32) -> (i32, i32) {
    %c0_i32 = arith.constant 0 : i32
    %c0_i32_0 = arith.constant 0 : i32
    %c0_i32_1 = arith.constant 0 : i32
    return %c0_i32, %c0_i32_0 : i32, i32
  }
  func.func @transform_6(%arg0: i32, %arg1: i32) -> (i32, i32) {
    %c0_i32 = arith.constant 0 : i32
    %c0_i32_0 = arith.constant 0 : i32
    %c0_i32_1 = arith.constant 0 : i32
    return %c0_i32, %c0_i32_0 : i32, i32
  }
  func.func @transform_7(%arg0: i32, %arg1: i32) -> (i32, i32) {
    %c0_i32 = arith.constant 0 : i32
    %c0_i32_0 = arith.constant 0 : i32
    %c0_i32_1 = arith.constant 0 : i32
    return %c0_i32, %c0_i32_0 : i32, i32
  }
  func.func @transform_8(%arg0: i32, %arg1: i32) -> (i32, i32) {
    %c0_i32 = arith.constant 0 : i32
    %c0_i32_0 = arith.constant 0 : i32
    %c0_i32_1 = arith.constant 0 : i32
    return %c0_i32, %c0_i32_0 : i32, i32
  }
  func.func @transform_9(%arg0: i32, %arg1: i32) -> (i32, i32) {
    %c0_i32 = arith.constant 0 : i32
    %c0_i32_0 = arith.constant 0 : i32
    %c0_i32_1 = arith.constant 0 : i32
    return %c0_i32, %c0_i32_0 : i32, i32
  }
  func.func @transform_10(%arg0: i32, %arg1: i32) -> (i32, i32) {
    %c0_i32 = arith.constant 0 : i32
    %c0_i32_0 = arith.constant 0 : i32
    %c0_i32_1 = arith.constant 0 : i32
    return %c0_i32, %c0_i32_0 : i32, i32
  }
  func.func @transform_11(%arg0: i32, %arg1: i32) -> (i32, i32) {
    %c0_i32 = arith.constant 0 : i32
    %c0_i32_0 = arith.constant 0 : i32
    %c0_i32_1 = arith.constant 0 : i32
    return %c0_i32, %c0_i32_0 : i32, i32
  }
  func.func @transform_12(%arg0: i32, %arg1: i32) -> (i32, i32) {
    %c0_i32 = arith.constant 0 : i32
    %c0_i32_0 = arith.constant 0 : i32
    %c0_i32_1 = arith.constant 0 : i32
    return %c0_i32, %c0_i32_0 : i32, i32
  }
  func.func @transform_13(%arg0: i32, %arg1: i32) -> (i32, i32) {
    %c0_i32 = arith.constant 0 : i32
    %c0_i32_0 = arith.constant 0 : i32
    return %arg0, %c0_i32 : i32, i32
  }
}

</mosaic_0001>

<llo_original>
// kernel: tpu_custom_call.1
$region0: #{tpu_custom_call.1}
  #allocation0 [shape = 'u32[]', space=smem, size = 0x4, offset = 0x4, fixed_abs, tag = 'smem constant byte address 0x4 - core index']
  #allocation1 [shape = 'u32[144,128]{1,0:T(1,128)}', space=vmem, size = 0x12000, scoped, tag = 'internal scratch']
  #allocation2 [shape = 'f32[2,128]{1,0:T(2,128)}', space=vmem, size = 0x400, scoped, tag = 'scratch operand']
  #allocation3 [shape = 'f32[2,128]{1,0:T(2,128)}', space=vmem, size = 0x400, scoped, tag = 'scratch operand']
  %s0 = inlined_call_operand.vmem [shape: bf16[2,1024,27], index: 0, kind: input, shape index: {}]
  %s1 = inlined_call_operand.vmem [shape: bf16[2,16,192], index: 1, kind: input, shape index: {}]
  %s2 = inlined_call_operand.vmem [shape: bf16[27,128], index: 2, kind: input, shape index: {}]
  %s3 = inlined_call_operand.vmem [shape: f32[1,128], index: 3, kind: input, shape index: {}]
  %s4 = inlined_call_operand.vmem [shape: bf16[128,2048], index: 4, kind: input, shape index: {}]
  %s5 = inlined_call_operand.vmem [shape: f32[1,2048], index: 5, kind: input, shape index: {}]
  %s6 = inlined_call_operand.vmem [shape: bf16[192,128], index: 6, kind: input, shape index: {}]
  %s7 = inlined_call_operand.vmem [shape: f32[1,128], index: 7, kind: input, shape index: {}]
  %s8 = inlined_call_operand.hbm [shape: bf16[128,768], index: 8, kind: input, shape index: {}]
  %s9 = inlined_call_operand.vmem [shape: f32[1,768], index: 9, kind: input, shape index: {}]
  %s10 = inlined_call_operand.hbm [shape: bf16[2048,128], index: 10, kind: input, shape index: {}]
  %s11 = inlined_call_operand.hbm [shape: bf16[768,128], index: 11, kind: input, shape index: {}]
  %s12 = inlined_call_operand.vmem [shape: f32[1,128], index: 12, kind: input, shape index: {}]
  %s13 = inlined_call_operand.hbm [shape: f32[2,128], index: 13, kind: output, shape index: {}]
  %s14 = sld [smem:[#allocation0]]
  $region146: #{tpu_custom_call.1} parent=0
    _
  %s16 = ssub.s32 1, %s14
  %s17 = scalar_select 0, %s16, %s14
  $region1: #{tpu_custom_call.1} parent=0
    #allocation4 [shape = 'u8[524288]{0}', space=vmem, size = 0x80000, scoped, tag = 'input window, operand 0']
    #allocation5 [shape = 'u8[196608]{0}', space=vmem, size = 0x30000, scoped, tag = 'input window, operand 8, single buffered']
    #allocation6 [shape = 's32[2]{0}', space=sflag, size = 0x8, scoped, tag = 'scoped memory for tpu_custom_call.1']
    #allocation7 [shape = 's32[2]{0}', space=sflag, size = 0x8, scoped, tag = 'scoped memory for tpu_custom_call.1']
    #allocation8 [shape = 'u8[524288]{0}', space=vmem, size = 0x80000, scoped, tag = 'input window, operand 10, single buffered']
    #allocation9 [shape = 's32[1]{0}', space=sflag, size = 0x4, scoped, tag = 'scoped memory for tpu_custom_call.1']
    #allocation10 [shape = 'u8[196608]{0}', space=vmem, size = 0x30000, scoped, tag = 'input window, operand 11, single buffered']
    #allocation11 [shape = 'u8[1024]{0}', space=vmem, size = 0x400, scoped, tag = 'output window, operand 0, single buffered']
    %18 = vsyncpa [#allocation6], 0
    %19 = vsyncpa [#allocation9], 0
    %20 = vsyncpa [#allocation7], 0
    loop: start=0, step=1, limit=4
    $region2: #{tpu_custom_call.1} parent=1 // loop_pre_header
      _
    $region3: #{tpu_custom_call.1} parent=1 // loop_header
      %s22 = sphi 0, %s26
      %p23 = scmp.ge.s32.totalorder %s22, 4
      %s29 = sphi 0, %s41
      %s30 = sphi 0, %s37
      %s31 = sphi 0, %s29
      %s32 = sphi 0, %s30
      %s33 = sphi 0, %s31
      %s34 = sphi 0, %s32
      %s46 = sphi 0, %s48
      %s49 = sphi 0, %s46
      %s50 = sphi 0, %s49
      %s66 = sphi 0, %s50
      %s72 = sphi 0, %s74
      %s75 = sphi 0, %s72
      %s76 = sphi 0, %s75
      %s92 = sphi 0, %s76
      %s96 = sphi 0, %s96
      %s98 = sphi 0, %s96
      %s99 = sphi 0, %s98
      %s113 = sphi 0, %s99
      %s117 = sphi 0, %s117
      %s119 = sphi 0, %s117
      %s120 = sphi 0, %s119
      %s134 = sphi 0, %s120
      %s138 = sphi 0, %s138
      %s140 = sphi 0, %s138
      %s141 = sphi 0, %s140
      %s155 = sphi 0, %s141
      %s159 = sphi 0, %s159
      %s161 = sphi 0, %s159
      %s162 = sphi 0, %s161
      %s176 = sphi 0, %s162
      %s180 = sphi 0, %s180
      %s182 = sphi 0, %s180
      %s183 = sphi 0, %s182
      %s197 = sphi 0, %s183
      %s201 = sphi 0, %s201
      %s203 = sphi 0, %s201
      %s204 = sphi 0, %s203
      %s218 = sphi 0, %s204
      %s222 = sphi 0, %s222
      %s224 = sphi 0, %s222
      %s225 = sphi 0, %s224
      %s239 = sphi 0, %s225
      %s243 = sphi 0, %s243
      %s245 = sphi 0, %s243
      %s246 = sphi 0, %s245
      %s260 = sphi 0, %s246
      %s264 = sphi 0, %s264
      %s266 = sphi 0, %s264
      %s267 = sphi 0, %s266
      %s281 = sphi 0, %s267
      %s285 = sphi 0, %s285
      %s287 = sphi 0, %s285
      %s288 = sphi 0, %s287
      %s302 = sphi 0, %s288
      %s306 = sphi 0, %s306
      %s308 = sphi 0, %s306
      %s309 = sphi 0, %s308
      %s323 = sphi 0, %s309
      %s329 = sphi 0, %s331
      %s332 = sphi 0, %s329
      %s333 = sphi 0, %s332
      %s349 = sphi 0, %s333
    $region4: #{tpu_custom_call.1} parent=1 // loop_header_branch
      %25 = sbr.rel (%p23) target = $region8
    $region5: #{tpu_custom_call.1} parent=1 // loop_body
      %s27 = ssub.s32 %s22, 1
      %s28 = ssub.s32 %s22, 2
      %s35 = sadd.s32 1, %s30
      %p36 = scmp.ge.s32.totalorder %s35, 2
      %s37 = scalar_select %p36, 0, %s35
      %s38 = sadd.s32 1, %s29
      %s39 = scalar_select %p36, %s38, %s29
      %p40 = scmp.ge.s32.totalorder %s39, 1
      %s41 = scalar_select %p40, 0, %s39
      %s42 = ssub.s32 %s29, %s41
      %s43 = ssub.s32 %s30, %s37
      %s44 = sor.u32 %s42, %s43
      %p45 = scmp.eq.s32.totalorder %s44, 0
      %s47 = sadd.s32 %s46, 1
      %s48 = scalar_select %p45, %s46, %s47
      %p51 = pneg %p45
      %p52 = scmp.eq.s32.totalorder %s22, 1
      %p53 = por %p51, %p52
      %p54 = scmp.ne.s32.totalorder %s46, %s49
      %p55 = scmp.eq.s32.totalorder %s22, 0
      %p56 = por %p54, %p55
      %p57 = scmp.ne.s32.totalorder %s46, %s49
      %p58 = scmp.eq.s32.totalorder %s27, 1
      %p59 = por %p57, %p58
      %p60 = scmp.ne.s32.totalorder %s49, %s50
      %p61 = scmp.eq.s32.totalorder %s27, 0
      %p62 = por %p60, %p61
      %p63 = scmp.ne.s32.totalorder %s49, %s50
      %p64 = scmp.eq.s32.totalorder %s28, 1
      %p65 = por %p63, %p64
      %p67 = scmp.ne.s32.totalorder %s50, %s66
      %p68 = scmp.eq.s32.totalorder %s28, 0
      %p69 = por %p67, %p68
      %s70 = ssub.s32 %s29, %s41
      %p71 = scmp.eq.s32.totalorder %s70, 0
      %s73 = sadd.s32 %s72, 1
      %s74 = scalar_select %p71, %s72, %s73
      %p77 = pneg %p71
      %p78 = scmp.eq.s32.totalorder %s22, 1
      %p79 = por %p77, %p78
      %p80 = scmp.ne.s32.totalorder %s72, %s75
      %p81 = scmp.eq.s32.totalorder %s22, 0
      %p82 = por %p80, %p81
      %p83 = scmp.ne.s32.totalorder %s72, %s75
      %p84 = scmp.eq.s32.totalorder %s27, 1
      %p85 = por %p83, %p84
      %p86 = scmp.ne.s32.totalorder %s75, %s76
      %p87 = scmp.eq.s32.totalorder %s27, 0
      %p88 = por %p86, %p87
      %p89 = scmp.ne.s32.totalorder %s75, %s76
      %p90 = scmp.eq.s32.totalorder %s28, 1
      %p91 = por %p89, %p90
      %p93 = scmp.ne.s32.totalorder %s76, %s92
      %p94 = scmp.eq.s32.totalorder %s28, 0
      %p95 = por %p93, %p94
      %s97 = sadd.s32 %s96, 1
      %p100 = scmp.eq.s32.totalorder %s22, 1
      %p101 = scmp.ne.s32.totalorder %s96, %s98
      %p102 = scmp.eq.s32.totalorder %s22, 0
      %p103 = por %p101, %p102
      %p104 = scmp.ne.s32.totalorder %s96, %s98
      %p105 = scmp.eq.s32.totalorder %s27, 1
      %p106 = por %p104, %p105
      %p107 = scmp.ne.s32.totalorder %s98, %s99
      %p108 = scmp.eq.s32.totalorder %s27, 0
      %p109 = por %p107, %p108
      %p110 = scmp.ne.s32.totalorder %s98, %s99
      %p111 = scmp.eq.s32.totalorder %s28, 1
      %p112 = por %p110, %p111
      %p114 = scmp.ne.s32.totalorder %s99, %s113
      %p115 = scmp.eq.s32.totalorder %s28, 0
      %p116 = por %p114, %p115
      %s118 = sadd.s32 %s117, 1
      %p121 = scmp.eq.s32.totalorder %s22, 1
      %p122 = scmp.ne.s32.totalorder %s117, %s119
      %p123 = scmp.eq.s32.totalorder %s22, 0
      %p124 = por %p122, %p123
      %p125 = scmp.ne.s32.totalorder %s117, %s119
      %p126 = scmp.eq.s32.totalorder %s27, 1
      %p127 = por %p125, %p126
      %p128 = scmp.ne.s32.totalorder %s119, %s120
      %p129 = scmp.eq.s32.totalorder %s27, 0
      %p130 = por %p128, %p129
      %p131 = scmp.ne.s32.totalorder %s119, %s120
      %p132 = scmp.eq.s32.totalorder %s28, 1
      %p133 = por %p131, %p132
      %p135 = scmp.ne.s32.totalorder %s120, %s134
      %p136 = scmp.eq.s32.totalorder %s28, 0
      %p137 = por %p135, %p136
      %s139 = sadd.s32 %s138, 1
      %p142 = scmp.eq.s32.totalorder %s22, 1
      %p143 = scmp.ne.s32.totalorder %s138, %s140
      %p144 = scmp.eq.s32.totalorder %s22, 0
      %p145 = por %p143, %p144
      %p146 = scmp.ne.s32.totalorder %s138, %s140
      %p147 = scmp.eq.s32.totalorder %s27, 1
      %p148 = por %p146, %p147
      %p149 = scmp.ne.s32.totalorder %s140, %s141
      %p150 = scmp.eq.s32.totalorder %s27, 0
      %p151 = por %p149, %p150
      %p152 = scmp.ne.s32.totalorder %s140, %s141
      %p153 = scmp.eq.s32.totalorder %s28, 1
      %p154 = por %p152, %p153
      %p156 = scmp.ne.s32.totalorder %s141, %s155
      %p157 = scmp.eq.s32.totalorder %s28, 0
      %p158 = por %p156, %p157
      %s160 = sadd.s32 %s159, 1
      %p163 = scmp.eq.s32.totalorder %s22, 1
      %p164 = scmp.ne.s32.totalorder %s159, %s161
      %p165 = scmp.eq.s32.totalorder %s22, 0
      %p166 = por %p164, %p165
      %p167 = scmp.ne.s32.totalorder %s159, %s161
      %p168 = scmp.eq.s32.totalorder %s27, 1
      %p169 = por %p167, %p168
      %p170 = scmp.ne.s32.totalorder %s161, %s162
      %p171 = scmp.eq.s32.totalorder %s27, 0
      %p172 = por %p170, %p171
      %p173 = scmp.ne.s32.totalorder %s161, %s162
      %p174 = scmp.eq.s32.totalorder %s28, 1
      %p175 = por %p173, %p174
      %p177 = scmp.ne.s32.totalorder %s162, %s176
      %p178 = scmp.eq.s32.totalorder %s28, 0
      %p179 = por %p177, %p178
      %s181 = sadd.s32 %s180, 1
      %p184 = scmp.eq.s32.totalorder %s22, 1
      %p185 = scmp.ne.s32.totalorder %s180, %s182
      %p186 = scmp.eq.s32.totalorder %s22, 0
      %p187 = por %p185, %p186
      %p188 = scmp.ne.s32.totalorder %s180, %s182
      %p189 = scmp.eq.s32.totalorder %s27, 1
      %p190 = por %p188, %p189
      %p191 = scmp.ne.s32.totalorder %s182, %s183
      %p192 = scmp.eq.s32.totalorder %s27, 0
      %p193 = por %p191, %p192
      %p194 = scmp.ne.s32.totalorder %s182, %s183
      %p195 = scmp.eq.s32.totalorder %s28, 1
      %p196 = por %p194, %p195
      %p198 = scmp.ne.s32.totalorder %s183, %s197
      %p199 = scmp.eq.s32.totalorder %s28, 0
      %p200 = por %p198, %p199
      %s202 = sadd.s32 %s201, 1
      %p205 = scmp.eq.s32.totalorder %s22, 1
      %p206 = scmp.ne.s32.totalorder %s201, %s203
      %p207 = scmp.eq.s32.totalorder %s22, 0
      %p208 = por %p206, %p207
      %p209 = scmp.ne.s32.totalorder %s201, %s203
      %p210 = scmp.eq.s32.totalorder %s27, 1
      %p211 = por %p209, %p210
      %p212 = scmp.ne.s32.totalorder %s203, %s204
      %p213 = scmp.eq.s32.totalorder %s27, 0
      %p214 = por %p212, %p213
      %p215 = scmp.ne.s32.totalorder %s203, %s204
      %p216 = scmp.eq.s32.totalorder %s28, 1
      %p217 = por %p215, %p216
      %p219 = scmp.ne.s32.totalorder %s204, %s218
      %p220 = scmp.eq.s32.totalorder %s28, 0
      %p221 = por %p219, %p220
      %s223 = sadd.s32 %s222, 1
      %p226 = scmp.eq.s32.totalorder %s22, 1
      %p227 = scmp.ne.s32.totalorder %s222, %s224
      %p228 = scmp.eq.s32.totalorder %s22, 0
      %p229 = por %p227, %p228
      %p230 = scmp.ne.s32.totalorder %s222, %s224
      %p231 = scmp.eq.s32.totalorder %s27, 1
      %p232 = por %p230, %p231
      %p233 = scmp.ne.s32.totalorder %s224, %s225
      %p234 = scmp.eq.s32.totalorder %s27, 0
      %p235 = por %p233, %p234
      %p236 = scmp.ne.s32.totalorder %s224, %s225
      %p237 = scmp.eq.s32.totalorder %s28, 1
      %p238 = por %p236, %p237
      %p240 = scmp.ne.s32.totalorder %s225, %s239
      %p241 = scmp.eq.s32.totalorder %s28, 0
      %p242 = por %p240, %p241
      %s244 = sadd.s32 %s243, 1
      %p247 = scmp.eq.s32.totalorder %s22, 1
      %p248 = scmp.ne.s32.totalorder %s243, %s245
      %p249 = scmp.eq.s32.totalorder %s22, 0
      %p250 = por %p248, %p249
      %p251 = scmp.ne.s32.totalorder %s243, %s245
      %p252 = scmp.eq.s32.totalorder %s27, 1
      %p253 = por %p251, %p252
      %p254 = scmp.ne.s32.totalorder %s245, %s246
      %p255 = scmp.eq.s32.totalorder %s27, 0
      %p256 = por %p254, %p255
      %p257 = scmp.ne.s32.totalorder %s245, %s246
      %p258 = scmp.eq.s32.totalorder %s28, 1
      %p259 = por %p257, %p258
      %p261 = scmp.ne.s32.totalorder %s246, %s260
      %p262 = scmp.eq.s32.totalorder %s28, 0
      %p263 = por %p261, %p262
      %s265 = sadd.s32 %s264, 1
      %p268 = scmp.eq.s32.totalorder %s22, 1
      %p269 = scmp.ne.s32.totalorder %s264, %s266
      %p270 = scmp.eq.s32.totalorder %s22, 0
      %p271 = por %p269, %p270
      %p272 = scmp.ne.s32.totalorder %s264, %s266
      %p273 = scmp.eq.s32.totalorder %s27, 1
      %p274 = por %p272, %p273
      %p275 = scmp.ne.s32.totalorder %s266, %s267
      %p276 = scmp.eq.s32.totalorder %s27, 0
      %p277 = por %p275, %p276
      %p278 = scmp.ne.s32.totalorder %s266, %s267
      %p279 = scmp.eq.s32.totalorder %s28, 1
      %p280 = por %p278, %p279
      %p282 = scmp.ne.s32.totalorder %s267, %s281
      %p283 = scmp.eq.s32.totalorder %s28, 0
      %p284 = por %p282, %p283
      %s286 = sadd.s32 %s285, 1
      %p289 = scmp.eq.s32.totalorder %s22, 1
      %p290 = scmp.ne.s32.totalorder %s285, %s287
      %p291 = scmp.eq.s32.totalorder %s22, 0
      %p292 = por %p290, %p291
      %p293 = scmp.ne.s32.totalorder %s285, %s287
      %p294 = scmp.eq.s32.totalorder %s27, 1
      %p295 = por %p293, %p294
      %p296 = scmp.ne.s32.totalorder %s287, %s288
      %p297 = scmp.eq.s32.totalorder %s27, 0
      %p298 = por %p296, %p297
      %p299 = scmp.ne.s32.totalorder %s287, %s288
      %p300 = scmp.eq.s32.totalorder %s28, 1
      %p301 = por %p299, %p300
      %p303 = scmp.ne.s32.totalorder %s288, %s302
      %p304 = scmp.eq.s32.totalorder %s28, 0
      %p305 = por %p303, %p304
      %s307 = sadd.s32 %s306, 1
      %p310 = scmp.eq.s32.totalorder %s22, 1
      %p311 = scmp.ne.s32.totalorder %s306, %s308
      %p312 = scmp.eq.s32.totalorder %s22, 0
      %p313 = por %p311, %p312
      %p314 = scmp.ne.s32.totalorder %s306, %s308
      %p315 = scmp.eq.s32.totalorder %s27, 1
      %p316 = por %p314, %p315
      %p317 = scmp.ne.s32.totalorder %s308, %s309
      %p318 = scmp.eq.s32.totalorder %s27, 0
      %p319 = por %p317, %p318
      %p320 = scmp.ne.s32.totalorder %s308, %s309
      %p321 = scmp.eq.s32.totalorder %s28, 1
      %p322 = por %p320, %p321
      %p324 = scmp.ne.s32.totalorder %s309, %s323
      %p325 = scmp.eq.s32.totalorder %s28, 0
      %p326 = por %p324, %p325
      %s327 = ssub.s32 %s29, %s41
      %p328 = scmp.eq.s32.totalorder %s327, 0
      %s330 = sadd.s32 %s329, 1
      %s331 = scalar_select %p328, %s329, %s330
      %p334 = pneg %p328
      %p335 = scmp.eq.s32.totalorder %s22, 1
      %p336 = por %p334, %p335
      %p337 = scmp.ne.s32.totalorder %s329, %s332
      %p338 = scmp.eq.s32.totalorder %s22, 0
      %p339 = por %p337, %p338
      %p340 = scmp.ne.s32.totalorder %s329, %s332
      %p341 = scmp.eq.s32.totalorder %s27, 1
      %p342 = por %p340, %p341
      %p343 = scmp.ne.s32.totalorder %s332, %s333
      %p344 = scmp.eq.s32.totalorder %s27, 0
      %p345 = por %p343, %p344
      %p346 = scmp.ne.s32.totalorder %s332, %s333
      %p347 = scmp.eq.s32.totalorder %s28, 1
      %p348 = por %p346, %p347
      %p350 = scmp.ne.s32.totalorder %s333, %s349
      %p351 = scmp.eq.s32.totalorder %s28, 0
      %p352 = por %p350, %p351
      %p353 = scmp.le.s32.totalorder 1, %s22
      %p354 = scmp.lt.s32.totalorder %s22, 3
      %p355 = pnand %p353, %p354
      %p356 = pneg %p355
      // Predicated region
      $region9: #{tpu_custom_call.1} parent=5 // pred_check
        _
      $region10: #{tpu_custom_call.1} parent=5 // pred_check_branch
        %358 = sbr.rel (%p355) target = $region12
      $region11: #{tpu_custom_call.1} parent=5 // pred_region
        %s359 = ssub.s32 %s22, 1
        // Predicated region
        $region13: #{tpu_custom_call.1} parent=11 // pred_check
          %p360 = pneg %p88
        $region14: #{tpu_custom_call.1} parent=11 // pred_check_branch
          %362 = sbr.rel (%p360) target = $region16
        $region15: #{tpu_custom_call.1} parent=11 // pred_region
          %s363 = smul.u32 2, %s31
          %p364 = scmp.lt.s32.totalorder %s363, 1
          %s365 = scalar_select %p364, %s363, 1
          %s366 = smul.addr %s365, 4
          %s367 = smul.addr %s366, 4
          %s368 = scalar_lea.vmem %s1, %s367
          %s369 = smul.u32 2, %s31
        $region16: #{tpu_custom_call.1} parent=11 // pred_fallthru
          _
        // Predicated region
        $region17: #{tpu_custom_call.1} parent=11 // pred_check
          %p370 = pneg %p109
        $region18: #{tpu_custom_call.1} parent=11 // pred_check_branch
          %372 = sbr.rel (%p370) target = $region20
        $region19: #{tpu_custom_call.1} parent=11 // pred_region
          _
        $region20: #{tpu_custom_call.1} parent=11 // pred_fallthru
          _
        // Predicated region
        $region21: #{tpu_custom_call.1} parent=11 // pred_check
          %p373 = pneg %p130
        $region22: #{tpu_custom_call.1} parent=11 // pred_check_branch
          %375 = sbr.rel (%p373) target = $region24
        $region23: #{tpu_custom_call.1} parent=11 // pred_region
          _
        $region24: #{tpu_custom_call.1} parent=11 // pred_fallthru
          _
        // Predicated region
        $region25: #{tpu_custom_call.1} parent=11 // pred_check
          %p376 = pneg %p151
        $region26: #{tpu_custom_call.1} parent=11 // pred_check_branch
          %378 = sbr.rel (%p376) target = $region28
        $region27: #{tpu_custom_call.1} parent=11 // pred_region
          _
        $region28: #{tpu_custom_call.1} parent=11 // pred_fallthru
          _
        // Predicated region
        $region29: #{tpu_custom_call.1} parent=11 // pred_check
          %p379 = pneg %p172
        $region30: #{tpu_custom_call.1} parent=11 // pred_check_branch
          %381 = sbr.rel (%p379) target = $region32
        $region31: #{tpu_custom_call.1} parent=11 // pred_region
          _
        $region32: #{tpu_custom_call.1} parent=11 // pred_fallthru
          _
        // Predicated region
        $region33: #{tpu_custom_call.1} parent=11 // pred_check
          %p382 = pneg %p193
        $region34: #{tpu_custom_call.1} parent=11 // pred_check_branch
          %384 = sbr.rel (%p382) target = $region36
        $region35: #{tpu_custom_call.1} parent=11 // pred_region
          _
        $region36: #{tpu_custom_call.1} parent=11 // pred_fallthru
          _
        // Predicated region
        $region37: #{tpu_custom_call.1} parent=11 // pred_check
          %p385 = pneg %p214
        $region38: #{tpu_custom_call.1} parent=11 // pred_check_branch
          %387 = sbr.rel (%p385) target = $region40
        $region39: #{tpu_custom_call.1} parent=11 // pred_region
          _
        $region40: #{tpu_custom_call.1} parent=11 // pred_fallthru
          _
        // Predicated region
        $region41: #{tpu_custom_call.1} parent=11 // pred_check
          %p388 = pneg %p235
        $region42: #{tpu_custom_call.1} parent=11 // pred_check_branch
          %390 = sbr.rel (%p388) target = $region44
        $region43: #{tpu_custom_call.1} parent=11 // pred_region
          %s392 = ssub.s32 6144, 6144
          %393 = vsyncadd [#allocation6], %s392
          %s394 = sshll.u32 [#allocation5], 4
          %s395 = int_to_ptr.vmem [resolvable:$true] %s394
          %400 = dma.hbm_to_vmem [thread:$0]  %s8, 6144, %s395, [#allocation6], 384, 384, 24
        $region44: #{tpu_custom_call.1} parent=11 // pred_fallthru
          _
        // Predicated region
        $region45: #{tpu_custom_call.1} parent=11 // pred_check
          %p401 = pneg %p256
        $region46: #{tpu_custom_call.1} parent=11 // pred_check_branch
          %403 = sbr.rel (%p401) target = $region48
        $region47: #{tpu_custom_call.1} parent=11 // pred_region
          _
        $region48: #{tpu_custom_call.1} parent=11 // pred_fallthru
          _
        // Predicated region
        $region49: #{tpu_custom_call.1} parent=11 // pred_check
          %p404 = pneg %p277
        $region50: #{tpu_custom_call.1} parent=11 // pred_check_branch
          %406 = sbr.rel (%p404) target = $region52
        $region51: #{tpu_custom_call.1} parent=11 // pred_region
          %s408 = ssub.s32 16384, 16384
          %409 = vsyncadd [#allocation9], %s408
          %s410 = sshll.u32 [#allocation8], 4
          %s411 = int_to_ptr.vmem [resolvable:$true] %s410
          %416 = dma.hbm_to_vmem [thread:$0]  %s10, 16384, %s411, [#allocation9], 64, 64, 4
        $region52: #{tpu_custom_call.1} parent=11 // pred_fallthru
          _
        // Predicated region
        $region53: #{tpu_custom_call.1} parent=11 // pred_check
          %p417 = pneg %p298
        $region54: #{tpu_custom_call.1} parent=11 // pred_check_branch
          %419 = sbr.rel (%p417) target = $region56
        $region55: #{tpu_custom_call.1} parent=11 // pred_region
          %s421 = ssub.s32 6144, 6144
          %422 = vsyncadd [#allocation9], %s421
          %s423 = sshll.u32 [#allocation10], 4
          %s424 = int_to_ptr.vmem [resolvable:$true] %s423
          %429 = dma.hbm_to_vmem [thread:$0]  %s11, 6144, %s424, [#allocation9], 64, 64, 4
        $region56: #{tpu_custom_call.1} parent=11 // pred_fallthru
          _
        // Predicated region
        $region57: #{tpu_custom_call.1} parent=11 // pred_check
          %p430 = pneg %p319
        $region58: #{tpu_custom_call.1} parent=11 // pred_check_branch
          %432 = sbr.rel (%p430) target = $region60
        $region59: #{tpu_custom_call.1} parent=11 // pred_region
          _
        $region60: #{tpu_custom_call.1} parent=11 // pred_fallthru
          _
      $region12: #{tpu_custom_call.1} parent=5 // pred_fallthru
        _
      %p433 = scmp.lt.s32.totalorder %s22, 2
      // Predicated region
      $region61: #{tpu_custom_call.1} parent=5 // pred_check
        %p434 = pneg %p433
      $region62: #{tpu_custom_call.1} parent=5 // pred_check_branch
        %436 = sbr.rel (%p434) target = $region64
      $region63: #{tpu_custom_call.1} parent=5 // pred_region
        // Predicated region
        $region65: #{tpu_custom_call.1} parent=63 // pred_check
          %p437 = pneg %p56
        $region66: #{tpu_custom_call.1} parent=63 // pred_check_branch
          %439 = sbr.rel (%p437) target = $region68
        $region67: #{tpu_custom_call.1} parent=63 // pred_region
          %s440 = sand.u32 %s46, 1
          %s441 = sand.u32 %s46, 1
          %s442 = smul.addr %s441, 512
          %s443 = scalar_lea.vmem [#allocation4], %s442
          %s444 = smul.u32 2, %s29
          %s445 = smul.u32 64, %s30
          %s446 = smul.addr %s444, 128
          %s447 = sadd.s32 %s445, %s446
          %s448 = smul.addr %s447, 4
          %s449 = scalar_lea.vmem %s0, %s448
          // Predicated region
          $region69: #{tpu_custom_call.1} parent=67 // pred_check
            _
          $region70: #{tpu_custom_call.1} parent=67 // pred_check_branch
            %451 = sbr.rel (0) target = $region72
          $region71: #{tpu_custom_call.1} parent=67 // pred_region
            // Predicated region
            $region73: #{tpu_custom_call.1} parent=71 // pred_check
              _
            $region74: #{tpu_custom_call.1} parent=71 // pred_check_branch
              %453 = sbr.rel target = $region76
            $region75: #{tpu_custom_call.1} parent=71 // pred_region
              // Predicated region
              $region88: #{tpu_custom_call.1} parent=75 // pred_check
                _
              $region89: #{tpu_custom_call.1} parent=75 // pred_check_branch
                %722 = sbr.rel (0) target = $region91
              $region90: #{tpu_custom_call.1} parent=75 // pred_region
                loop: start=0, step=1, limit=1
                $region92: #{tpu_custom_call.1} parent=90 // loop_pre_header
                  _
                $region93: #{tpu_custom_call.1} parent=90 // loop_header
                  %s724 = sphi 0, %s728
                  %p725 = scmp.ge.s32.totalorder %s724, 1
                  %s729 = sphi %s449, %s449
                  %s730 = sphi %s443, %s443
                $region94: #{tpu_custom_call.1} parent=90 // loop_header_branch
                  %727 = sbr.rel (%p725) target = $region98
                $region95: #{tpu_custom_call.1} parent=90 // loop_body
                  _
                $region96: #{tpu_custom_call.1} parent=90 // loop_footer
                  %s728 = sadd.s32 1, %s724
                $region97: #{tpu_custom_call.1} parent=90 // loop_footer_branch
                  %723 = sbr.rel target = $region93
                $region98: #{tpu_custom_call.1} parent=90 // loop_exit
                  _
                loop: start=0, step=1, limit=1
                $region99: #{tpu_custom_call.1} parent=90 // loop_pre_header
                  _
                $region100: #{tpu_custom_call.1} parent=90 // loop_header
                  %s733 = sphi 0, %s737
                  %p734 = scmp.ge.s32.totalorder %s733, 1
                  %s738 = sphi %s449, %s449
                  %s739 = sphi %s443, %s443
                $region101: #{tpu_custom_call.1} parent=90 // loop_header_branch
                  %736 = sbr.rel (%p734) target = $region105
                $region102: #{tpu_custom_call.1} parent=90 // loop_body
                  %v740 = vld [vmem:[%s738] sm:$0xf]
                  %741 = vst [vmem:[%s739] sm:$0xf] %v740
                  %v742 = vld [vmem:[%s738 + $0x4] sm:$0xf]
                  %743 = vst [vmem:[%s739 + $0x4] sm:$0xf] %v742
                  %v744 = vld [vmem:[%s738 + $0x8] sm:$0xf]
                  %745 = vst [vmem:[%s739 + $0x8] sm:$0xf] %v744
                  %v746 = vld [vmem:[%s738 + $0xc] sm:$0xf]
                  %747 = vst [vmem:[%s739 + $0xc] sm:$0xf] %v746
                  %v748 = vld [vmem:[%s738 + $0x10] sm:$0xf]
                  %749 = vst [vmem:[%s739 + $0x10] sm:$0xf] %v748
                  %v750 = vld [vmem:[%s738 + $0x14] sm:$0xf]
                  %751 = vst [vmem:[%s739 + $0x14] sm:$0xf] %v750
                  %v752 = vld [vmem:[%s738 + $0x18] sm:$0xf]
                  %753 = vst [vmem:[%s739 + $0x18] sm:$0xf] %v752
                  %v754 = vld [vmem:[%s738 + $0x1c] sm:$0xf]
                  %755 = vst [vmem:[%s739 + $0x1c] sm:$0xf] %v754
                  %v756 = vld [vmem:[%s738 + $0x20] sm:$0xf]
                  %757 = vst [vmem:[%s739 + $0x20] sm:$0xf] %v756
                  %v758 = vld [vmem:[%s738 + $0x24] sm:$0xf]
                  %759 = vst [vmem:[%s739 + $0x24] sm:$0xf] %v758
                  %v760 = vld [vmem:[%s738 + $0x28] sm:$0xf]
                  %761 = vst [vmem:[%s739 + $0x28] sm:$0xf] %v760
                  %v762 = vld [vmem:[%s738 + $0x2c] sm:$0xf]
                  %763 = vst [vmem:[%s739 + $0x2c] sm:$0xf] %v762
                  %v764 = vld [vmem:[%s738 + $0x30] sm:$0xf]
                  %765 = vst [vmem:[%s739 + $0x30] sm:$0xf] %v764
                  %v766 = vld [vmem:[%s738 + $0x34] sm:$0xf]
                  %767 = vst [vmem:[%s739 + $0x34] sm:$0xf] %v766
                  %v768 = vld [vmem:[%s738 + $0x38] sm:$0xf]
                  %769 = vst [vmem:[%s739 + $0x38] sm:$0xf] %v768
                  %v770 = vld [vmem:[%s738 + $0x3c] sm:$0xf]
                  %771 = vst [vmem:[%s739 + $0x3c] sm:$0xf] %v770
                  %v772 = vld [vmem:[%s738 + $0x40] sm:$0xf]
                  %773 = vst [vmem:[%s739 + $0x40] sm:$0xf] %v772
                  %v774 = vld [vmem:[%s738 + $0x44] sm:$0xf]
                  %775 = vst [vmem:[%s739 + $0x44] sm:$0xf] %v774
                  %v776 = vld [vmem:[%s738 + $0x48] sm:$0xf]
                  %777 = vst [vmem:[%s739 + $0x48] sm:$0xf] %v776
                  %v778 = vld [vmem:[%s738 + $0x4c] sm:$0xf]
                  %779 = vst [vmem:[%s739 + $0x4c] sm:$0xf] %v778
                  %v780 = vld [vmem:[%s738 + $0x50] sm:$0xf]
                  %781 = vst [vmem:[%s739 + $0x50] sm:$0xf] %v780
                  %v782 = vld [vmem:[%s738 + $0x54] sm:$0xf]
                  %783 = vst [vmem:[%s739 + $0x54] sm:$0xf] %v782
                  %v784 = vld [vmem:[%s738 + $0x58] sm:$0xf]
                  %785 = vst [vmem:[%s739 + $0x58] sm:$0xf] %v784
                  %v786 = vld [vmem:[%s738 + $0x5c] sm:$0xf]
                  %787 = vst [vmem:[%s739 + $0x5c] sm:$0xf] %v786
                  %v788 = vld [vmem:[%s738 + $0x60] sm:$0xf]
                  %789 = vst [vmem:[%s739 + $0x60] sm:$0xf] %v788
                  %v790 = vld [vmem:[%s738 + $0x64] sm:$0xf]
                  %791 = vst [vmem:[%s739 + $0x64] sm:$0xf] %v790
                  %v792 = vld [vmem:[%s738 + $0x68] sm:$0xf]
                  %793 = vst [vmem:[%s739 + $0x68] sm:$0xf] %v792
                  %v794 = vld [vmem:[%s738 + $0x6c] sm:$0xf]
                  %795 = vst [vmem:[%s739 + $0x6c] sm:$0xf] %v794
                  %v796 = vld [vmem:[%s738 + $0x70] sm:$0xf]
                  %797 = vst [vmem:[%s739 + $0x70] sm:$0xf] %v796
                  %v798 = vld [vmem:[%s738 + $0x74] sm:$0xf]
                  %799 = vst [vmem:[%s739 + $0x74] sm:$0xf] %v798
                  %v800 = vld [vmem:[%s738 + $0x78] sm:$0xf]
                  %801 = vst [vmem:[%s739 + $0x78] sm:$0xf] %v800
                  %v802 = vld [vmem:[%s738 + $0x7c] sm:$0xf]
                  %803 = vst [vmem:[%s739 + $0x7c] sm:$0xf] %v802
                  %v804 = vld [vmem:[%s738 + $0x80] sm:$0xf]
                  %805 = vst [vmem:[%s739 + $0x80] sm:$0xf] %v804
                  %v806 = vld [vmem:[%s738 + $0x84] sm:$0xf]
                  %807 = vst [vmem:[%s739 + $0x84] sm:$0xf] %v806
                  %v808 = vld [vmem:[%s738 + $0x88] sm:$0xf]
                  %809 = vst [vmem:[%s739 + $0x88] sm:$0xf] %v808
                  %v810 = vld [vmem:[%s738 + $0x8c] sm:$0xf]
                  %811 = vst [vmem:[%s739 + $0x8c] sm:$0xf] %v810
                  %v812 = vld [vmem:[%s738 + $0x90] sm:$0xf]
                  %813 = vst [vmem:[%s739 + $0x90] sm:$0xf] %v812
                  %v814 = vld [vmem:[%s738 + $0x94] sm:$0xf]
                  %815 = vst [vmem:[%s739 + $0x94] sm:$0xf] %v814
                  %v816 = vld [vmem:[%s738 + $0x98] sm:$0xf]
                  %817 = vst [vmem:[%s739 + $0x98] sm:$0xf] %v816
                  %v818 = vld [vmem:[%s738 + $0x9c] sm:$0xf]
                  %819 = vst [vmem:[%s739 + $0x9c] sm:$0xf] %v818
                  %v820 = vld [vmem:[%s738 + $0xa0] sm:$0xf]
                  %821 = vst [vmem:[%s739 + $0xa0] sm:$0xf] %v820
                  %v822 = vld [vmem:[%s738 + $0xa4] sm:$0xf]
                  %823 = vst [vmem:[%s739 + $0xa4] sm:$0xf] %v822
                  %v824 = vld [vmem:[%s738 + $0xa8] sm:$0xf]
                  %825 = vst [vmem:[%s739 + $0xa8] sm:$0xf] %v824
                  %v826 = vld [vmem:[%s738 + $0xac] sm:$0xf]
                  %827 = vst [vmem:[%s739 + $0xac] sm:$0xf] %v826
                  %v828 = vld [vmem:[%s738 + $0xb0] sm:$0xf]
                  %829 = vst [vmem:[%s739 + $0xb0] sm:$0xf] %v828
                  %v830 = vld [vmem:[%s738 + $0xb4] sm:$0xf]
                  %831 = vst [vmem:[%s739 + $0xb4] sm:$0xf] %v830
                  %v832 = vld [vmem:[%s738 + $0xb8] sm:$0xf]
                  %833 = vst [vmem:[%s739 + $0xb8] sm:$0xf] %v832
                  %v834 = vld [vmem:[%s738 + $0xbc] sm:$0xf]
                  %835 = vst [vmem:[%s739 + $0xbc] sm:$0xf] %v834
                  %v836 = vld [vmem:[%s738 + $0xc0] sm:$0xf]
                  %837 = vst [vmem:[%s739 + $0xc0] sm:$0xf] %v836
                  %v838 = vld [vmem:[%s738 + $0xc4] sm:$0xf]
                  %839 = vst [vmem:[%s739 + $0xc4] sm:$0xf] %v838
                  %v840 = vld [vmem:[%s738 + $0xc8] sm:$0xf]
                  %841 = vst [vmem:[%s739 + $0xc8] sm:$0xf] %v840
                  %v842 = vld [vmem:[%s738 + $0xcc] sm:$0xf]
                  %843 = vst [vmem:[%s739 + $0xcc] sm:$0xf] %v842
                  %v844 = vld [vmem:[%s738 + $0xd0] sm:$0xf]
                  %845 = vst [vmem:[%s739 + $0xd0] sm:$0xf] %v844
                  %v846 = vld [vmem:[%s738 + $0xd4] sm:$0xf]
                  %847 = vst [vmem:[%s739 + $0xd4] sm:$0xf] %v846
                  %v848 = vld [vmem:[%s738 + $0xd8] sm:$0xf]
                  %849 = vst [vmem:[%s739 + $0xd8] sm:$0xf] %v848
                  %v850 = vld [vmem:[%s738 + $0xdc] sm:$0xf]
                  %851 = vst [vmem:[%s739 + $0xdc] sm:$0xf] %v850
                  %v852 = vld [vmem:[%s738 + $0xe0] sm:$0xf]
                  %853 = vst [vmem:[%s739 + $0xe0] sm:$0xf] %v852
                  %v854 = vld [vmem:[%s738 + $0xe4] sm:$0xf]
                  %855 = vst [vmem:[%s739 + $0xe4] sm:$0xf] %v854
                  %v856 = vld [vmem:[%s738 + $0xe8] sm:$0xf]
                  %857 = vst [vmem:[%s739 + $0xe8] sm:$0xf] %v856
                  %v858 = vld [vmem:[%s738 + $0xec] sm:$0xf]
                  %859 = vst [vmem:[%s739 + $0xec] sm:$0xf] %v858
                  %v860 = vld [vmem:[%s738 + $0xf0] sm:$0xf]
                  %861 = vst [vmem:[%s739 + $0xf0] sm:$0xf] %v860
                  %v862 = vld [vmem:[%s738 + $0xf4] sm:$0xf]
                  %863 = vst [vmem:[%s739 + $0xf4] sm:$0xf] %v862
                  %v864 = vld [vmem:[%s738 + $0xf8] sm:$0xf]
                  %865 = vst [vmem:[%s739 + $0xf8] sm:$0xf] %v864
                  %v866 = vld [vmem:[%s738 + $0xfc] sm:$0xf]
                  %867 = vst [vmem:[%s739 + $0xfc] sm:$0xf] %v866
                  %v868 = vld [vmem:[%s738 + $0x200] sm:$0xf]
                  %869 = vst [vmem:[%s739 + $0x100] sm:$0xf] %v868
                  %v870 = vld [vmem:[%s738 + $0x204] sm:$0xf]
                  %871 = vst [vmem:[%s739 + $0x104] sm:$0xf] %v870
                  %v872 = vld [vmem:[%s738 + $0x208] sm:$0xf]
                  %873 = vst [vmem:[%s739 + $0x108] sm:$0xf] %v872
                  %v874 = vld [vmem:[%s738 + $0x20c] sm:$0xf]
                  %875 = vst [vmem:[%s739 + $0x10c] sm:$0xf] %v874
                  %v876 = vld [vmem:[%s738 + $0x210] sm:$0xf]
                  %877 = vst [vmem:[%s739 + $0x110] sm:$0xf] %v876
                  %v878 = vld [vmem:[%s738 + $0x214] sm:$0xf]
                  %879 = vst [vmem:[%s739 + $0x114] sm:$0xf] %v878
                  %v880 = vld [vmem:[%s738 + $0x218] sm:$0xf]
                  %881 = vst [vmem:[%s739 + $0x118] sm:$0xf] %v880
                  %v882 = vld [vmem:[%s738 + $0x21c] sm:$0xf]
                  %883 = vst [vmem:[%s739 + $0x11c] sm:$0xf] %v882
                  %v884 = vld [vmem:[%s738 + $0x220] sm:$0xf]
                  %885 = vst [vmem:[%s739 + $0x120] sm:$0xf] %v884
                  %v886 = vld [vmem:[%s738 + $0x224] sm:$0xf]
                  %887 = vst [vmem:[%s739 + $0x124] sm:$0xf] %v886
                  %v888 = vld [vmem:[%s738 + $0x228] sm:$0xf]
                  %889 = vst [vmem:[%s739 + $0x128] sm:$0xf] %v888
                  %v890 = vld [vmem:[%s738 + $0x22c] sm:$0xf]
                  %891 = vst [vmem:[%s739 + $0x12c] sm:$0xf] %v890
                  %v892 = vld [vmem:[%s738 + $0x230] sm:$0xf]
                  %893 = vst [vmem:[%s739 + $0x130] sm:$0xf] %v892
                  %v894 = vld [vmem:[%s738 + $0x234] sm:$0xf]
                  %895 = vst [vmem:[%s739 + $0x134] sm:$0xf] %v894
                  %v896 = vld [vmem:[%s738 + $0x238] sm:$0xf]
                  %897 = vst [vmem:[%s739 + $0x138] sm:$0xf] %v896
                  %v898 = vld [vmem:[%s738 + $0x23c] sm:$0xf]
                  %899 = vst [vmem:[%s739 + $0x13c] sm:$0xf] %v898
                  %v900 = vld [vmem:[%s738 + $0x240] sm:$0xf]
                  %901 = vst [vmem:[%s739 + $0x140] sm:$0xf] %v900
                  %v902 = vld [vmem:[%s738 + $0x244] sm:$0xf]
                  %903 = vst [vmem:[%s739 + $0x144] sm:$0xf] %v902
                  %v904 = vld [vmem:[%s738 + $0x248] sm:$0xf]
                  %905 = vst [vmem:[%s739 + $0x148] sm:$0xf] %v904
                  %v906 = vld [vmem:[%s738 + $0x24c] sm:$0xf]
                  %907 = vst [vmem:[%s739 + $0x14c] sm:$0xf] %v906
                  %v908 = vld [vmem:[%s738 + $0x250] sm:$0xf]
                  %909 = vst [vmem:[%s739 + $0x150] sm:$0xf] %v908
                  %v910 = vld [vmem:[%s738 + $0x254] sm:$0xf]
                  %911 = vst [vmem:[%s739 + $0x154] sm:$0xf] %v910
                  %v912 = vld [vmem:[%s738 + $0x258] sm:$0xf]
                  %913 = vst [vmem:[%s739 + $0x158] sm:$0xf] %v912
                  %v914 = vld [vmem:[%s738 + $0x25c] sm:$0xf]
                  %915 = vst [vmem:[%s739 + $0x15c] sm:$0xf] %v914
                  %v916 = vld [vmem:[%s738 + $0x260] sm:$0xf]
                  %917 = vst [vmem:[%s739 + $0x160] sm:$0xf] %v916
                  %v918 = vld [vmem:[%s738 + $0x264] sm:$0xf]
                  %919 = vst [vmem:[%s739 + $0x164] sm:$0xf] %v918
                  %v920 = vld [vmem:[%s738 + $0x268] sm:$0xf]
                  %921 = vst [vmem:[%s739 + $0x168] sm:$0xf] %v920
                  %v922 = vld [vmem:[%s738 + $0x26c] sm:$0xf]
                  %923 = vst [vmem:[%s739 + $0x16c] sm:$0xf] %v922
                  %v924 = vld [vmem:[%s738 + $0x270] sm:$0xf]
                  %925 = vst [vmem:[%s739 + $0x170] sm:$0xf] %v924
                  %v926 = vld [vmem:[%s738 + $0x274] sm:$0xf]
                  %927 = vst [vmem:[%s739 + $0x174] sm:$0xf] %v926
                  %v928 = vld [vmem:[%s738 + $0x278] sm:$0xf]
                  %929 = vst [vmem:[%s739 + $0x178] sm:$0xf] %v928
                  %v930 = vld [vmem:[%s738 + $0x27c] sm:$0xf]
                  %931 = vst [vmem:[%s739 + $0x17c] sm:$0xf] %v930
                  %v932 = vld [vmem:[%s738 + $0x280] sm:$0xf]
                  %933 = vst [vmem:[%s739 + $0x180] sm:$0xf] %v932
                  %v934 = vld [vmem:[%s738 + $0x284] sm:$0xf]
                  %935 = vst [vmem:[%s739 + $0x184] sm:$0xf] %v934
                  %v936 = vld [vmem:[%s738 + $0x288] sm:$0xf]
                  %937 = vst [vmem:[%s739 + $0x188] sm:$0xf] %v936
                  %v938 = vld [vmem:[%s738 + $0x28c] sm:$0xf]
                  %939 = vst [vmem:[%s739 + $0x18c] sm:$0xf] %v938
                  %v940 = vld [vmem:[%s738 + $0x290] sm:$0xf]
                  %941 = vst [vmem:[%s739 + $0x190] sm:$0xf] %v940
                  %v942 = vld [vmem:[%s738 + $0x294] sm:$0xf]
                  %943 = vst [vmem:[%s739 + $0x194] sm:$0xf] %v942
                  %v944 = vld [vmem:[%s738 + $0x298] sm:$0xf]
                  %945 = vst [vmem:[%s739 + $0x198] sm:$0xf] %v944
                  %v946 = vld [vmem:[%s738 + $0x29c] sm:$0xf]
                  %947 = vst [vmem:[%s739 + $0x19c] sm:$0xf] %v946
                  %v948 = vld [vmem:[%s738 + $0x2a0] sm:$0xf]
                  %949 = vst [vmem:[%s739 + $0x1a0] sm:$0xf] %v948
                  %v950 = vld [vmem:[%s738 + $0x2a4] sm:$0xf]
                  %951 = vst [vmem:[%s739 + $0x1a4] sm:$0xf] %v950
                  %v952 = vld [vmem:[%s738 + $0x2a8] sm:$0xf]
                  %953 = vst [vmem:[%s739 + $0x1a8] sm:$0xf] %v952
                  %v954 = vld [vmem:[%s738 + $0x2ac] sm:$0xf]
                  %955 = vst [vmem:[%s739 + $0x1ac] sm:$0xf] %v954
                  %v956 = vld [vmem:[%s738 + $0x2b0] sm:$0xf]
                  %957 = vst [vmem:[%s739 + $0x1b0] sm:$0xf] %v956
                  %v958 = vld [vmem:[%s738 + $0x2b4] sm:$0xf]
                  %959 = vst [vmem:[%s739 + $0x1b4] sm:$0xf] %v958
                  %v960 = vld [vmem:[%s738 + $0x2b8] sm:$0xf]
                  %961 = vst [vmem:[%s739 + $0x1b8] sm:$0xf] %v960
                  %v962 = vld [vmem:[%s738 + $0x2bc] sm:$0xf]
                  %963 = vst [vmem:[%s739 + $0x1bc] sm:$0xf] %v962
                  %v964 = vld [vmem:[%s738 + $0x2c0] sm:$0xf]
                  %965 = vst [vmem:[%s739 + $0x1c0] sm:$0xf] %v964
                  %v966 = vld [vmem:[%s738 + $0x2c4] sm:$0xf]
                  %967 = vst [vmem:[%s739 + $0x1c4] sm:$0xf] %v966
                  %v968 = vld [vmem:[%s738 + $0x2c8] sm:$0xf]
                  %969 = vst [vmem:[%s739 + $0x1c8] sm:$0xf] %v968
                  %v970 = vld [vmem:[%s738 + $0x2cc] sm:$0xf]
                  %971 = vst [vmem:[%s739 + $0x1cc] sm:$0xf] %v970
                  %v972 = vld [vmem:[%s738 + $0x2d0] sm:$0xf]
                  %973 = vst [vmem:[%s739 + $0x1d0] sm:$0xf] %v972
                  %v974 = vld [vmem:[%s738 + $0x2d4] sm:$0xf]
                  %975 = vst [vmem:[%s739 + $0x1d4] sm:$0xf] %v974
                  %v976 = vld [vmem:[%s738 + $0x2d8] sm:$0xf]
                  %977 = vst [vmem:[%s739 + $0x1d8] sm:$0xf] %v976
                  %v978 = vld [vmem:[%s738 + $0x2dc] sm:$0xf]
                  %979 = vst [vmem:[%s739 + $0x1dc] sm:$0xf] %v978
                  %v980 = vld [vmem:[%s738 + $0x2e0] sm:$0xf]
                  %981 = vst [vmem:[%s739 + $0x1e0] sm:$0xf] %v980
                  %v982 = vld [vmem:[%s738 + $0x2e4] sm:$0xf]
                  %983 = vst [vmem:[%s739 + $0x1e4] sm:$0xf] %v982
                  %v984 = vld [vmem:[%s738 + $0x2e8] sm:$0xf]
                  %985 = vst [vmem:[%s739 + $0x1e8] sm:$0xf] %v984
                  %v986 = vld [vmem:[%s738 + $0x2ec] sm:$0xf]
                  %987 = vst [vmem:[%s739 + $0x1ec] sm:$0xf] %v986
                  %v988 = vld [vmem:[%s738 + $0x2f0] sm:$0xf]
                  %989 = vst [vmem:[%s739 + $0x1f0] sm:$0xf] %v988
                  %v990 = vld [vmem:[%s738 + $0x2f4] sm:$0xf]
                  %991 = vst [vmem:[%s739 + $0x1f4] sm:$0xf] %v990
                  %v992 = vld [vmem:[%s738 + $0x2f8] sm:$0xf]
                  %993 = vst [vmem:[%s739 + $0x1f8] sm:$0xf] %v992
                  %v994 = vld [vmem:[%s738 + $0x2fc] sm:$0xf]
                  %995 = vst [vmem:[%s739 + $0x1fc] sm:$0xf] %v994
                $region103: #{tpu_custom_call.1} parent=90 // loop_footer
                  %s737 = sadd.s32 1, %s733
                $region104: #{tpu_custom_call.1} parent=90 // loop_footer_branch
                  %732 = sbr.rel target = $region100
                $region105: #{tpu_custom_call.1} parent=90 // loop_exit
                  _
              $region91: #{tpu_custom_call.1} parent=75 // pred_fallthru
                _
            $region76: #{tpu_custom_call.1} parent=71 // pred_fallthru
              _
            // Predicated region
            $region77: #{tpu_custom_call.1} parent=71 // pred_check
              _
            $region78: #{tpu_custom_call.1} parent=71 // pred_check_branch
              %455 = sbr.rel (0) target = $region80
            $region79: #{tpu_custom_call.1} parent=71 // pred_region
              loop: start=0, step=1, limit=1
              $region81: #{tpu_custom_call.1} parent=79 // loop_pre_header
                _
              $region82: #{tpu_custom_call.1} parent=79 // loop_header
                %s458 = sphi 0, %s462
                %p459 = scmp.ge.s32.totalorder %s458, 1
                %s463 = sphi %s449, %s449
                %s464 = sphi %s443, %s443
              $region83: #{tpu_custom_call.1} parent=79 // loop_header_branch
                %461 = sbr.rel (%p459) target = $region87
              $region84: #{tpu_custom_call.1} parent=79 // loop_body
                %v465 = vld [vmem:[%s463] sm:$0xf]
                %466 = vst [vmem:[%s464] sm:$0xf] %v465
                %v467 = vld [vmem:[%s463 + $0x4] sm:$0xf]
                %468 = vst [vmem:[%s464 + $0x4] sm:$0xf] %v467
                %v469 = vld [vmem:[%s463 + $0x8] sm:$0xf]
                %470 = vst [vmem:[%s464 + $0x8] sm:$0xf] %v469
                %v471 = vld [vmem:[%s463 + $0xc] sm:$0xf]
                %472 = vst [vmem:[%s464 + $0xc] sm:$0xf] %v471
                %v473 = vld [vmem:[%s463 + $0x10] sm:$0xf]
                %474 = vst [vmem:[%s464 + $0x10] sm:$0xf] %v473
                %v475 = vld [vmem:[%s463 + $0x14] sm:$0xf]
                %476 = vst [vmem:[%s464 + $0x14] sm:$0xf] %v475
                %v477 = vld [vmem:[%s463 + $0x18] sm:$0xf]
                %478 = vst [vmem:[%s464 + $0x18] sm:$0xf] %v477
                %v479 = vld [vmem:[%s463 + $0x1c] sm:$0xf]
                %480 = vst [vmem:[%s464 + $0x1c] sm:$0xf] %v479
                %v481 = vld [vmem:[%s463 + $0x20] sm:$0xf]
                %482 = vst [vmem:[%s464 + $0x20] sm:$0xf] %v481
                %v483 = vld [vmem:[%s463 + $0x24] sm:$0xf]
                %484 = vst [vmem:[%s464 + $0x24] sm:$0xf] %v483
                %v485 = vld [vmem:[%s463 + $0x28] sm:$0xf]
                %486 = vst [vmem:[%s464 + $0x28] sm:$0xf] %v485
                %v487 = vld [vmem:[%s463 + $0x2c] sm:$0xf]
                %488 = vst [vmem:[%s464 + $0x2c] sm:$0xf] %v487
                %v489 = vld [vmem:[%s463 + $0x30] sm:$0xf]
                %490 = vst [vmem:[%s464 + $0x30] sm:$0xf] %v489
                %v491 = vld [vmem:[%s463 + $0x34] sm:$0xf]
                %492 = vst [vmem:[%s464 + $0x34] sm:$0xf] %v491
                %v493 = vld [vmem:[%s463 + $0x38] sm:$0xf]
                %494 = vst [vmem:[%s464 + $0x38] sm:$0xf] %v493
                %v495 = vld [vmem:[%s463 + $0x3c] sm:$0xf]
                %496 = vst [vmem:[%s464 + $0x3c] sm:$0xf] %v495
                %v497 = vld [vmem:[%s463 + $0x40] sm:$0xf]
                %498 = vst [vmem:[%s464 + $0x40] sm:$0xf] %v497
                %v499 = vld [vmem:[%s463 + $0x44] sm:$0xf]
                %500 = vst [vmem:[%s464 + $0x44] sm:$0xf] %v499
                %v501 = vld [vmem:[%s463 + $0x48] sm:$0xf]
                %502 = vst [vmem:[%s464 + $0x48] sm:$0xf] %v501
                %v503 = vld [vmem:[%s463 + $0x4c] sm:$0xf]
                %504 = vst [vmem:[%s464 + $0x4c] sm:$0xf] %v503
                %v505 = vld [vmem:[%s463 + $0x50] sm:$0xf]
                %506 = vst [vmem:[%s464 + $0x50] sm:$0xf] %v505
                %v507 = vld [vmem:[%s463 + $0x54] sm:$0xf]
                %508 = vst [vmem:[%s464 + $0x54] sm:$0xf] %v507
                %v509 = vld [vmem:[%s463 + $0x58] sm:$0xf]
                %510 = vst [vmem:[%s464 + $0x58] sm:$0xf] %v509
                %v511 = vld [vmem:[%s463 + $0x5c] sm:$0xf]
                %512 = vst [vmem:[%s464 + $0x5c] sm:$0xf] %v511
                %v513 = vld [vmem:[%s463 + $0x60] sm:$0xf]
                %514 = vst [vmem:[%s464 + $0x60] sm:$0xf] %v513
                %v515 = vld [vmem:[%s463 + $0x64] sm:$0xf]
                %516 = vst [vmem:[%s464 + $0x64] sm:$0xf] %v515
                %v517 = vld [vmem:[%s463 + $0x68] sm:$0xf]
                %518 = vst [vmem:[%s464 + $0x68] sm:$0xf] %v517
                %v519 = vld [vmem:[%s463 + $0x6c] sm:$0xf]
                %520 = vst [vmem:[%s464 + $0x6c] sm:$0xf] %v519
                %v521 = vld [vmem:[%s463 + $0x70] sm:$0xf]
                %522 = vst [vmem:[%s464 + $0x70] sm:$0xf] %v521
                %v523 = vld [vmem:[%s463 + $0x74] sm:$0xf]
                %524 = vst [vmem:[%s464 + $0x74] sm:$0xf] %v523
                %v525 = vld [vmem:[%s463 + $0x78] sm:$0xf]
                %526 = vst [vmem:[%s464 + $0x78] sm:$0xf] %v525
                %v527 = vld [vmem:[%s463 + $0x7c] sm:$0xf]
                %528 = vst [vmem:[%s464 + $0x7c] sm:$0xf] %v527
                %v529 = vld [vmem:[%s463 + $0x80] sm:$0xf]
                %530 = vst [vmem:[%s464 + $0x80] sm:$0xf] %v529
                %v531 = vld [vmem:[%s463 + $0x84] sm:$0xf]
                %532 = vst [vmem:[%s464 + $0x84] sm:$0xf] %v531
                %v533 = vld [vmem:[%s463 + $0x88] sm:$0xf]
                %534 = vst [vmem:[%s464 + $0x88] sm:$0xf] %v533
                %v535 = vld [vmem:[%s463 + $0x8c] sm:$0xf]
                %536 = vst [vmem:[%s464 + $0x8c] sm:$0xf] %v535
                %v537 = vld [vmem:[%s463 + $0x90] sm:$0xf]
                %538 = vst [vmem:[%s464 + $0x90] sm:$0xf] %v537
                %v539 = vld [vmem:[%s463 + $0x94] sm:$0xf]
                %540 = vst [vmem:[%s464 + $0x94] sm:$0xf] %v539
                %v541 = vld [vmem:[%s463 + $0x98] sm:$0xf]
                %542 = vst [vmem:[%s464 + $0x98] sm:$0xf] %v541
                %v543 = vld [vmem:[%s463 + $0x9c] sm:$0xf]
                %544 = vst [vmem:[%s464 + $0x9c] sm:$0xf] %v543
                %v545 = vld [vmem:[%s463 + $0xa0] sm:$0xf]
                %546 = vst [vmem:[%s464 + $0xa0] sm:$0xf] %v545
                %v547 = vld [vmem:[%s463 + $0xa4] sm:$0xf]
                %548 = vst [vmem:[%s464 + $0xa4] sm:$0xf] %v547
                %v549 = vld [vmem:[%s463 + $0xa8] sm:$0xf]
                %550 = vst [vmem:[%s464 + $0xa8] sm:$0xf] %v549
                %v551 = vld [vmem:[%s463 + $0xac] sm:$0xf]
                %552 = vst [vmem:[%s464 + $0xac] sm:$0xf] %v551
                %v553 = vld [vmem:[%s463 + $0xb0] sm:$0xf]
                %554 = vst [vmem:[%s464 + $0xb0] sm:$0xf] %v553
                %v555 = vld [vmem:[%s463 + $0xb4] sm:$0xf]
                %556 = vst [vmem:[%s464 + $0xb4] sm:$0xf] %v555
                %v557 = vld [vmem:[%s463 + $0xb8] sm:$0xf]
                %558 = vst [vmem:[%s464 + $0xb8] sm:$0xf] %v557
                %v559 = vld [vmem:[%s463 + $0xbc] sm:$0xf]
                %560 = vst [vmem:[%s464 + $0xbc] sm:$0xf] %v559
                %v561 = vld [vmem:[%s463 + $0xc0] sm:$0xf]
                %562 = vst [vmem:[%s464 + $0xc0] sm:$0xf] %v561
                %v563 = vld [vmem:[%s463 + $0xc4] sm:$0xf]
                %564 = vst [vmem:[%s464 + $0xc4] sm:$0xf] %v563
                %v565 = vld [vmem:[%s463 + $0xc8] sm:$0xf]
                %566 = vst [vmem:[%s464 + $0xc8] sm:$0xf] %v565
                %v567 = vld [vmem:[%s463 + $0xcc] sm:$0xf]
                %568 = vst [vmem:[%s464 + $0xcc] sm:$0xf] %v567
                %v569 = vld [vmem:[%s463 + $0xd0] sm:$0xf]
                %570 = vst [vmem:[%s464 + $0xd0] sm:$0xf] %v569
                %v571 = vld [vmem:[%s463 + $0xd4] sm:$0xf]
                %572 = vst [vmem:[%s464 + $0xd4] sm:$0xf] %v571
                %v573 = vld [vmem:[%s463 + $0xd8] sm:$0xf]
                %574 = vst [vmem:[%s464 + $0xd8] sm:$0xf] %v573
                %v575 = vld [vmem:[%s463 + $0xdc] sm:$0xf]
                %576 = vst [vmem:[%s464 + $0xdc] sm:$0xf] %v575
                %v577 = vld [vmem:[%s463 + $0xe0] sm:$0xf]
                %578 = vst [vmem:[%s464 + $0xe0] sm:$0xf] %v577
                %v579 = vld [vmem:[%s463 + $0xe4] sm:$0xf]
                %580 = vst [vmem:[%s464 + $0xe4] sm:$0xf] %v579
                %v581 = vld [vmem:[%s463 + $0xe8] sm:$0xf]
                %582 = vst [vmem:[%s464 + $0xe8] sm:$0xf] %v581
                %v583 = vld [vmem:[%s463 + $0xec] sm:$0xf]
                %584 = vst [vmem:[%s464 + $0xec] sm:$0xf] %v583
                %v585 = vld [vmem:[%s463 + $0xf0] sm:$0xf]
                %586 = vst [vmem:[%s464 + $0xf0] sm:$0xf] %v585
                %v587 = vld [vmem:[%s463 + $0xf4] sm:$0xf]
                %588 = vst [vmem:[%s464 + $0xf4] sm:$0xf] %v587
                %v589 = vld [vmem:[%s463 + $0xf8] sm:$0xf]
                %590 = vst [vmem:[%s464 + $0xf8] sm:$0xf] %v589
                %v591 = vld [vmem:[%s463 + $0xfc] sm:$0xf]
                %592 = vst [vmem:[%s464 + $0xfc] sm:$0xf] %v591
                %v593 = vld [vmem:[%s463 + $0x200] sm:$0xf]
                %594 = vst [vmem:[%s464 + $0x100] sm:$0xf] %v593
                %v595 = vld [vmem:[%s463 + $0x204] sm:$0xf]
                %596 = vst [vmem:[%s464 + $0x104] sm:$0xf] %v595
                %v597 = vld [vmem:[%s463 + $0x208] sm:$0xf]
                %598 = vst [vmem:[%s464 + $0x108] sm:$0xf] %v597
                %v599 = vld [vmem:[%s463 + $0x20c] sm:$0xf]
                %600 = vst [vmem:[%s464 + $0x10c] sm:$0xf] %v599
                %v601 = vld [vmem:[%s463 + $0x210] sm:$0xf]
                %602 = vst [vmem:[%s464 + $0x110] sm:$0xf] %v601
                %v603 = vld [vmem:[%s463 + $0x214] sm:$0xf]
                %604 = vst [vmem:[%s464 + $0x114] sm:$0xf] %v603
                %v605 = vld [vmem:[%s463 + $0x218] sm:$0xf]
                %606 = vst [vmem:[%s464 + $0x118] sm:$0xf] %v605
                %v607 = vld [vmem:[%s463 + $0x21c] sm:$0xf]
                %608 = vst [vmem:[%s464 + $0x11c] sm:$0xf] %v607
                %v609 = vld [vmem:[%s463 + $0x220] sm:$0xf]
                %610 = vst [vmem:[%s464 + $0x120] sm:$0xf] %v609
                %v611 = vld [vmem:[%s463 + $0x224] sm:$0xf]
                %612 = vst [vmem:[%s464 + $0x124] sm:$0xf] %v611
                %v613 = vld [vmem:[%s463 + $0x228] sm:$0xf]
                %614 = vst [vmem:[%s464 + $0x128] sm:$0xf] %v613
                %v615 = vld [vmem:[%s463 + $0x22c] sm:$0xf]
                %616 = vst [vmem:[%s464 + $0x12c] sm:$0xf] %v615
                %v617 = vld [vmem:[%s463 + $0x230] sm:$0xf]
                %618 = vst [vmem:[%s464 + $0x130] sm:$0xf] %v617
                %v619 = vld [vmem:[%s463 + $0x234] sm:$0xf]
                %620 = vst [vmem:[%s464 + $0x134] sm:$0xf] %v619
                %v621 = vld [vmem:[%s463 + $0x238] sm:$0xf]
                %622 = vst [vmem:[%s464 + $0x138] sm:$0xf] %v621
                %v623 = vld [vmem:[%s463 + $0x23c] sm:$0xf]
                %624 = vst [vmem:[%s464 + $0x13c] sm:$0xf] %v623
                %v625 = vld [vmem:[%s463 + $0x240] sm:$0xf]
                %626 = vst [vmem:[%s464 + $0x140] sm:$0xf] %v625
                %v627 = vld [vmem:[%s463 + $0x244] sm:$0xf]
                %628 = vst [vmem:[%s464 + $0x144] sm:$0xf] %v627
                %v629 = vld [vmem:[%s463 + $0x248] sm:$0xf]
                %630 = vst [vmem:[%s464 + $0x148] sm:$0xf] %v629
                %v631 = vld [vmem:[%s463 + $0x24c] sm:$0xf]
                %632 = vst [vmem:[%s464 + $0x14c] sm:$0xf] %v631
                %v633 = vld [vmem:[%s463 + $0x250] sm:$0xf]
                %634 = vst [vmem:[%s464 + $0x150] sm:$0xf] %v633
                %v635 = vld [vmem:[%s463 + $0x254] sm:$0xf]
                %636 = vst [vmem:[%s464 + $0x154] sm:$0xf] %v635
                %v637 = vld [vmem:[%s463 + $0x258] sm:$0xf]
                %638 = vst [vmem:[%s464 + $0x158] sm:$0xf] %v637
                %v639 = vld [vmem:[%s463 + $0x25c] sm:$0xf]
                %640 = vst [vmem:[%s464 + $0x15c] sm:$0xf] %v639
                %v641 = vld [vmem:[%s463 + $0x260] sm:$0xf]
                %642 = vst [vmem:[%s464 + $0x160] sm:$0xf] %v641
                %v643 = vld [vmem:[%s463 + $0x264] sm:$0xf]
                %644 = vst [vmem:[%s464 + $0x164] sm:$0xf] %v643
                %v645 = vld [vmem:[%s463 + $0x268] sm:$0xf]
                %646 = vst [vmem:[%s464 + $0x168] sm:$0xf] %v645
                %v647 = vld [vmem:[%s463 + $0x26c] sm:$0xf]
                %648 = vst [vmem:[%s464 + $0x16c] sm:$0xf] %v647
                %v649 = vld [vmem:[%s463 + $0x270] sm:$0xf]
                %650 = vst [vmem:[%s464 + $0x170] sm:$0xf] %v649
                %v651 = vld [vmem:[%s463 + $0x274] sm:$0xf]
                %652 = vst [vmem:[%s464 + $0x174] sm:$0xf] %v651
                %v653 = vld [vmem:[%s463 + $0x278] sm:$0xf]
                %654 = vst [vmem:[%s464 + $0x178] sm:$0xf] %v653
                %v655 = vld [vmem:[%s463 + $0x27c] sm:$0xf]
                %656 = vst [vmem:[%s464 + $0x17c] sm:$0xf] %v655
                %v657 = vld [vmem:[%s463 + $0x280] sm:$0xf]
                %658 = vst [vmem:[%s464 + $0x180] sm:$0xf] %v657
                %v659 = vld [vmem:[%s463 + $0x284] sm:$0xf]
                %660 = vst [vmem:[%s464 + $0x184] sm:$0xf] %v659
                %v661 = vld [vmem:[%s463 + $0x288] sm:$0xf]
                %662 = vst [vmem:[%s464 + $0x188] sm:$0xf] %v661
                %v663 = vld [vmem:[%s463 + $0x28c] sm:$0xf]
                %664 = vst [vmem:[%s464 + $0x18c] sm:$0xf] %v663
                %v665 = vld [vmem:[%s463 + $0x290] sm:$0xf]
                %666 = vst [vmem:[%s464 + $0x190] sm:$0xf] %v665
                %v667 = vld [vmem:[%s463 + $0x294] sm:$0xf]
                %668 = vst [vmem:[%s464 + $0x194] sm:$0xf] %v667
                %v669 = vld [vmem:[%s463 + $0x298] sm:$0xf]
                %670 = vst [vmem:[%s464 + $0x198] sm:$0xf] %v669
                %v671 = vld [vmem:[%s463 + $0x29c] sm:$0xf]
                %672 = vst [vmem:[%s464 + $0x19c] sm:$0xf] %v671
                %v673 = vld [vmem:[%s463 + $0x2a0] sm:$0xf]
                %674 = vst [vmem:[%s464 + $0x1a0] sm:$0xf] %v673
                %v675 = vld [vmem:[%s463 + $0x2a4] sm:$0xf]
                %676 = vst [vmem:[%s464 + $0x1a4] sm:$0xf] %v675
                %v677 = vld [vmem:[%s463 + $0x2a8] sm:$0xf]
                %678 = vst [vmem:[%s464 + $0x1a8] sm:$0xf] %v677
                %v679 = vld [vmem:[%s463 + $0x2ac] sm:$0xf]
                %680 = vst [vmem:[%s464 + $0x1ac] sm:$0xf] %v679
                %v681 = vld [vmem:[%s463 + $0x2b0] sm:$0xf]
                %682 = vst [vmem:[%s464 + $0x1b0] sm:$0xf] %v681
                %v683 = vld [vmem:[%s463 + $0x2b4] sm:$0xf]
                %684 = vst [vmem:[%s464 + $0x1b4] sm:$0xf] %v683
                %v685 = vld [vmem:[%s463 + $0x2b8] sm:$0xf]
                %686 = vst [vmem:[%s464 + $0x1b8] sm:$0xf] %v685
                %v687 = vld [vmem:[%s463 + $0x2bc] sm:$0xf]
                %688 = vst [vmem:[%s464 + $0x1bc] sm:$0xf] %v687
                %v689 = vld [vmem:[%s463 + $0x2c0] sm:$0xf]
                %690 = vst [vmem:[%s464 + $0x1c0] sm:$0xf] %v689
                %v691 = vld [vmem:[%s463 + $0x2c4] sm:$0xf]
                %692 = vst [vmem:[%s464 + $0x1c4] sm:$0xf] %v691
                %v693 = vld [vmem:[%s463 + $0x2c8] sm:$0xf]
                %694 = vst [vmem:[%s464 + $0x1c8] sm:$0xf] %v693
                %v695 = vld [vmem:[%s463 + $0x2cc] sm:$0xf]
                %696 = vst [vmem:[%s464 + $0x1cc] sm:$0xf] %v695
                %v697 = vld [vmem:[%s463 + $0x2d0] sm:$0xf]
                %698 = vst [vmem:[%s464 + $0x1d0] sm:$0xf] %v697
                %v699 = vld [vmem:[%s463 + $0x2d4] sm:$0xf]
                %700 = vst [vmem:[%s464 + $0x1d4] sm:$0xf] %v699
                %v701 = vld [vmem:[%s463 + $0x2d8] sm:$0xf]
                %702 = vst [vmem:[%s464 + $0x1d8] sm:$0xf] %v701
                %v703 = vld [vmem:[%s463 + $0x2dc] sm:$0xf]
                %704 = vst [vmem:[%s464 + $0x1dc] sm:$0xf] %v703
                %v705 = vld [vmem:[%s463 + $0x2e0] sm:$0xf]
                %706 = vst [vmem:[%s464 + $0x1e0] sm:$0xf] %v705
                %v707 = vld [vmem:[%s463 + $0x2e4] sm:$0xf]
                %708 = vst [vmem:[%s464 + $0x1e4] sm:$0xf] %v707
                %v709 = vld [vmem:[%s463 + $0x2e8] sm:$0xf]
                %710 = vst [vmem:[%s464 + $0x1e8] sm:$0xf] %v709
                %v711 = vld [vmem:[%s463 + $0x2ec] sm:$0xf]
                %712 = vst [vmem:[%s464 + $0x1ec] sm:$0xf] %v711
                %v713 = vld [vmem:[%s463 + $0x2f0] sm:$0xf]
                %714 = vst [vmem:[%s464 + $0x1f0] sm:$0xf] %v713
                %v715 = vld [vmem:[%s463 + $0x2f4] sm:$0xf]
                %716 = vst [vmem:[%s464 + $0x1f4] sm:$0xf] %v715
                %v717 = vld [vmem:[%s463 + $0x2f8] sm:$0xf]
                %718 = vst [vmem:[%s464 + $0x1f8] sm:$0xf] %v717
                %v719 = vld [vmem:[%s463 + $0x2fc] sm:$0xf]
                %720 = vst [vmem:[%s464 + $0x1fc] sm:$0xf] %v719
              $region85: #{tpu_custom_call.1} parent=79 // loop_footer
                %s462 = sadd.s32 1, %s458
              $region86: #{tpu_custom_call.1} parent=79 // loop_footer_branch
                %457 = sbr.rel target = $region82
              $region87: #{tpu_custom_call.1} parent=79 // loop_exit
                _
            $region80: #{tpu_custom_call.1} parent=71 // pred_fallthru
              _
          $region72: #{tpu_custom_call.1} parent=67 // pred_fallthru
            _
          %996 = vnop
        $region68: #{tpu_custom_call.1} parent=63 // pred_fallthru
          _
      $region64: #{tpu_custom_call.1} parent=5 // pred_fallthru
        _
      %p997 = scmp.le.s32.totalorder 1, %s22
      %p998 = scmp.lt.s32.totalorder %s22, 3
      %p999 = pnand %p997, %p998
      %p1000 = pneg %p999
      // Predicated region
      $region106: #{tpu_custom_call.1} parent=5 // pred_check
        _
      $region107: #{tpu_custom_call.1} parent=5 // pred_check_branch
        %1002 = sbr.rel (%p999) target = $region109
      $region108: #{tpu_custom_call.1} parent=5 // pred_region
        %s1003 = ssub.s32 %s22, 1
        %s1004 = sand.u32 %s49, 1
        %s1005 = sand.u32 %s49, 1
        %s1006 = smul.addr %s1005, 512
        %s1007 = scalar_lea.vmem [#allocation4], %s1006
        // Predicated region
        $region110: #{tpu_custom_call.1} parent=108 // pred_check
          %p1008 = pneg %p62
        $region111: #{tpu_custom_call.1} parent=108 // pred_check_branch
          %1010 = sbr.rel (%p1008) target = $region113
        $region112: #{tpu_custom_call.1} parent=108 // pred_region
          _
        $region113: #{tpu_custom_call.1} parent=108 // pred_fallthru
          _
        // Predicated region
        $region114: #{tpu_custom_call.1} parent=108 // pred_check
          %p1011 = pneg %p235
        $region115: #{tpu_custom_call.1} parent=108 // pred_check_branch
          %1013 = sbr.rel (%p1011) target = $region117
        $region116: #{tpu_custom_call.1} parent=108 // pred_region
          %1014 = dma.done [#allocation6], 6144
        $region117: #{tpu_custom_call.1} parent=108 // pred_fallthru
          _
        // Predicated region
        $region118: #{tpu_custom_call.1} parent=108 // pred_check
          %p1015 = pneg %p277
        $region119: #{tpu_custom_call.1} parent=108 // pred_check_branch
          %1017 = sbr.rel (%p1015) target = $region121
        $region120: #{tpu_custom_call.1} parent=108 // pred_region
          %1018 = dma.done [#allocation9], 16384
        $region121: #{tpu_custom_call.1} parent=108 // pred_fallthru
          _
        // Predicated region
        $region122: #{tpu_custom_call.1} parent=108 // pred_check
          %p1019 = pneg %p298
        $region123: #{tpu_custom_call.1} parent=108 // pred_check_branch
          %1021 = sbr.rel (%p1019) target = $region125
        $region124: #{tpu_custom_call.1} parent=108 // pred_region
          %1022 = dma.done [#allocation9], 6144
        $region125: #{tpu_custom_call.1} parent=108 // pred_fallthru
          _
        %s1023 = sand.u32 %s49, 1
        %s1024 = sand.u32 %s49, 1
        %s1025 = smul.addr %s1024, 512
        %s1026 = scalar_lea.vmem [#allocation4], %s1025
        %p1027 = pneg %p62
        %p1028 = pneg %p59
        %s1029 = smul.u32 2, %s31
        %p1030 = scmp.lt.s32.totalorder %s1029, 1
        %s1031 = scalar_select %p1030, %s1029, 1
        %s1032 = smul.addr %s1031, 4
        %s1033 = smul.addr %s1032, 4
        %s1034 = scalar_lea.vmem %s1, %s1033
        %p1035 = pneg %p88
        %p1036 = pneg %p85
        %p1037 = pneg %p109
        %p1038 = pneg %p106
        %p1039 = pneg %p130
        %p1040 = pneg %p127
        %p1041 = pneg %p151
        %p1042 = pneg %p148
        %p1043 = pneg %p172
        %p1044 = pneg %p169
        %p1045 = pneg %p193
        %p1046 = pneg %p190
        %p1047 = pneg %p214
        %p1048 = pneg %p211
        %p1049 = pneg %p235
        %p1050 = pneg %p232
        %p1051 = pneg %p256
        %p1052 = pneg %p253
        %p1053 = pneg %p277
        %p1054 = pneg %p274
        %p1055 = pneg %p298
        %p1056 = pneg %p295
        %p1057 = pneg %p319
        %p1058 = pneg %p316
        %p1059 = pneg %p345
        %p1060 = pneg %p342
        %s1061 = smul.u32 2, %s31
        %s1062 = smul.u32 64, %s32
        %s1063 = smul.u32 2, %s31
        %p1064 = scmp.lt.s32.totalorder %s1063, 1
        %s1065 = scalar_select %p1064, %s1063, 1
        %s1066 = smul.addr %s1065, 4
        %s1067 = smul.addr %s1066, 4
        %s1068 = scalar_lea.vmem %s1, %s1067
        %s1069 = smul.u32 2, %s31
        %p1071 = scmp.eq.s32.totalorder %s32, 0
        // Predicated region
        $region126: #{tpu_custom_call.1} parent=108 // pred_check
          %p1072 = pneg %p1071
        $region127: #{tpu_custom_call.1} parent=108 // pred_check_branch
          %1074 = sbr.rel (%p1072) target = $region129
        $region128: #{tpu_custom_call.1} parent=108 // pred_region
          %1075 = vst [vmem:[#allocation2] sm:$0x3] 0.0
          %v1076 = vld [vmem:[%s1068] sm:$0xff]
          %v1077 = vld [vmem:[%s1068 + $0x8] sm:$0xff]
          %v1078 = vld [vmem:[%s1068 + $0x10] sm:$0xff]
          %v1079 = vld [vmem:[%s1068 + $0x18] sm:$0xff]
          %v1080 = vld [vmem:[%s6] sm:$0xf]
          %v1081 = vld [vmem:[%s6 + $0x4] sm:$0xf]
          %v1082 = vld [vmem:[%s6 + $0x8] sm:$0xf]
          %v1083 = vld [vmem:[%s6 + $0xc] sm:$0xf]
          %v1084 = vld [vmem:[%s6 + $0x10] sm:$0xf]
          %v1085 = vld [vmem:[%s6 + $0x14] sm:$0xf]
          %v1086 = vld [vmem:[%s6 + $0x18] sm:$0xf]
          %v1087 = vld [vmem:[%s6 + $0x1c] sm:$0xf]
          %v1088 = vld [vmem:[%s6 + $0x20] sm:$0xf]
          %v1089 = vld [vmem:[%s6 + $0x24] sm:$0xf]
          %v1090 = vld [vmem:[%s6 + $0x28] sm:$0xf]
          %v1091 = vld [vmem:[%s6 + $0x2c] sm:$0xf]
          %v1092 = vld [vmem:[%s6 + $0x30] sm:$0xf]
          %v1093 = vld [vmem:[%s6 + $0x34] sm:$0xf]
          %v1094 = vld [vmem:[%s6 + $0x38] sm:$0xf]
          %v1095 = vld [vmem:[%s6 + $0x3c] sm:$0xf]
          %v1096 = vld [vmem:[%s6 + $0x40] sm:$0xf]
          %v1097 = vld [vmem:[%s6 + $0x44] sm:$0xf]
          %v1098 = vld [vmem:[%s6 + $0x48] sm:$0xf]
          %v1099 = vld [vmem:[%s6 + $0x4c] sm:$0xf]
          %v1100 = vld [vmem:[%s6 + $0x50] sm:$0xf]
          %v1101 = vld [vmem:[%s6 + $0x54] sm:$0xf]
          %v1102 = vld [vmem:[%s6 + $0x58] sm:$0xf]
          %v1103 = vld [vmem:[%s6 + $0x5c] sm:$0xf]
          %v1104 = vld [vmem:[%s7] sm:$0x1]
          %v1106 = vlaneseq
          %v1107 = vshrl.u32 %v1106, 7
          %v1108 = vsub.s32 0, %v1107
          %v1109 = vrot.slane %v1104, %v1108
          %v1115 = vunpack.c.l.b16 %v1076
          %v1116 = vunpack.c.h.b16 %v1076
          %v1117 = vunpack.c.l.b16 %v1077
          %v1118 = vunpack.c.h.b16 %v1077
          %v1119 = vunpack.c.l.b16 %v1078
          %v1120 = vunpack.c.h.b16 %v1078
          %v1121 = vunpack.c.l.b16 %v1079
          %v1122 = vunpack.c.h.b16 %v1079
          %v1123 = vpack.c.b16 %v1117, %v1115
          %v1124 = vpack.c.b16 %v1118, %v1116
          %v1125 = vpack.c.b16 %v1121, %v1119
          %v1126 = vpack.c.b16 %v1122, %v1120
          %v1153 = vunpack.c.l.b16 %v1080
          %v1154 = vunpack.c.l.b16 %v1081
          %v1155 = vunpack.c.l.b16 %v1082
          %v1156 = vunpack.c.l.b16 %v1083
          %v1157 = vunpack.c.l.b16 %v1084
          %v1158 = vunpack.c.l.b16 %v1085
          %v1159 = vunpack.c.l.b16 %v1086
          %v1160 = vunpack.c.l.b16 %v1087
          %v1161 = vunpack.c.l.b16 %v1088
          %v1162 = vunpack.c.l.b16 %v1089
          %v1163 = vunpack.c.l.b16 %v1090
          %v1164 = vunpack.c.l.b16 %v1091
          %v1165 = vunpack.c.l.b16 %v1092
          %v1166 = vunpack.c.l.b16 %v1093
          %v1167 = vunpack.c.l.b16 %v1094
          %v1168 = vunpack.c.l.b16 %v1095
          %v1169 = vunpack.c.l.b16 %v1096
          %v1170 = vunpack.c.l.b16 %v1097
          %v1171 = vunpack.c.l.b16 %v1098
          %v1172 = vunpack.c.l.b16 %v1099
          %v1173 = vunpack.c.l.b16 %v1100
          %v1174 = vunpack.c.l.b16 %v1101
          %v1175 = vunpack.c.l.b16 %v1102
          %v1176 = vunpack.c.l.b16 %v1103
          %v1177 = vpack.c.b16 %v1154, %v1153
          %v1178 = vpack.c.b16 %v1156, %v1155
          %v1179 = vpack.c.b16 %v1158, %v1157
          %v1180 = vpack.c.b16 %v1160, %v1159
          %v1181 = vpack.c.b16 %v1162, %v1161
          %v1182 = vpack.c.b16 %v1164, %v1163
          %v1183 = vpack.c.b16 %v1166, %v1165
          %v1184 = vpack.c.b16 %v1168, %v1167
          %v1185 = vpack.c.b16 %v1170, %v1169
          %v1186 = vpack.c.b16 %v1172, %v1171
          %v1187 = vpack.c.b16 %v1174, %v1173
          %v1188 = vpack.c.b16 %v1176, %v1175
          %vm1201 = vcmask 523264
          %v1203 = vsel %vm1201, %v1124, 0
          %v1206 = vsel %vm1201, %v1126, 0
          %1208 = vmatprep.subr.bf16.mxu0 0
          %1209 = vmatpush1.bf16.msra.mxu0 %v1177
          %1210 = vmatprep.subr.bf16.mxu0 0
          %1211 = vmatpush1.bf16.msra.mxu0 %v1178
          %1212 = vmatprep.subr.bf16.mxu0 0
          %1213 = vmatpush1.bf16.msra.mxu0 %v1179
          %1214 = vmatprep.subr.bf16.mxu0 0
          %1215 = vmatpush1.bf16.msra.mxu0 %v1180
          %1216 = vmatprep.subr.bf16.mxu0 0
          %1217 = vmatpush1.bf16.msra.mxu0 %v1181
          %1218 = vmatprep.subr.bf16.mxu0 0
          %1219 = vmatpush1.bf16.msra.mxu0 %v1182
          %1220 = vmatprep.subr.bf16.mxu0 0
          %1221 = vmatpush1.bf16.msra.mxu0 %v1183
          %1222 = vmatprep.subr.bf16.mxu0 0
          %1223 = vmatpush1.bf16.msra.mxu0 %v1184
          %1224 = vmatprep.subr.bf16.mxu0 0
          %1225 = vmatpush1.bf16.msra.mxu0 %v1185
          %1226 = vmatprep.subr.bf16.mxu0 0
          %1227 = vmatpush1.bf16.msra.mxu0 %v1186
          %1228 = vmatprep.subr.bf16.mxu0 0
          %1229 = vmatpush1.bf16.msra.mxu0 %v1187
          %1230 = vmatprep.subr.bf16.mxu0 0
          %1231 = vmatpush1.bf16.msra.mxu0 %v1188
          %1232 = vmatprep.subr.bf16.mxu0 0
          %1233 = vmatpush1.bf16.msra.mxu0 0
          %1234 = vmatprep.subr.bf16.mxu0 0
          %1235 = vmatpush1.bf16.msra.mxu0 0
          %1236 = vmatprep.subr.bf16.mxu0 0
          %1237 = vmatpush1.bf16.msra.mxu0 0
          %1238 = vmatprep.subr.bf16.mxu0 0
          %1239 = vmatpush1.bf16.msra.mxu0 0
          %1240 = vmatprep.mubr.bf16.mxu0 %v1203
          %1241 = vmatmul.mubr.bf16.gmra.mrb[0].mxu0 %v1123
          %v1242 = vpop.f32.mrb[0].mxu0
          %v1243 = vadd.f32 %v1109, %v1242
          %v1244 = vpop.f32.mrb[0].mxu0
          %v1245 = vpop.f32.mrb[0].mxu0
          %v1246 = vadd.f32 %v1109, %v1245
          %v1247 = vpop.f32.mrb[0].mxu0
          %1248 = vmatprep.mubr.bf16.mxu0 %v1206
          %1249 = vmatmul.mubr.bf16.gmra.mrb[0].mxu0 %v1125
          %v1250 = vpop.f32.mrb[0].mxu0
          %v1251 = vadd.f32 %v1109, %v1250
          %v1252 = vpop.f32.mrb[0].mxu0
          %v1253 = vpop.f32.mrb[0].mxu0
          %v1254 = vadd.f32 %v1109, %v1253
          %v1255 = vpop.f32.mrb[0].mxu0
          %1256 = vdwg.mxu0
          %v1257 = vmul.f32 %v1243, %v1243
          %v1258 = vmul.f32 %v1246, %v1246
          %v1259 = vmul.f32 %v1251, %v1251
          %v1260 = vmul.f32 %v1254, %v1254
          %v1261 = vmul.f32 %v1243, %v1257
          %v1262 = vmul.f32 %v1246, %v1258
          %v1263 = vmul.f32 %v1251, %v1259
          %v1264 = vmul.f32 %v1254, %v1260
          %v1265 = vmul.f32 %v1261, 0.044715
          %v1266 = vmul.f32 %v1262, 0.044715
          %v1267 = vmul.f32 %v1263, 0.044715
          %v1268 = vmul.f32 %v1264, 0.044715
          %v1269 = vadd.f32 %v1243, %v1265
          %v1270 = vadd.f32 %v1246, %v1266
          %v1271 = vadd.f32 %v1251, %v1267
          %v1272 = vadd.f32 %v1254, %v1268
          %v1273 = vmul.f32 %v1269, 0.7978846
          %v1274 = vmul.f32 %v1270, 0.7978846
          %v1275 = vmul.f32 %v1271, 0.7978846
          %v1276 = vmul.f32 %v1272, 0.7978846
          %v1277 = vtanh.pop %v1273
          %v1278 = vtanh.pop %v1274
          %v1279 = vtanh.pop %v1275
          %v1280 = vtanh.pop %v1276
          %v1281 = vadd.f32 %v1277, 1.0
          %v1282 = vadd.f32 %v1278, 1.0
          %v1283 = vadd.f32 %v1279, 1.0
          %v1284 = vadd.f32 %v1280, 1.0
          %v1285 = vmul.f32 %v1281, 0.5
          %v1286 = vmul.f32 %v1282, 0.5
          %v1287 = vmul.f32 %v1283, 0.5
          %v1288 = vmul.f32 %v1284, 0.5
          %v1289 = vmul.f32 %v1243, %v1285
          %v1290 = vmul.f32 %v1246, %v1286
          %v1291 = vmul.f32 %v1251, %v1287
          %v1292 = vmul.f32 %v1254, %v1288
          %v1293 = vadd.f32 %v1289, %v1290
          %v1294 = vrot.slane %v1293, 4
          %v1295 = vadd.f32 %v1293, %v1294
          %v1296 = vrot.slane %v1295, 2
          %v1297 = vadd.f32 %v1295, %v1296
          %v1298 = vrot.slane %v1297, 1
          %v1299 = vadd.f32 %v1297, %v1298
          %v1300 = vadd.f32 %v1291, %v1292
          %v1301 = vrot.slane %v1300, 4
          %v1302 = vadd.f32 %v1300, %v1301
          %v1303 = vrot.slane %v1302, 2
          %v1304 = vadd.f32 %v1302, %v1303
          %v1305 = vrot.slane %v1304, 1
          %v1306 = vadd.f32 %v1304, %v1305
          %v1307 = vmul.f32 %v1299, 0.0625
          %v1308 = vmul.f32 %v1306, 0.0625
          %v1309 = vpack.c.bf16 %v1307, %v1307
          %v1310 = vpack.c.bf16 %v1308, %v1308
          %v1311 = vld [vmem:[#allocation5] sm:$0xff]
          %v1312 = vld [vmem:[#allocation5 + $0x8] sm:$0xff]
          %v1313 = vld [vmem:[#allocation5 + $0x10] sm:$0xff]
          %v1314 = vld [vmem:[#allocation5 + $0x18] sm:$0xff]
          %v1315 = vld [vmem:[#allocation5 + $0x20] sm:$0xff]
          %v1316 = vld [vmem:[#allocation5 + $0x28] sm:$0xff]
          %v1317 = vld [vmem:[#allocation5 + $0x30] sm:$0xff]
          %v1318 = vld [vmem:[#allocation5 + $0x38] sm:$0xff]
          %v1319 = vld [vmem:[#allocation5 + $0x40] sm:$0xff]
          %v1320 = vld [vmem:[#allocation5 + $0x48] sm:$0xff]
          %v1321 = vld [vmem:[#allocation5 + $0x50] sm:$0xff]
          %v1322 = vld [vmem:[#allocation5 + $0x58] sm:$0xff]
          %v1323 = vld [vmem:[#allocation5 + $0x60] sm:$0xff]
          %v1324 = vld [vmem:[#allocation5 + $0x68] sm:$0xff]
          %v1325 = vld [vmem:[#allocation5 + $0x70] sm:$0xff]
          %v1326 = vld [vmem:[#allocation5 + $0x78] sm:$0xff]
          %v1327 = vld [vmem:[#allocation5 + $0x80] sm:$0xff]
          %v1328 = vld [vmem:[#allocation5 + $0x88] sm:$0xff]
          %v1329 = vld [vmem:[#allocation5 + $0x90] sm:$0xff]
          %v1330 = vld [vmem:[#allocation5 + $0x98] sm:$0xff]
          %v1331 = vld [vmem:[#allocation5 + $0xa0] sm:$0xff]
          %v1332 = vld [vmem:[#allocation5 + $0xa8] sm:$0xff]
          %v1333 = vld [vmem:[#allocation5 + $0xb0] sm:$0xff]
          %v1334 = vld [vmem:[#allocation5 + $0xb8] sm:$0xff]
          %v1335 = vld [vmem:[#allocation5 + $0xc0] sm:$0xff]
          %v1336 = vld [vmem:[#allocation5 + $0xc8] sm:$0xff]
          %v1337 = vld [vmem:[#allocation5 + $0xd0] sm:$0xff]
          %v1338 = vld [vmem:[#allocation5 + $0xd8] sm:$0xff]
          %v1339 = vld [vmem:[#allocation5 + $0xe0] sm:$0xff]
          %v1340 = vld [vmem:[#allocation5 + $0xe8] sm:$0xff]
          %v1341 = vld [vmem:[#allocation5 + $0xf0] sm:$0xff]
          %v1342 = vld [vmem:[#allocation5 + $0xf8] sm:$0xff]
          %v1343 = vld [vmem:[#allocation5 + $0x100] sm:$0xff]
          %v1344 = vld [vmem:[#allocation5 + $0x108] sm:$0xff]
          %v1345 = vld [vmem:[#allocation5 + $0x110] sm:$0xff]
          %v1346 = vld [vmem:[#allocation5 + $0x118] sm:$0xff]
          %v1347 = vld [vmem:[#allocation5 + $0x120] sm:$0xff]
          %v1348 = vld [vmem:[#allocation5 + $0x128] sm:$0xff]
          %v1349 = vld [vmem:[#allocation5 + $0x130] sm:$0xff]
          %v1350 = vld [vmem:[#allocation5 + $0x138] sm:$0xff]
          %v1351 = vld [vmem:[#allocation5 + $0x140] sm:$0xff]
          %v1352 = vld [vmem:[#allocation5 + $0x148] sm:$0xff]
          %v1353 = vld [vmem:[#allocation5 + $0x150] sm:$0xff]
          %v1354 = vld [vmem:[#allocation5 + $0x158] sm:$0xff]
          %v1355 = vld [vmem:[#allocation5 + $0x160] sm:$0xff]
          %v1356 = vld [vmem:[#allocation5 + $0x168] sm:$0xff]
          %v1357 = vld [vmem:[#allocation5 + $0x170] sm:$0xff]
          %v1358 = vld [vmem:[#allocation5 + $0x178] sm:$0xff]
          %v1359 = vld [vmem:[%s9] sm:$0x3f]
          %v1361 = vlaneseq
          %v1362 = vshrl.u32 %v1361, 7
          %v1363 = vsub.s32 0, %v1362
          %v1364 = vrot.slane %v1359, %v1363
          %v1365 = vlaneseq
          %v1366 = vshrl.u32 %v1365, 7
          %v1367 = vsub.s32 1, %v1366
          %v1368 = vrot.slane %v1359, %v1367
          %v1369 = vlaneseq
          %v1370 = vshrl.u32 %v1369, 7
          %v1371 = vsub.s32 2, %v1370
          %v1372 = vrot.slane %v1359, %v1371
          %v1373 = vlaneseq
          %v1374 = vshrl.u32 %v1373, 7
          %v1375 = vsub.s32 3, %v1374
          %v1376 = vrot.slane %v1359, %v1375
          %v1377 = vlaneseq
          %v1378 = vshrl.u32 %v1377, 7
          %v1379 = vsub.s32 4, %v1378
          %v1380 = vrot.slane %v1359, %v1379
          %v1381 = vlaneseq
          %v1382 = vshrl.u32 %v1381, 7
          %v1383 = vsub.s32 5, %v1382
          %v1384 = vrot.slane %v1359, %v1383
          %v1393 = vunpack.c.l.b16 %v1309
          %v1394 = vunpack.c.l.b16 %v1310
          %vm1395 = vcmask 1041409
          %v1396 = vsel %vm1395, %v1394, %v1393
          %v1397 = vpack.c.b16 %v1396, %v1396
          %v1447 = vunpack.c.l.b16 %v1311
          %v1448 = vunpack.c.h.b16 %v1311
          %v1449 = vunpack.c.l.b16 %v1312
          %v1450 = vunpack.c.h.b16 %v1312
          %v1451 = vunpack.c.l.b16 %v1313
          %v1452 = vunpack.c.h.b16 %v1313
          %v1453 = vunpack.c.l.b16 %v1314
          %v1454 = vunpack.c.h.b16 %v1314
          %v1455 = vunpack.c.l.b16 %v1315
          %v1456 = vunpack.c.h.b16 %v1315
          %v1457 = vunpack.c.l.b16 %v1316
          %v1458 = vunpack.c.h.b16 %v1316
          %v1459 = vunpack.c.l.b16 %v1317
          %v1460 = vunpack.c.h.b16 %v1317
          %v1461 = vunpack.c.l.b16 %v1318
          %v1462 = vunpack.c.h.b16 %v1318
          %v1463 = vunpack.c.l.b16 %v1319
          %v1464 = vunpack.c.h.b16 %v1319
          %v1465 = vunpack.c.l.b16 %v1320
          %v1466 = vunpack.c.h.b16 %v1320
          %v1467 = vunpack.c.l.b16 %v1321
          %v1468 = vunpack.c.h.b16 %v1321
          %v1469 = vunpack.c.l.b16 %v1322
          %v1470 = vunpack.c.h.b16 %v1322
          %v1471 = vunpack.c.l.b16 %v1323
          %v1472 = vunpack.c.h.b16 %v1323
          %v1473 = vunpack.c.l.b16 %v1324
          %v1474 = vunpack.c.h.b16 %v1324
          %v1475 = vunpack.c.l.b16 %v1325
          %v1476 = vunpack.c.h.b16 %v1325
          %v1477 = vunpack.c.l.b16 %v1326
          %v1478 = vunpack.c.h.b16 %v1326
          %v1479 = vunpack.c.l.b16 %v1327
          %v1480 = vunpack.c.h.b16 %v1327
          %v1481 = vunpack.c.l.b16 %v1328
          %v1482 = vunpack.c.h.b16 %v1328
          %v1483 = vunpack.c.l.b16 %v1329
          %v1484 = vunpack.c.h.b16 %v1329
          %v1485 = vunpack.c.l.b16 %v1330
          %v1486 = vunpack.c.h.b16 %v1330
          %v1487 = vunpack.c.l.b16 %v1331
          %v1488 = vunpack.c.h.b16 %v1331
          %v1489 = vunpack.c.l.b16 %v1332
          %v1490 = vunpack.c.h.b16 %v1332
          %v1491 = vunpack.c.l.b16 %v1333
          %v1492 = vunpack.c.h.b16 %v1333
          %v1493 = vunpack.c.l.b16 %v1334
          %v1494 = vunpack.c.h.b16 %v1334
          %v1495 = vunpack.c.l.b16 %v1335
          %v1496 = vunpack.c.h.b16 %v1335
          %v1497 = vunpack.c.l.b16 %v1336
          %v1498 = vunpack.c.h.b16 %v1336
          %v1499 = vunpack.c.l.b16 %v1337
          %v1500 = vunpack.c.h.b16 %v1337
          %v1501 = vunpack.c.l.b16 %v1338
          %v1502 = vunpack.c.h.b16 %v1338
          %v1503 = vunpack.c.l.b16 %v1339
          %v1504 = vunpack.c.h.b16 %v1339
          %v1505 = vunpack.c.l.b16 %v1340
          %v1506 = vunpack.c.h.b16 %v1340
          %v1507 = vunpack.c.l.b16 %v1341
          %v1508 = vunpack.c.h.b16 %v1341
          %v1509 = vunpack.c.l.b16 %v1342
          %v1510 = vunpack.c.h.b16 %v1342
          %v1511 = vunpack.c.l.b16 %v1343
          %v1512 = vunpack.c.h.b16 %v1343
          %v1513 = vunpack.c.l.b16 %v1344
          %v1514 = vunpack.c.h.b16 %v1344
          %v1515 = vunpack.c.l.b16 %v1345
          %v1516 = vunpack.c.h.b16 %v1345
          %v1517 = vunpack.c.l.b16 %v1346
          %v1518 = vunpack.c.h.b16 %v1346
          %v1519 = vunpack.c.l.b16 %v1347
          %v1520 = vunpack.c.h.b16 %v1347
          %v1521 = vunpack.c.l.b16 %v1348
          %v1522 = vunpack.c.h.b16 %v1348
          %v1523 = vunpack.c.l.b16 %v1349
          %v1524 = vunpack.c.h.b16 %v1349
          %v1525 = vunpack.c.l.b16 %v1350
          %v1526 = vunpack.c.h.b16 %v1350
          %v1527 = vunpack.c.l.b16 %v1351
          %v1528 = vunpack.c.h.b16 %v1351
          %v1529 = vunpack.c.l.b16 %v1352
          %v1530 = vunpack.c.h.b16 %v1352
          %v1531 = vunpack.c.l.b16 %v1353
          %v1532 = vunpack.c.h.b16 %v1353
          %v1533 = vunpack.c.l.b16 %v1354
          %v1534 = vunpack.c.h.b16 %v1354
          %v1535 = vunpack.c.l.b16 %v1355
          %v1536 = vunpack.c.h.b16 %v1355
          %v1537 = vunpack.c.l.b16 %v1356
          %v1538 = vunpack.c.h.b16 %v1356
          %v1539 = vunpack.c.l.b16 %v1357
          %v1540 = vunpack.c.h.b16 %v1357
          %v1541 = vunpack.c.l.b16 %v1358
          %v1542 = vunpack.c.h.b16 %v1358
          %v1543 = vpack.c.b16 %v1453, %v1447
          %v1544 = vpack.c.b16 %v1454, %v1448
          %v1545 = vpack.c.b16 %v1455, %v1449
          %v1546 = vpack.c.b16 %v1456, %v1450
          %v1547 = vpack.c.b16 %v1457, %v1451
          %v1548 = vpack.c.b16 %v1458, %v1452
          %v1549 = vpack.c.b16 %v1465, %v1459
          %v1550 = vpack.c.b16 %v1466, %v1460
          %v1551 = vpack.c.b16 %v1467, %v1461
          %v1552 = vpack.c.b16 %v1468, %v1462
          %v1553 = vpack.c.b16 %v1469, %v1463
          %v1554 = vpack.c.b16 %v1470, %v1464
          %v1555 = vpack.c.b16 %v1477, %v1471
          %v1556 = vpack.c.b16 %v1478, %v1472
          %v1557 = vpack.c.b16 %v1479, %v1473
          %v1558 = vpack.c.b16 %v1480, %v1474
          %v1559 = vpack.c.b16 %v1481, %v1475
          %v1560 = vpack.c.b16 %v1482, %v1476
          %v1561 = vpack.c.b16 %v1489, %v1483
          %v1562 = vpack.c.b16 %v1490, %v1484
          %v1563 = vpack.c.b16 %v1491, %v1485
          %v1564 = vpack.c.b16 %v1492, %v1486
          %v1565 = vpack.c.b16 %v1493, %v1487
          %v1566 = vpack.c.b16 %v1494, %v1488
          %v1567 = vpack.c.b16 %v1501, %v1495
          %v1568 = vpack.c.b16 %v1502, %v1496
          %v1569 = vpack.c.b16 %v1503, %v1497
          %v1570 = vpack.c.b16 %v1504, %v1498
          %v1571 = vpack.c.b16 %v1505, %v1499
          %v1572 = vpack.c.b16 %v1506, %v1500
          %v1573 = vpack.c.b16 %v1513, %v1507
          %v1574 = vpack.c.b16 %v1514, %v1508
          %v1575 = vpack.c.b16 %v1515, %v1509
          %v1576 = vpack.c.b16 %v1516, %v1510
          %v1577 = vpack.c.b16 %v1517, %v1511
          %v1578 = vpack.c.b16 %v1518, %v1512
          %v1579 = vpack.c.b16 %v1525, %v1519
          %v1580 = vpack.c.b16 %v1526, %v1520
          %v1581 = vpack.c.b16 %v1527, %v1521
          %v1582 = vpack.c.b16 %v1528, %v1522
          %v1583 = vpack.c.b16 %v1529, %v1523
          %v1584 = vpack.c.b16 %v1530, %v1524
          %v1585 = vpack.c.b16 %v1537, %v1531
          %v1586 = vpack.c.b16 %v1538, %v1532
          %v1587 = vpack.c.b16 %v1539, %v1533
          %v1588 = vpack.c.b16 %v1540, %v1534
          %v1589 = vpack.c.b16 %v1541, %v1535
          %v1590 = vpack.c.b16 %v1542, %v1536
          %1639 = vmatprep.subr.bf16.mxu0 %v1544
          %1640 = vmatpush1.bf16.msra.mxu0 %v1543
          %1641 = vmatprep.subr.bf16.mxu0 %v1550
          %1642 = vmatpush1.bf16.msra.mxu0 %v1549
          %1643 = vmatprep.subr.bf16.mxu0 %v1556
          %1644 = vmatpush1.bf16.msra.mxu0 %v1555
          %1645 = vmatprep.subr.bf16.mxu0 %v1562
          %1646 = vmatpush1.bf16.msra.mxu0 %v1561
          %1647 = vmatprep.subr.bf16.mxu0 %v1568
          %1648 = vmatpush1.bf16.msra.mxu0 %v1567
          %1649 = vmatprep.subr.bf16.mxu0 %v1574
          %1650 = vmatpush1.bf16.msra.mxu0 %v1573
          %1651 = vmatprep.subr.bf16.mxu0 %v1580
          %1652 = vmatpush1.bf16.msra.mxu0 %v1579
          %1653 = vmatprep.subr.bf16.mxu0 %v1586
          %1654 = vmatpush1.bf16.msra.mxu0 %v1585
          %1655 = vmatprep.subr.bf16.mxu0 0
          %1656 = vmatpush1.bf16.msra.mxu0 0
          %1657 = vmatprep.subr.bf16.mxu0 0
          %1658 = vmatpush1.bf16.msra.mxu0 0
          %1659 = vmatprep.subr.bf16.mxu0 0
          %1660 = vmatpush1.bf16.msra.mxu0 0
          %1661 = vmatprep.subr.bf16.mxu0 0
          %1662 = vmatpush1.bf16.msra.mxu0 0
          %1663 = vmatprep.subr.bf16.mxu0 0
          %1664 = vmatpush1.bf16.msra.mxu0 0
          %1665 = vmatprep.subr.bf16.mxu0 0
          %1666 = vmatpush1.bf16.msra.mxu0 0
          %1667 = vmatprep.subr.bf16.mxu0 0
          %1668 = vmatpush1.bf16.msra.mxu0 0
          %1669 = vmatprep.subr.bf16.mxu0 0
          %1670 = vmatpush1.bf16.msra.mxu0 0
          %1671 = vmatprep.mubr.bf16.mxu0 0
          %1672 = vmatmul.mubr.bf16.gmra.mrb[0].mxu0 %v1397
          %v1673 = vpop.f32.mrb[0].mxu0
          %v1674 = vadd.f32 %v1364, %v1673
          %v1675 = vpop.f32.mrb[0].mxu0
          %v1676 = vadd.f32 %v1368, %v1675
          %v1677 = vpop.f32.mrb[0].mxu0
          %v1678 = vpop.f32.mrb[0].mxu0
          %1679 = vdwg.mxu0
          %1680 = vmatprep.subr.bf16.mxu0 %v1546
          %1681 = vmatpush1.bf16.msra.mxu0 %v1545
          %1682 = vmatprep.subr.bf16.mxu0 %v1552
          %1683 = vmatpush1.bf16.msra.mxu0 %v1551
          %1684 = vmatprep.subr.bf16.mxu0 %v1558
          %1685 = vmatpush1.bf16.msra.mxu0 %v1557
          %1686 = vmatprep.subr.bf16.mxu0 %v1564
          %1687 = vmatpush1.bf16.msra.mxu0 %v1563
          %1688 = vmatprep.subr.bf16.mxu0 %v1570
          %1689 = vmatpush1.bf16.msra.mxu0 %v1569
          %1690 = vmatprep.subr.bf16.mxu0 %v1576
          %1691 = vmatpush1.bf16.msra.mxu0 %v1575
          %1692 = vmatprep.subr.bf16.mxu0 %v1582
          %1693 = vmatpush1.bf16.msra.mxu0 %v1581
          %1694 = vmatprep.subr.bf16.mxu0 %v1588
          %1695 = vmatpush1.bf16.msra.mxu0 %v1587
          %1696 = vmatprep.subr.bf16.mxu0 0
          %1697 = vmatpush1.bf16.msra.mxu0 0
          %1698 = vmatprep.subr.bf16.mxu0 0
          %1699 = vmatpush1.bf16.msra.mxu0 0
          %1700 = vmatprep.subr.bf16.mxu0 0
          %1701 = vmatpush1.bf16.msra.mxu0 0
          %1702 = vmatprep.subr.bf16.mxu0 0
          %1703 = vmatpush1.bf16.msra.mxu0 0
          %1704 = vmatprep.subr.bf16.mxu0 0
          %1705 = vmatpush1.bf16.msra.mxu0 0
          %1706 = vmatprep.subr.bf16.mxu0 0
          %1707 = vmatpush1.bf16.msra.mxu0 0
          %1708 = vmatprep.subr.bf16.mxu0 0
          %1709 = vmatpush1.bf16.msra.mxu0 0
          %1710 = vmatprep.subr.bf16.mxu0 0
          %1711 = vmatpush1.bf16.msra.mxu0 0
          %1712 = vmatprep.mubr.bf16.mxu0 0
          %1713 = vmatmul.mubr.bf16.gmra.mrb[0].mxu0 %v1397
          %v1714 = vpop.f32.mrb[0].mxu0
          %v1715 = vadd.f32 %v1372, %v1714
          %v1716 = vpop.f32.mrb[0].mxu0
          %v1717 = vadd.f32 %v1376, %v1716
          %v1718 = vpop.f32.mrb[0].mxu0
          %v1719 = vpop.f32.mrb[0].mxu0
          %1720 = vdwg.mxu0
          %1721 = vmatprep.subr.bf16.mxu0 %v1548
          %1722 = vmatpush1.bf16.msra.mxu0 %v1547
          %1723 = vmatprep.subr.bf16.mxu0 %v1554
          %1724 = vmatpush1.bf16.msra.mxu0 %v1553
          %1725 = vmatprep.subr.bf16.mxu0 %v1560
          %1726 = vmatpush1.bf16.msra.mxu0 %v1559
          %1727 = vmatprep.subr.bf16.mxu0 %v1566
          %1728 = vmatpush1.bf16.msra.mxu0 %v1565
          %1729 = vmatprep.subr.bf16.mxu0 %v1572
          %1730 = vmatpush1.bf16.msra.mxu0 %v1571
          %1731 = vmatprep.subr.bf16.mxu0 %v1578
          %1732 = vmatpush1.bf16.msra.mxu0 %v1577
          %1733 = vmatprep.subr.bf16.mxu0 %v1584
          %1734 = vmatpush1.bf16.msra.mxu0 %v1583
          %1735 = vmatprep.subr.bf16.mxu0 %v1590
          %1736 = vmatpush1.bf16.msra.mxu0 %v1589
          %1737 = vmatprep.subr.bf16.mxu0 0
          %1738 = vmatpush1.bf16.msra.mxu0 0
          %1739 = vmatprep.subr.bf16.mxu0 0
          %1740 = vmatpush1.bf16.msra.mxu0 0
          %1741 = vmatprep.subr.bf16.mxu0 0
          %1742 = vmatpush1.bf16.msra.mxu0 0
          %1743 = vmatprep.subr.bf16.mxu0 0
          %1744 = vmatpush1.bf16.msra.mxu0 0
          %1745 = vmatprep.subr.bf16.mxu0 0
          %1746 = vmatpush1.bf16.msra.mxu0 0
          %1747 = vmatprep.subr.bf16.mxu0 0
          %1748 = vmatpush1.bf16.msra.mxu0 0
          %1749 = vmatprep.subr.bf16.mxu0 0
          %1750 = vmatpush1.bf16.msra.mxu0 0
          %1751 = vmatprep.subr.bf16.mxu0 0
          %1752 = vmatpush1.bf16.msra.mxu0 0
          %1753 = vmatprep.mubr.bf16.mxu0 0
          %1754 = vmatmul.mubr.bf16.gmra.mrb[0].mxu0 %v1397
          %v1755 = vpop.f32.mrb[0].mxu0
          %v1756 = vadd.f32 %v1380, %v1755
          %v1757 = vpop.f32.mrb[0].mxu0
          %v1758 = vadd.f32 %v1384, %v1757
          %v1759 = vpop.f32.mrb[0].mxu0
          %v1760 = vpop.f32.mrb[0].mxu0
          %1761 = vdwg.mxu0
          %v1762 = vpack.c.bf16 %v1674, %v1674
          %v1763 = vpack.c.bf16 %v1676, %v1676
          %v1764 = vpack.c.bf16 %v1715, %v1715
          %v1765 = vpack.c.bf16 %v1717, %v1717
          %v1766 = vpack.c.bf16 %v1756, %v1756
          %v1767 = vpack.c.bf16 %v1758, %v1758
          %v1768 = vld [vmem:[#allocation10] sm:$0xf]
          %v1769 = vld [vmem:[#allocation10 + $0x4] sm:$0xf]
          %v1770 = vld [vmem:[#allocation10 + $0x8] sm:$0xf]
          %v1771 = vld [vmem:[#allocation10 + $0xc] sm:$0xf]
          %v1772 = vld [vmem:[#allocation10 + $0x10] sm:$0xf]
          %v1773 = vld [vmem:[#allocation10 + $0x14] sm:$0xf]
          %v1774 = vld [vmem:[#allocation10 + $0x18] sm:$0xf]
          %v1775 = vld [vmem:[#allocation10 + $0x1c] sm:$0xf]
          %v1776 = vld [vmem:[#allocation10 + $0x20] sm:$0xf]
          %v1777 = vld [vmem:[#allocation10 + $0x24] sm:$0xf]
          %v1778 = vld [vmem:[#allocation10 + $0x28] sm:$0xf]
          %v1779 = vld [vmem:[#allocation10 + $0x2c] sm:$0xf]
          %v1780 = vld [vmem:[#allocation10 + $0x30] sm:$0xf]
          %v1781 = vld [vmem:[#allocation10 + $0x34] sm:$0xf]
          %v1782 = vld [vmem:[#allocation10 + $0x38] sm:$0xf]
          %v1783 = vld [vmem:[#allocation10 + $0x3c] sm:$0xf]
          %v1784 = vld [vmem:[#allocation10 + $0x40] sm:$0xf]
          %v1785 = vld [vmem:[#allocation10 + $0x44] sm:$0xf]
          %v1786 = vld [vmem:[#allocation10 + $0x48] sm:$0xf]
          %v1787 = vld [vmem:[#allocation10 + $0x4c] sm:$0xf]
          %v1788 = vld [vmem:[#allocation10 + $0x50] sm:$0xf]
          %v1789 = vld [vmem:[#allocation10 + $0x54] sm:$0xf]
          %v1790 = vld [vmem:[#allocation10 + $0x58] sm:$0xf]
          %v1791 = vld [vmem:[#allocation10 + $0x5c] sm:$0xf]
          %v1792 = vld [vmem:[#allocation10 + $0x60] sm:$0xf]
          %v1793 = vld [vmem:[#allocation10 + $0x64] sm:$0xf]
          %v1794 = vld [vmem:[#allocation10 + $0x68] sm:$0xf]
          %v1795 = vld [vmem:[#allocation10 + $0x6c] sm:$0xf]
          %v1796 = vld [vmem:[#allocation10 + $0x70] sm:$0xf]
          %v1797 = vld [vmem:[#allocation10 + $0x74] sm:$0xf]
          %v1798 = vld [vmem:[#allocation10 + $0x78] sm:$0xf]
          %v1799 = vld [vmem:[#allocation10 + $0x7c] sm:$0xf]
          %v1800 = vld [vmem:[#allocation10 + $0x80] sm:$0xf]
          %v1801 = vld [vmem:[#allocation10 + $0x84] sm:$0xf]
          %v1802 = vld [vmem:[#allocation10 + $0x88] sm:$0xf]
          %v1803 = vld [vmem:[#allocation10 + $0x8c] sm:$0xf]
          %v1804 = vld [vmem:[#allocation10 + $0x90] sm:$0xf]
          %v1805 = vld [vmem:[#allocation10 + $0x94] sm:$0xf]
          %v1806 = vld [vmem:[#allocation10 + $0x98] sm:$0xf]
          %v1807 = vld [vmem:[#allocation10 + $0x9c] sm:$0xf]
          %v1808 = vld [vmem:[#allocation10 + $0xa0] sm:$0xf]
          %v1809 = vld [vmem:[#allocation10 + $0xa4] sm:$0xf]
          %v1810 = vld [vmem:[#allocation10 + $0xa8] sm:$0xf]
          %v1811 = vld [vmem:[#allocation10 + $0xac] sm:$0xf]
          %v1812 = vld [vmem:[#allocation10 + $0xb0] sm:$0xf]
          %v1813 = vld [vmem:[#allocation10 + $0xb4] sm:$0xf]
          %v1814 = vld [vmem:[#allocation10 + $0xb8] sm:$0xf]
          %v1815 = vld [vmem:[#allocation10 + $0xbc] sm:$0xf]
          %v1816 = vld [vmem:[#allocation10 + $0xc0] sm:$0xf]
          %v1817 = vld [vmem:[#allocation10 + $0xc4] sm:$0xf]
          %v1818 = vld [vmem:[#allocation10 + $0xc8] sm:$0xf]
          %v1819 = vld [vmem:[#allocation10 + $0xcc] sm:$0xf]
          %v1820 = vld [vmem:[#allocation10 + $0xd0] sm:$0xf]
          %v1821 = vld [vmem:[#allocation10 + $0xd4] sm:$0xf]
          %v1822 = vld [vmem:[#allocation10 + $0xd8] sm:$0xf]
          %v1823 = vld [vmem:[#allocation10 + $0xdc] sm:$0xf]
          %v1824 = vld [vmem:[#allocation10 + $0xe0] sm:$0xf]
          %v1825 = vld [vmem:[#allocation10 + $0xe4] sm:$0xf]
          %v1826 = vld [vmem:[#allocation10 + $0xe8] sm:$0xf]
          %v1827 = vld [vmem:[#allocation10 + $0xec] sm:$0xf]
          %v1828 = vld [vmem:[#allocation10 + $0xf0] sm:$0xf]
          %v1829 = vld [vmem:[#allocation10 + $0xf4] sm:$0xf]
          %v1830 = vld [vmem:[#allocation10 + $0xf8] sm:$0xf]
          %v1831 = vld [vmem:[#allocation10 + $0xfc] sm:$0xf]
          %v1832 = vld [vmem:[#allocation10 + $0x100] sm:$0xf]
          %v1833 = vld [vmem:[#allocation10 + $0x104] sm:$0xf]
          %v1834 = vld [vmem:[#allocation10 + $0x108] sm:$0xf]
          %v1835 = vld [vmem:[#allocation10 + $0x10c] sm:$0xf]
          %v1836 = vld [vmem:[#allocation10 + $0x110] sm:$0xf]
          %v1837 = vld [vmem:[#allocation10 + $0x114] sm:$0xf]
          %v1838 = vld [vmem:[#allocation10 + $0x118] sm:$0xf]
          %v1839 = vld [vmem:[#allocation10 + $0x11c] sm:$0xf]
          %v1840 = vld [vmem:[#allocation10 + $0x120] sm:$0xf]
          %v1841 = vld [vmem:[#allocation10 + $0x124] sm:$0xf]
          %v1842 = vld [vmem:[#allocation10 + $0x128] sm:$0xf]
          %v1843 = vld [vmem:[#allocation10 + $0x12c] sm:$0xf]
          %v1844 = vld [vmem:[#allocation10 + $0x130] sm:$0xf]
          %v1845 = vld [vmem:[#allocation10 + $0x134] sm:$0xf]
          %v1846 = vld [vmem:[#allocation10 + $0x138] sm:$0xf]
          %v1847 = vld [vmem:[#allocation10 + $0x13c] sm:$0xf]
          %v1848 = vld [vmem:[#allocation10 + $0x140] sm:$0xf]
          %v1849 = vld [vmem:[#allocation10 + $0x144] sm:$0xf]
          %v1850 = vld [vmem:[#allocation10 + $0x148] sm:$0xf]
          %v1851 = vld [vmem:[#allocation10 + $0x14c] sm:$0xf]
          %v1852 = vld [vmem:[#allocation10 + $0x150] sm:$0xf]
          %v1853 = vld [vmem:[#allocation10 + $0x154] sm:$0xf]
          %v1854 = vld [vmem:[#allocation10 + $0x158] sm:$0xf]
          %v1855 = vld [vmem:[#allocation10 + $0x15c] sm:$0xf]
          %v1856 = vld [vmem:[#allocation10 + $0x160] sm:$0xf]
          %v1857 = vld [vmem:[#allocation10 + $0x164] sm:$0xf]
          %v1858 = vld [vmem:[#allocation10 + $0x168] sm:$0xf]
          %v1859 = vld [vmem:[#allocation10 + $0x16c] sm:$0xf]
          %v1860 = vld [vmem:[#allocation10 + $0x170] sm:$0xf]
          %v1861 = vld [vmem:[#allocation10 + $0x174] sm:$0xf]
          %v1862 = vld [vmem:[#allocation10 + $0x178] sm:$0xf]
          %v1863 = vld [vmem:[#allocation10 + $0x17c] sm:$0xf]
          %v1864 = vld [vmem:[%s12] sm:$0x1]
          %v1866 = vlaneseq
          %v1867 = vshrl.u32 %v1866, 7
          %v1868 = vsub.s32 0, %v1867
          %v1869 = vrot.slane %v1864, %v1868
          %v1967 = vunpack.c.l.b16 %v1768
          %v1968 = vunpack.c.l.b16 %v1769
          %v1969 = vunpack.c.l.b16 %v1770
          %v1970 = vunpack.c.l.b16 %v1771
          %v1971 = vunpack.c.l.b16 %v1772
          %v1972 = vunpack.c.l.b16 %v1773
          %v1973 = vunpack.c.l.b16 %v1774
          %v1974 = vunpack.c.l.b16 %v1775
          %v1975 = vunpack.c.l.b16 %v1776
          %v1976 = vunpack.c.l.b16 %v1777
          %v1977 = vunpack.c.l.b16 %v1778
          %v1978 = vunpack.c.l.b16 %v1779
          %v1979 = vunpack.c.l.b16 %v1780
          %v1980 = vunpack.c.l.b16 %v1781
          %v1981 = vunpack.c.l.b16 %v1782
          %v1982 = vunpack.c.l.b16 %v1783
          %v1983 = vunpack.c.l.b16 %v1784
          %v1984 = vunpack.c.l.b16 %v1785
          %v1985 = vunpack.c.l.b16 %v1786
          %v1986 = vunpack.c.l.b16 %v1787
          %v1987 = vunpack.c.l.b16 %v1788
          %v1988 = vunpack.c.l.b16 %v1789
          %v1989 = vunpack.c.l.b16 %v1790
          %v1990 = vunpack.c.l.b16 %v1791
          %v1991 = vunpack.c.l.b16 %v1792
          %v1992 = vunpack.c.l.b16 %v1793
          %v1993 = vunpack.c.l.b16 %v1794
          %v1994 = vunpack.c.l.b16 %v1795
          %v1995 = vunpack.c.l.b16 %v1796
          %v1996 = vunpack.c.l.b16 %v1797
          %v1997 = vunpack.c.l.b16 %v1798
          %v1998 = vunpack.c.l.b16 %v1799
          %v1999 = vunpack.c.l.b16 %v1800
          %v2000 = vunpack.c.l.b16 %v1801
          %v2001 = vunpack.c.l.b16 %v1802
          %v2002 = vunpack.c.l.b16 %v1803
          %v2003 = vunpack.c.l.b16 %v1804
          %v2004 = vunpack.c.l.b16 %v1805
          %v2005 = vunpack.c.l.b16 %v1806
          %v2006 = vunpack.c.l.b16 %v1807
          %v2007 = vunpack.c.l.b16 %v1808
          %v2008 = vunpack.c.l.b16 %v1809
          %v2009 = vunpack.c.l.b16 %v1810
          %v2010 = vunpack.c.l.b16 %v1811
          %v2011 = vunpack.c.l.b16 %v1812
          %v2012 = vunpack.c.l.b16 %v1813
          %v2013 = vunpack.c.l.b16 %v1814
          %v2014 = vunpack.c.l.b16 %v1815
          %v2015 = vunpack.c.l.b16 %v1816
          %v2016 = vunpack.c.l.b16 %v1817
          %v2017 = vunpack.c.l.b16 %v1818
          %v2018 = vunpack.c.l.b16 %v1819
          %v2019 = vunpack.c.l.b16 %v1820
          %v2020 = vunpack.c.l.b16 %v1821
          %v2021 = vunpack.c.l.b16 %v1822
          %v2022 = vunpack.c.l.b16 %v1823
          %v2023 = vunpack.c.l.b16 %v1824
          %v2024 = vunpack.c.l.b16 %v1825
          %v2025 = vunpack.c.l.b16 %v1826
          %v2026 = vunpack.c.l.b16 %v1827
          %v2027 = vunpack.c.l.b16 %v1828
          %v2028 = vunpack.c.l.b16 %v1829
          %v2029 = vunpack.c.l.b16 %v1830
          %v2030 = vunpack.c.l.b16 %v1831
          %v2031 = vunpack.c.l.b16 %v1832
          %v2032 = vunpack.c.l.b16 %v1833
          %v2033 = vunpack.c.l.b16 %v1834
          %v2034 = vunpack.c.l.b16 %v1835
          %v2035 = vunpack.c.l.b16 %v1836
          %v2036 = vunpack.c.l.b16 %v1837
          %v2037 = vunpack.c.l.b16 %v1838
          %v2038 = vunpack.c.l.b16 %v1839
          %v2039 = vunpack.c.l.b16 %v1840
          %v2040 = vunpack.c.l.b16 %v1841
          %v2041 = vunpack.c.l.b16 %v1842
          %v2042 = vunpack.c.l.b16 %v1843
          %v2043 = vunpack.c.l.b16 %v1844
          %v2044 = vunpack.c.l.b16 %v1845
          %v2045 = vunpack.c.l.b16 %v1846
          %v2046 = vunpack.c.l.b16 %v1847
          %v2047 = vunpack.c.l.b16 %v1848
          %v2048 = vunpack.c.l.b16 %v1849
          %v2049 = vunpack.c.l.b16 %v1850
          %v2050 = vunpack.c.l.b16 %v1851
          %v2051 = vunpack.c.l.b16 %v1852
          %v2052 = vunpack.c.l.b16 %v1853
          %v2053 = vunpack.c.l.b16 %v1854
          %v2054 = vunpack.c.l.b16 %v1855
          %v2055 = vunpack.c.l.b16 %v1856
          %v2056 = vunpack.c.l.b16 %v1857
          %v2057 = vunpack.c.l.b16 %v1858
          %v2058 = vunpack.c.l.b16 %v1859
          %v2059 = vunpack.c.l.b16 %v1860
          %v2060 = vunpack.c.l.b16 %v1861
          %v2061 = vunpack.c.l.b16 %v1862
          %v2062 = vunpack.c.l.b16 %v1863
          %v2063 = vpack.c.b16 %v1968, %v1967
          %v2064 = vpack.c.b16 %v1970, %v1969
          %v2065 = vpack.c.b16 %v1972, %v1971
          %v2066 = vpack.c.b16 %v1974, %v1973
          %v2067 = vpack.c.b16 %v1976, %v1975
          %v2068 = vpack.c.b16 %v1978, %v1977
          %v2069 = vpack.c.b16 %v1980, %v1979
          %v2070 = vpack.c.b16 %v1982, %v1981
          %v2071 = vpack.c.b16 %v1984, %v1983
          %v2072 = vpack.c.b16 %v1986, %v1985
          %v2073 = vpack.c.b16 %v1988, %v1987
          %v2074 = vpack.c.b16 %v1990, %v1989
          %v2075 = vpack.c.b16 %v1992, %v1991
          %v2076 = vpack.c.b16 %v1994, %v1993
          %v2077 = vpack.c.b16 %v1996, %v1995
          %v2078 = vpack.c.b16 %v1998, %v1997
          %v2079 = vpack.c.b16 %v2000, %v1999
          %v2080 = vpack.c.b16 %v2002, %v2001
          %v2081 = vpack.c.b16 %v2004, %v2003
          %v2082 = vpack.c.b16 %v2006, %v2005
          %v2083 = vpack.c.b16 %v2008, %v2007
          %v2084 = vpack.c.b16 %v2010, %v2009
          %v2085 = vpack.c.b16 %v2012, %v2011
          %v2086 = vpack.c.b16 %v2014, %v2013
          %v2087 = vpack.c.b16 %v2016, %v2015
          %v2088 = vpack.c.b16 %v2018, %v2017
          %v2089 = vpack.c.b16 %v2020, %v2019
          %v2090 = vpack.c.b16 %v2022, %v2021
          %v2091 = vpack.c.b16 %v2024, %v2023
          %v2092 = vpack.c.b16 %v2026, %v2025
          %v2093 = vpack.c.b16 %v2028, %v2027
          %v2094 = vpack.c.b16 %v2030, %v2029
          %v2095 = vpack.c.b16 %v2032, %v2031
          %v2096 = vpack.c.b16 %v2034, %v2033
          %v2097 = vpack.c.b16 %v2036, %v2035
          %v2098 = vpack.c.b16 %v2038, %v2037
          %v2099 = vpack.c.b16 %v2040, %v2039
          %v2100 = vpack.c.b16 %v2042, %v2041
          %v2101 = vpack.c.b16 %v2044, %v2043
          %v2102 = vpack.c.b16 %v2046, %v2045
          %v2103 = vpack.c.b16 %v2048, %v2047
          %v2104 = vpack.c.b16 %v2050, %v2049
          %v2105 = vpack.c.b16 %v2052, %v2051
          %v2106 = vpack.c.b16 %v2054, %v2053
          %v2107 = vpack.c.b16 %v2056, %v2055
          %v2108 = vpack.c.b16 %v2058, %v2057
          %v2109 = vpack.c.b16 %v2060, %v2059
          %v2110 = vpack.c.b16 %v2062, %v2061
          %2159 = vmatprep.subr.bf16.mxu0 0
          %2160 = vmatpush1.bf16.msra.mxu0 %v2063
          %2161 = vmatprep.subr.bf16.mxu0 0
          %2162 = vmatpush1.bf16.msra.mxu0 %v2064
          %2163 = vmatprep.subr.bf16.mxu0 0
          %2164 = vmatpush1.bf16.msra.mxu0 %v2065
          %2165 = vmatprep.subr.bf16.mxu0 0
          %2166 = vmatpush1.bf16.msra.mxu0 %v2066
          %2167 = vmatprep.subr.bf16.mxu0 0
          %2168 = vmatpush1.bf16.msra.mxu0 %v2067
          %2169 = vmatprep.subr.bf16.mxu0 0
          %2170 = vmatpush1.bf16.msra.mxu0 %v2068
          %2171 = vmatprep.subr.bf16.mxu0 0
          %2172 = vmatpush1.bf16.msra.mxu0 %v2069
          %2173 = vmatprep.subr.bf16.mxu0 0
          %2174 = vmatpush1.bf16.msra.mxu0 %v2070
          %2175 = vmatprep.subr.bf16.mxu0 0
          %2176 = vmatpush1.bf16.msra.mxu0 %v2071
          %2177 = vmatprep.subr.bf16.mxu0 0
          %2178 = vmatpush1.bf16.msra.mxu0 %v2072
          %2179 = vmatprep.subr.bf16.mxu0 0
          %2180 = vmatpush1.bf16.msra.mxu0 %v2073
          %2181 = vmatprep.subr.bf16.mxu0 0
          %2182 = vmatpush1.bf16.msra.mxu0 %v2074
          %2183 = vmatprep.subr.bf16.mxu0 0
          %2184 = vmatpush1.bf16.msra.mxu0 %v2075
          %2185 = vmatprep.subr.bf16.mxu0 0
          %2186 = vmatpush1.bf16.msra.mxu0 %v2076
          %2187 = vmatprep.subr.bf16.mxu0 0
          %2188 = vmatpush1.bf16.msra.mxu0 %v2077
          %2189 = vmatprep.subr.bf16.mxu0 0
          %2190 = vmatpush1.bf16.msra.mxu0 %v2078
          %2191 = vmatprep.mubr.bf16.mxu0 %v1763
          %2192 = vmatmul.mubr.bf16.gmra.mrb[0].mxu0 %v1762
          %v2193 = vpop.f32.mrb[0].mxu0
          %v2194 = vadd.f32 %v1869, %v2193
          %v2195 = vpop.f32.mrb[0].mxu0
          %v2196 = vpop.f32.mrb[0].mxu0
          %v2197 = vpop.f32.mrb[0].mxu0
          %2198 = vdwg.mxu0
          %2199 = vmatprep.subr.bf16.mxu0 0
          %2200 = vmatpush1.bf16.msra.mxu0 %v2079
          %2201 = vmatprep.subr.bf16.mxu0 0
          %2202 = vmatpush1.bf16.msra.mxu0 %v2080
          %2203 = vmatprep.subr.bf16.mxu0 0
          %2204 = vmatpush1.bf16.msra.mxu0 %v2081
          %2205 = vmatprep.subr.bf16.mxu0 0
          %2206 = vmatpush1.bf16.msra.mxu0 %v2082
          %2207 = vmatprep.subr.bf16.mxu0 0
          %2208 = vmatpush1.bf16.msra.mxu0 %v2083
          %2209 = vmatprep.subr.bf16.mxu0 0
          %2210 = vmatpush1.bf16.msra.mxu0 %v2084
          %2211 = vmatprep.subr.bf16.mxu0 0
          %2212 = vmatpush1.bf16.msra.mxu0 %v2085
          %2213 = vmatprep.subr.bf16.mxu0 0
          %2214 = vmatpush1.bf16.msra.mxu0 %v2086
          %2215 = vmatprep.subr.bf16.mxu0 0
          %2216 = vmatpush1.bf16.msra.mxu0 %v2087
          %2217 = vmatprep.subr.bf16.mxu0 0
          %2218 = vmatpush1.bf16.msra.mxu0 %v2088
          %2219 = vmatprep.subr.bf16.mxu0 0
          %2220 = vmatpush1.bf16.msra.mxu0 %v2089
          %2221 = vmatprep.subr.bf16.mxu0 0
          %2222 = vmatpush1.bf16.msra.mxu0 %v2090
          %2223 = vmatprep.subr.bf16.mxu0 0
          %2224 = vmatpush1.bf16.msra.mxu0 %v2091
          %2225 = vmatprep.subr.bf16.mxu0 0
          %2226 = vmatpush1.bf16.msra.mxu0 %v2092
          %2227 = vmatprep.subr.bf16.mxu0 0
          %2228 = vmatpush1.bf16.msra.mxu0 %v2093
          %2229 = vmatprep.subr.bf16.mxu0 0
          %2230 = vmatpush1.bf16.msra.mxu0 %v2094
          %2231 = vmatprep.mubr.bf16.mxu0 %v1765
          %2232 = vmatmul.mubr.bf16.gmra.mrb[0].mxu0 %v1764
          %v2233 = vpop.f32.mrb[0].mxu0
          %v2234 = vadd.f32 %v2194, %v2233
          %v2235 = vpop.f32.mrb[0].mxu0
          %v2236 = vpop.f32.mrb[0].mxu0
          %v2237 = vpop.f32.mrb[0].mxu0
          %2238 = vdwg.mxu0
          %2239 = vmatprep.subr.bf16.mxu0 0
          %2240 = vmatpush1.bf16.msra.mxu0 %v2095
          %2241 = vmatprep.subr.bf16.mxu0 0
          %2242 = vmatpush1.bf16.msra.mxu0 %v2096
          %2243 = vmatprep.subr.bf16.mxu0 0
          %2244 = vmatpush1.bf16.msra.mxu0 %v2097
          %2245 = vmatprep.subr.bf16.mxu0 0
          %2246 = vmatpush1.bf16.msra.mxu0 %v2098
          %2247 = vmatprep.subr.bf16.mxu0 0
          %2248 = vmatpush1.bf16.msra.mxu0 %v2099
          %2249 = vmatprep.subr.bf16.mxu0 0
          %2250 = vmatpush1.bf16.msra.mxu0 %v2100
          %2251 = vmatprep.subr.bf16.mxu0 0
          %2252 = vmatpush1.bf16.msra.mxu0 %v2101
          %2253 = vmatprep.subr.bf16.mxu0 0
          %2254 = vmatpush1.bf16.msra.mxu0 %v2102
          %2255 = vmatprep.subr.bf16.mxu0 0
          %2256 = vmatpush1.bf16.msra.mxu0 %v2103
          %2257 = vmatprep.subr.bf16.mxu0 0
          %2258 = vmatpush1.bf16.msra.mxu0 %v2104
          %2259 = vmatprep.subr.bf16.mxu0 0
          %2260 = vmatpush1.bf16.msra.mxu0 %v2105
          %2261 = vmatprep.subr.bf16.mxu0 0
          %2262 = vmatpush1.bf16.msra.mxu0 %v2106
          %2263 = vmatprep.subr.bf16.mxu0 0
          %2264 = vmatpush1.bf16.msra.mxu0 %v2107
          %2265 = vmatprep.subr.bf16.mxu0 0
          %2266 = vmatpush1.bf16.msra.mxu0 %v2108
          %2267 = vmatprep.subr.bf16.mxu0 0
          %2268 = vmatpush1.bf16.msra.mxu0 %v2109
          %2269 = vmatprep.subr.bf16.mxu0 0
          %2270 = vmatpush1.bf16.msra.mxu0 %v2110
          %2271 = vmatprep.mubr.bf16.mxu0 %v1767
          %2272 = vmatmul.mubr.bf16.gmra.mrb[0].mxu0 %v1766
          %v2273 = vpop.f32.mrb[0].mxu0
          %v2274 = vadd.f32 %v2234, %v2273
          %v2275 = vpop.f32.mrb[0].mxu0
          %v2276 = vpop.f32.mrb[0].mxu0
          %v2277 = vpop.f32.mrb[0].mxu0
          %2278 = vdwg.mxu0
          %2279 = vst [vmem:[#allocation3] sm:$0x3] %v2274
        $region129: #{tpu_custom_call.1} parent=108 // pred_fallthru
          _
        %v2280 = vld [vmem:[%s1007] sm:$0xf]
        %v2281 = vld [vmem:[%s1007 + $0x4] sm:$0xf]
        %v2282 = vld [vmem:[%s1007 + $0x8] sm:$0xf]
        %v2283 = vld [vmem:[%s1007 + $0xc] sm:$0xf]
        %v2284 = vld [vmem:[%s1007 + $0x10] sm:$0xf]
        %v2285 = vld [vmem:[%s1007 + $0x14] sm:$0xf]
        %v2286 = vld [vmem:[%s1007 + $0x18] sm:$0xf]
        %v2287 = vld [vmem:[%s1007 + $0x1c] sm:$0xf]
        %v2288 = vld [vmem:[%s1007 + $0x20] sm:$0xf]
        %v2289 = vld [vmem:[%s1007 + $0x24] sm:$0xf]
        %v2290 = vld [vmem:[%s1007 + $0x28] sm:$0xf]
        %v2291 = vld [vmem:[%s1007 + $0x2c] sm:$0xf]
        %v2292 = vld [vmem:[%s1007 + $0x30] sm:$0xf]
        %v2293 = vld [vmem:[%s1007 + $0x34] sm:$0xf]
        %v2294 = vld [vmem:[%s1007 + $0x38] sm:$0xf]
        %v2295 = vld [vmem:[%s1007 + $0x3c] sm:$0xf]
        %v2296 = vld [vmem:[%s1007 + $0x40] sm:$0xf]
        %v2297 = vld [vmem:[%s1007 + $0x44] sm:$0xf]
        %v2298 = vld [vmem:[%s1007 + $0x48] sm:$0xf]
        %v2299 = vld [vmem:[%s1007 + $0x4c] sm:$0xf]
        %v2300 = vld [vmem:[%s1007 + $0x50] sm:$0xf]
        %v2301 = vld [vmem:[%s1007 + $0x54] sm:$0xf]
        %v2302 = vld [vmem:[%s1007 + $0x58] sm:$0xf]
        %v2303 = vld [vmem:[%s1007 + $0x5c] sm:$0xf]
        %v2304 = vld [vmem:[%s1007 + $0x60] sm:$0xf]
        %v2305 = vld [vmem:[%s1007 + $0x64] sm:$0xf]
        %v2306 = vld [vmem:[%s1007 + $0x68] sm:$0xf]
        %v2307 = vld [vmem:[%s1007 + $0x6c] sm:$0xf]
        %v2308 = vld [vmem:[%s1007 + $0x70] sm:$0xf]
        %v2309 = vld [vmem:[%s1007 + $0x74] sm:$0xf]
        %v2310 = vld [vmem:[%s1007 + $0x78] sm:$0xf]
        %v2311 = vld [vmem:[%s1007 + $0x7c] sm:$0xf]
        %v2312 = vld [vmem:[%s1007 + $0x80] sm:$0xf]
        %v2313 = vld [vmem:[%s1007 + $0x84] sm:$0xf]
        %v2314 = vld [vmem:[%s1007 + $0x88] sm:$0xf]
        %v2315 = vld [vmem:[%s1007 + $0x8c] sm:$0xf]
        %v2316 = vld [vmem:[%s1007 + $0x90] sm:$0xf]
        %v2317 = vld [vmem:[%s1007 + $0x94] sm:$0xf]
        %v2318 = vld [vmem:[%s1007 + $0x98] sm:$0xf]
        %v2319 = vld [vmem:[%s1007 + $0x9c] sm:$0xf]
        %v2320 = vld [vmem:[%s1007 + $0xa0] sm:$0xf]
        %v2321 = vld [vmem:[%s1007 + $0xa4] sm:$0xf]
        %v2322 = vld [vmem:[%s1007 + $0xa8] sm:$0xf]
        %v2323 = vld [vmem:[%s1007 + $0xac] sm:$0xf]
        %v2324 = vld [vmem:[%s1007 + $0xb0] sm:$0xf]
        %v2325 = vld [vmem:[%s1007 + $0xb4] sm:$0xf]
        %v2326 = vld [vmem:[%s1007 + $0xb8] sm:$0xf]
        %v2327 = vld [vmem:[%s1007 + $0xbc] sm:$0xf]
        %v2328 = vld [vmem:[%s1007 + $0xc0] sm:$0xf]
        %v2329 = vld [vmem:[%s1007 + $0xc4] sm:$0xf]
        %v2330 = vld [vmem:[%s1007 + $0xc8] sm:$0xf]
        %v2331 = vld [vmem:[%s1007 + $0xcc] sm:$0xf]
        %v2332 = vld [vmem:[%s1007 + $0xd0] sm:$0xf]
        %v2333 = vld [vmem:[%s1007 + $0xd4] sm:$0xf]
        %v2334 = vld [vmem:[%s1007 + $0xd8] sm:$0xf]
        %v2335 = vld [vmem:[%s1007 + $0xdc] sm:$0xf]
        %v2336 = vld [vmem:[%s1007 + $0xe0] sm:$0xf]
        %v2337 = vld [vmem:[%s1007 + $0xe4] sm:$0xf]
        %v2338 = vld [vmem:[%s1007 + $0xe8] sm:$0xf]
        %v2339 = vld [vmem:[%s1007 + $0xec] sm:$0xf]
        %v2340 = vld [vmem:[%s1007 + $0xf0] sm:$0xf]
        %v2341 = vld [vmem:[%s1007 + $0xf4] sm:$0xf]
        %v2342 = vld [vmem:[%s1007 + $0xf8] sm:$0xf]
        %v2343 = vld [vmem:[%s1007 + $0xfc] sm:$0xf]
        %v2344 = vld [vmem:[%s1007 + $0x100] sm:$0xf]
        %v2345 = vld [vmem:[%s1007 + $0x104] sm:$0xf]
        %v2346 = vld [vmem:[%s1007 + $0x108] sm:$0xf]
        %v2347 = vld [vmem:[%s1007 + $0x10c] sm:$0xf]
        %v2348 = vld [vmem:[%s1007 + $0x110] sm:$0xf]
        %v2349 = vld [vmem:[%s1007 + $0x114] sm:$0xf]
        %v2350 = vld [vmem:[%s1007 + $0x118] sm:$0xf]
        %v2351 = vld [vmem:[%s1007 + $0x11c] sm:$0xf]
        %v2352 = vld [vmem:[%s1007 + $0x120] sm:$0xf]
        %v2353 = vld [vmem:[%s1007 + $0x124] sm:$0xf]
        %v2354 = vld [vmem:[%s1007 + $0x128] sm:$0xf]
        %v2355 = vld [vmem:[%s1007 + $0x12c] sm:$0xf]
        %v2356 = vld [vmem:[%s1007 + $0x130] sm:$0xf]
        %v2357 = vld [vmem:[%s1007 + $0x134] sm:$0xf]
        %v2358 = vld [vmem:[%s1007 + $0x138] sm:$0xf]
        %v2359 = vld [vmem:[%s1007 + $0x13c] sm:$0xf]
        %v2360 = vld [vmem:[%s1007 + $0x140] sm:$0xf]
        %v2361 = vld [vmem:[%s1007 + $0x144] sm:$0xf]
        %v2362 = vld [vmem:[%s1007 + $0x148] sm:$0xf]
        %v2363 = vld [vmem:[%s1007 + $0x14c] sm:$0xf]
        %v2364 = vld [vmem:[%s1007 + $0x150] sm:$0xf]
        %v2365 = vld [vmem:[%s1007 + $0x154] sm:$0xf]
        %v2366 = vld [vmem:[%s1007 + $0x158] sm:$0xf]
        %v2367 = vld [vmem:[%s1007 + $0x15c] sm:$0xf]
        %v2368 = vld [vmem:[%s1007 + $0x160] sm:$0xf]
        %v2369 = vld [vmem:[%s1007 + $0x164] sm:$0xf]
        %v2370 = vld [vmem:[%s1007 + $0x168] sm:$0xf]
        %v2371 = vld [vmem:[%s1007 + $0x16c] sm:$0xf]
        %v2372 = vld [vmem:[%s1007 + $0x170] sm:$0xf]
        %v2373 = vld [vmem:[%s1007 + $0x174] sm:$0xf]
        %v2374 = vld [vmem:[%s1007 + $0x178] sm:$0xf]
        %v2375 = vld [vmem:[%s1007 + $0x17c] sm:$0xf]
        %v2376 = vld [vmem:[%s1007 + $0x180] sm:$0xf]
        %v2377 = vld [vmem:[%s1007 + $0x184] sm:$0xf]
        %v2378 = vld [vmem:[%s1007 + $0x188] sm:$0xf]
        %v2379 = vld [vmem:[%s1007 + $0x18c] sm:$0xf]
        %v2380 = vld [vmem:[%s1007 + $0x190] sm:$0xf]
        %v2381 = vld [vmem:[%s1007 + $0x194] sm:$0xf]
        %v2382 = vld [vmem:[%s1007 + $0x198] sm:$0xf]
        %v2383 = vld [vmem:[%s1007 + $0x19c] sm:$0xf]
        %v2384 = vld [vmem:[%s1007 + $0x1a0] sm:$0xf]
        %v2385 = vld [vmem:[%s1007 + $0x1a4] sm:$0xf]
        %v2386 = vld [vmem:[%s1007 + $0x1a8] sm:$0xf]
        %v2387 = vld [vmem:[%s1007 + $0x1ac] sm:$0xf]
        %v2388 = vld [vmem:[%s1007 + $0x1b0] sm:$0xf]
        %v2389 = vld [vmem:[%s1007 + $0x1b4] sm:$0xf]
        %v2390 = vld [vmem:[%s1007 + $0x1b8] sm:$0xf]
        %v2391 = vld [vmem:[%s1007 + $0x1bc] sm:$0xf]
        %v2392 = vld [vmem:[%s1007 + $0x1c0] sm:$0xf]
        %v2393 = vld [vmem:[%s1007 + $0x1c4] sm:$0xf]
        %v2394 = vld [vmem:[%s1007 + $0x1c8] sm:$0xf]
        %v2395 = vld [vmem:[%s1007 + $0x1cc] sm:$0xf]
        %v2396 = vld [vmem:[%s1007 + $0x1d0] sm:$0xf]
        %v2397 = vld [vmem:[%s1007 + $0x1d4] sm:$0xf]
        %v2398 = vld [vmem:[%s1007 + $0x1d8] sm:$0xf]
        %v2399 = vld [vmem:[%s1007 + $0x1dc] sm:$0xf]
        %v2400 = vld [vmem:[%s1007 + $0x1e0] sm:$0xf]
        %v2401 = vld [vmem:[%s1007 + $0x1e4] sm:$0xf]
        %v2402 = vld [vmem:[%s1007 + $0x1e8] sm:$0xf]
        %v2403 = vld [vmem:[%s1007 + $0x1ec] sm:$0xf]
        %v2404 = vld [vmem:[%s1007 + $0x1f0] sm:$0xf]
        %v2405 = vld [vmem:[%s1007 + $0x1f4] sm:$0xf]
        %v2406 = vld [vmem:[%s1007 + $0x1f8] sm:$0xf]
        %v2407 = vld [vmem:[%s1007 + $0x1fc] sm:$0xf]
        %v2408 = vld [vmem:[%s2] sm:$0xf]
        %v2409 = vld [vmem:[%s2 + $0x4] sm:$0xf]
        %v2410 = vld [vmem:[%s2 + $0x8] sm:$0xf]
        %v2411 = vld [vmem:[%s2 + $0xc] sm:$0x3]
        %v2412 = vld [vmem:[%s3] sm:$0x1]
        %v2414 = vlaneseq
        %v2415 = vshrl.u32 %v2414, 7
        %v2416 = vsub.s32 0, %v2415
        %v2417 = vrot.slane %v2412, %v2416
        %v2547 = vunpack.c.l.b16 %v2280
        %v2548 = vunpack.c.l.b16 %v2281
        %v2549 = vunpack.c.l.b16 %v2282
        %v2550 = vunpack.c.l.b16 %v2283
        %v2551 = vunpack.c.l.b16 %v2284
        %v2552 = vunpack.c.l.b16 %v2285
        %v2553 = vunpack.c.l.b16 %v2286
        %v2554 = vunpack.c.l.b16 %v2287
        %v2555 = vunpack.c.l.b16 %v2288
        %v2556 = vunpack.c.l.b16 %v2289
        %v2557 = vunpack.c.l.b16 %v2290
        %v2558 = vunpack.c.l.b16 %v2291
        %v2559 = vunpack.c.l.b16 %v2292
        %v2560 = vunpack.c.l.b16 %v2293
        %v2561 = vunpack.c.l.b16 %v2294
        %v2562 = vunpack.c.l.b16 %v2295
        %v2563 = vunpack.c.l.b16 %v2296
        %v2564 = vunpack.c.l.b16 %v2297
        %v2565 = vunpack.c.l.b16 %v2298
        %v2566 = vunpack.c.l.b16 %v2299
        %v2567 = vunpack.c.l.b16 %v2300
        %v2568 = vunpack.c.l.b16 %v2301
        %v2569 = vunpack.c.l.b16 %v2302
        %v2570 = vunpack.c.l.b16 %v2303
        %v2571 = vunpack.c.l.b16 %v2304
        %v2572 = vunpack.c.l.b16 %v2305
        %v2573 = vunpack.c.l.b16 %v2306
        %v2574 = vunpack.c.l.b16 %v2307
        %v2575 = vunpack.c.l.b16 %v2308
        %v2576 = vunpack.c.l.b16 %v2309
        %v2577 = vunpack.c.l.b16 %v2310
        %v2578 = vunpack.c.l.b16 %v2311
        %v2579 = vunpack.c.l.b16 %v2312
        %v2580 = vunpack.c.l.b16 %v2313
        %v2581 = vunpack.c.l.b16 %v2314
        %v2582 = vunpack.c.l.b16 %v2315
        %v2583 = vunpack.c.l.b16 %v2316
        %v2584 = vunpack.c.l.b16 %v2317
        %v2585 = vunpack.c.l.b16 %v2318
        %v2586 = vunpack.c.l.b16 %v2319
        %v2587 = vunpack.c.l.b16 %v2320
        %v2588 = vunpack.c.l.b16 %v2321
        %v2589 = vunpack.c.l.b16 %v2322
        %v2590 = vunpack.c.l.b16 %v2323
        %v2591 = vunpack.c.l.b16 %v2324
        %v2592 = vunpack.c.l.b16 %v2325
        %v2593 = vunpack.c.l.b16 %v2326
        %v2594 = vunpack.c.l.b16 %v2327
        %v2595 = vunpack.c.l.b16 %v2328
        %v2596 = vunpack.c.l.b16 %v2329
        %v2597 = vunpack.c.l.b16 %v2330
        %v2598 = vunpack.c.l.b16 %v2331
        %v2599 = vunpack.c.l.b16 %v2332
        %v2600 = vunpack.c.l.b16 %v2333
        %v2601 = vunpack.c.l.b16 %v2334
        %v2602 = vunpack.c.l.b16 %v2335
        %v2603 = vunpack.c.l.b16 %v2336
        %v2604 = vunpack.c.l.b16 %v2337
        %v2605 = vunpack.c.l.b16 %v2338
        %v2606 = vunpack.c.l.b16 %v2339
        %v2607 = vunpack.c.l.b16 %v2340
        %v2608 = vunpack.c.l.b16 %v2341
        %v2609 = vunpack.c.l.b16 %v2342
        %v2610 = vunpack.c.l.b16 %v2343
        %v2611 = vunpack.c.l.b16 %v2344
        %v2612 = vunpack.c.l.b16 %v2345
        %v2613 = vunpack.c.l.b16 %v2346
        %v2614 = vunpack.c.l.b16 %v2347
        %v2615 = vunpack.c.l.b16 %v2348
        %v2616 = vunpack.c.l.b16 %v2349
        %v2617 = vunpack.c.l.b16 %v2350
        %v2618 = vunpack.c.l.b16 %v2351
        %v2619 = vunpack.c.l.b16 %v2352
        %v2620 = vunpack.c.l.b16 %v2353
        %v2621 = vunpack.c.l.b16 %v2354
        %v2622 = vunpack.c.l.b16 %v2355
        %v2623 = vunpack.c.l.b16 %v2356
        %v2624 = vunpack.c.l.b16 %v2357
        %v2625 = vunpack.c.l.b16 %v2358
        %v2626 = vunpack.c.l.b16 %v2359
        %v2627 = vunpack.c.l.b16 %v2360
        %v2628 = vunpack.c.l.b16 %v2361
        %v2629 = vunpack.c.l.b16 %v2362
        %v2630 = vunpack.c.l.b16 %v2363
        %v2631 = vunpack.c.l.b16 %v2364
        %v2632 = vunpack.c.l.b16 %v2365
        %v2633 = vunpack.c.l.b16 %v2366
        %v2634 = vunpack.c.l.b16 %v2367
        %v2635 = vunpack.c.l.b16 %v2368
        %v2636 = vunpack.c.l.b16 %v2369
        %v2637 = vunpack.c.l.b16 %v2370
        %v2638 = vunpack.c.l.b16 %v2371
        %v2639 = vunpack.c.l.b16 %v2372
        %v2640 = vunpack.c.l.b16 %v2373
        %v2641 = vunpack.c.l.b16 %v2374
        %v2642 = vunpack.c.l.b16 %v2375
        %v2643 = vunpack.c.l.b16 %v2376
        %v2644 = vunpack.c.l.b16 %v2377
        %v2645 = vunpack.c.l.b16 %v2378
        %v2646 = vunpack.c.l.b16 %v2379
        %v2647 = vunpack.c.l.b16 %v2380
        %v2648 = vunpack.c.l.b16 %v2381
        %v2649 = vunpack.c.l.b16 %v2382
        %v2650 = vunpack.c.l.b16 %v2383
        %v2651 = vunpack.c.l.b16 %v2384
        %v2652 = vunpack.c.l.b16 %v2385
        %v2653 = vunpack.c.l.b16 %v2386
        %v2654 = vunpack.c.l.b16 %v2387
        %v2655 = vunpack.c.l.b16 %v2388
        %v2656 = vunpack.c.l.b16 %v2389
        %v2657 = vunpack.c.l.b16 %v2390
        %v2658 = vunpack.c.l.b16 %v2391
        %v2659 = vunpack.c.l.b16 %v2392
        %v2660 = vunpack.c.l.b16 %v2393
        %v2661 = vunpack.c.l.b16 %v2394
        %v2662 = vunpack.c.l.b16 %v2395
        %v2663 = vunpack.c.l.b16 %v2396
        %v2664 = vunpack.c.l.b16 %v2397
        %v2665 = vunpack.c.l.b16 %v2398
        %v2666 = vunpack.c.l.b16 %v2399
        %v2667 = vunpack.c.l.b16 %v2400
        %v2668 = vunpack.c.l.b16 %v2401
        %v2669 = vunpack.c.l.b16 %v2402
        %v2670 = vunpack.c.l.b16 %v2403
        %v2671 = vunpack.c.l.b16 %v2404
        %v2672 = vunpack.c.l.b16 %v2405
        %v2673 = vunpack.c.l.b16 %v2406
        %v2674 = vunpack.c.l.b16 %v2407
        %v2675 = vpack.c.b16 %v2548, %v2547
        %v2676 = vpack.c.b16 %v2550, %v2549
        %v2677 = vpack.c.b16 %v2552, %v2551
        %v2678 = vpack.c.b16 %v2554, %v2553
        %v2679 = vpack.c.b16 %v2556, %v2555
        %v2680 = vpack.c.b16 %v2558, %v2557
        %v2681 = vpack.c.b16 %v2560, %v2559
        %v2682 = vpack.c.b16 %v2562, %v2561
        %v2683 = vpack.c.b16 %v2564, %v2563
        %v2684 = vpack.c.b16 %v2566, %v2565
        %v2685 = vpack.c.b16 %v2568, %v2567
        %v2686 = vpack.c.b16 %v2570, %v2569
        %v2687 = vpack.c.b16 %v2572, %v2571
        %v2688 = vpack.c.b16 %v2574, %v2573
        %v2689 = vpack.c.b16 %v2576, %v2575
        %v2690 = vpack.c.b16 %v2578, %v2577
        %v2691 = vpack.c.b16 %v2580, %v2579
        %v2692 = vpack.c.b16 %v2582, %v2581
        %v2693 = vpack.c.b16 %v2584, %v2583
        %v2694 = vpack.c.b16 %v2586, %v2585
        %v2695 = vpack.c.b16 %v2588, %v2587
        %v2696 = vpack.c.b16 %v2590, %v2589
        %v2697 = vpack.c.b16 %v2592, %v2591
        %v2698 = vpack.c.b16 %v2594, %v2593
        %v2699 = vpack.c.b16 %v2596, %v2595
        %v2700 = vpack.c.b16 %v2598, %v2597
        %v2701 = vpack.c.b16 %v2600, %v2599
        %v2702 = vpack.c.b16 %v2602, %v2601
        %v2703 = vpack.c.b16 %v2604, %v2603
        %v2704 = vpack.c.b16 %v2606, %v2605
        %v2705 = vpack.c.b16 %v2608, %v2607
        %v2706 = vpack.c.b16 %v2610, %v2609
        %v2707 = vpack.c.b16 %v2612, %v2611
        %v2708 = vpack.c.b16 %v2614, %v2613
        %v2709 = vpack.c.b16 %v2616, %v2615
        %v2710 = vpack.c.b16 %v2618, %v2617
        %v2711 = vpack.c.b16 %v2620, %v2619
        %v2712 = vpack.c.b16 %v2622, %v2621
        %v2713 = vpack.c.b16 %v2624, %v2623
        %v2714 = vpack.c.b16 %v2626, %v2625
        %v2715 = vpack.c.b16 %v2628, %v2627
        %v2716 = vpack.c.b16 %v2630, %v2629
        %v2717 = vpack.c.b16 %v2632, %v2631
        %v2718 = vpack.c.b16 %v2634, %v2633
        %v2719 = vpack.c.b16 %v2636, %v2635
        %v2720 = vpack.c.b16 %v2638, %v2637
        %v2721 = vpack.c.b16 %v2640, %v2639
        %v2722 = vpack.c.b16 %v2642, %v2641
        %v2723 = vpack.c.b16 %v2644, %v2643
        %v2724 = vpack.c.b16 %v2646, %v2645
        %v2725 = vpack.c.b16 %v2648, %v2647
        %v2726 = vpack.c.b16 %v2650, %v2649
        %v2727 = vpack.c.b16 %v2652, %v2651
        %v2728 = vpack.c.b16 %v2654, %v2653
        %v2729 = vpack.c.b16 %v2656, %v2655
        %v2730 = vpack.c.b16 %v2658, %v2657
        %v2731 = vpack.c.b16 %v2660, %v2659
        %v2732 = vpack.c.b16 %v2662, %v2661
        %v2733 = vpack.c.b16 %v2664, %v2663
        %v2734 = vpack.c.b16 %v2666, %v2665
        %v2735 = vpack.c.b16 %v2668, %v2667
        %v2736 = vpack.c.b16 %v2670, %v2669
        %v2737 = vpack.c.b16 %v2672, %v2671
        %v2738 = vpack.c.b16 %v2674, %v2673
        %v2743 = vunpack.c.l.b16 %v2408
        %v2744 = vunpack.c.l.b16 %v2409
        %v2745 = vunpack.c.l.b16 %v2410
        %v2746 = vunpack.c.l.b16 %v2411
        %v2747 = vpack.c.b16 %v2744, %v2743
        %v2748 = vpack.c.b16 %v2746, %v2745
        %vm2750 = vcmask 220160
        %v2752 = vsel %vm2750, %v2675, 0
        %v2755 = vsel %vm2750, %v2676, 0
        %v2758 = vsel %vm2750, %v2677, 0
        %v2761 = vsel %vm2750, %v2678, 0
        %v2764 = vsel %vm2750, %v2679, 0
        %v2767 = vsel %vm2750, %v2680, 0
        %v2770 = vsel %vm2750, %v2681, 0
        %v2773 = vsel %vm2750, %v2682, 0
        %v2776 = vsel %vm2750, %v2683, 0
        %v2779 = vsel %vm2750, %v2684, 0
        %v2782 = vsel %vm2750, %v2685, 0
        %v2785 = vsel %vm2750, %v2686, 0
        %v2788 = vsel %vm2750, %v2687, 0
        %v2791 = vsel %vm2750, %v2688, 0
        %v2794 = vsel %vm2750, %v2689, 0
        %v2797 = vsel %vm2750, %v2690, 0
        %v2800 = vsel %vm2750, %v2691, 0
        %v2803 = vsel %vm2750, %v2692, 0
        %v2806 = vsel %vm2750, %v2693, 0
        %v2809 = vsel %vm2750, %v2694, 0
        %v2812 = vsel %vm2750, %v2695, 0
        %v2815 = vsel %vm2750, %v2696, 0
        %v2818 = vsel %vm2750, %v2697, 0
        %v2821 = vsel %vm2750, %v2698, 0
        %v2824 = vsel %vm2750, %v2699, 0
        %v2827 = vsel %vm2750, %v2700, 0
        %v2830 = vsel %vm2750, %v2701, 0
        %v2833 = vsel %vm2750, %v2702, 0
        %v2836 = vsel %vm2750, %v2703, 0
        %v2839 = vsel %vm2750, %v2704, 0
        %v2842 = vsel %vm2750, %v2705, 0
        %v2845 = vsel %vm2750, %v2706, 0
        %v2848 = vsel %vm2750, %v2707, 0
        %v2851 = vsel %vm2750, %v2708, 0
        %v2854 = vsel %vm2750, %v2709, 0
        %v2857 = vsel %vm2750, %v2710, 0
        %v2860 = vsel %vm2750, %v2711, 0
        %v2863 = vsel %vm2750, %v2712, 0
        %v2866 = vsel %vm2750, %v2713, 0
        %v2869 = vsel %vm2750, %v2714, 0
        %v2872 = vsel %vm2750, %v2715, 0
        %v2875 = vsel %vm2750, %v2716, 0
        %v2878 = vsel %vm2750, %v2717, 0
        %v2881 = vsel %vm2750, %v2718, 0
        %v2884 = vsel %vm2750, %v2719, 0
        %v2887 = vsel %vm2750, %v2720, 0
        %v2890 = vsel %vm2750, %v2721, 0
        %v2893 = vsel %vm2750, %v2722, 0
        %v2896 = vsel %vm2750, %v2723, 0
        %v2899 = vsel %vm2750, %v2724, 0
        %v2902 = vsel %vm2750, %v2725, 0
        %v2905 = vsel %vm2750, %v2726, 0
        %v2908 = vsel %vm2750, %v2727, 0
        %v2911 = vsel %vm2750, %v2728, 0
        %v2914 = vsel %vm2750, %v2729, 0
        %v2917 = vsel %vm2750, %v2730, 0
        %v2920 = vsel %vm2750, %v2731, 0
        %v2923 = vsel %vm2750, %v2732, 0
        %v2926 = vsel %vm2750, %v2733, 0
        %v2929 = vsel %vm2750, %v2734, 0
        %v2932 = vsel %vm2750, %v2735, 0
        %v2935 = vsel %vm2750, %v2736, 0
        %v2938 = vsel %vm2750, %v2737, 0
        %v2941 = vsel %vm2750, %v2738, 0
        %vm2943 = vcmask 1044480
        %vm2944 = vcmask 1045504
        %v2945 = vsel %vm2943, 4294967295, 65535
        %v2946 = vsel %vm2944, %v2945, 0
        %v2948 = vand.u32 %v2748, %v2946
        %2950 = vmatprep.subr.bf16.mxu0 0
        %2951 = vmatpush1.bf16.msra.mxu0 %v2747
        %2952 = vmatprep.subr.bf16.mxu0 0
        %2953 = vmatpush1.bf16.msra.mxu0 %v2948
        %2954 = vmatprep.subr.bf16.mxu0 0
        %2955 = vmatpush1.bf16.msra.mxu0 0
        %2956 = vmatprep.subr.bf16.mxu0 0
        %2957 = vmatpush1.bf16.msra.mxu0 0
        %2958 = vmatprep.subr.bf16.mxu0 0
        %2959 = vmatpush1.bf16.msra.mxu0 0
        %2960 = vmatprep.subr.bf16.mxu0 0
        %2961 = vmatpush1.bf16.msra.mxu0 0
        %2962 = vmatprep.subr.bf16.mxu0 0
        %2963 = vmatpush1.bf16.msra.mxu0 0
        %2964 = vmatprep.subr.bf16.mxu0 0
        %2965 = vmatpush1.bf16.msra.mxu0 0
        %2966 = vmatprep.subr.bf16.mxu0 0
        %2967 = vmatpush1.bf16.msra.mxu0 0
        %2968 = vmatprep.subr.bf16.mxu0 0
        %2969 = vmatpush1.bf16.msra.mxu0 0
        %2970 = vmatprep.subr.bf16.mxu0 0
        %2971 = vmatpush1.bf16.msra.mxu0 0
        %2972 = vmatprep.subr.bf16.mxu0 0
        %2973 = vmatpush1.bf16.msra.mxu0 0
        %2974 = vmatprep.subr.bf16.mxu0 0
        %2975 = vmatpush1.bf16.msra.mxu0 0
        %2976 = vmatprep.subr.bf16.mxu0 0
        %2977 = vmatpush1.bf16.msra.mxu0 0
        %2978 = vmatprep.subr.bf16.mxu0 0
        %2979 = vmatpush1.bf16.msra.mxu0 0
        %2980 = vmatprep.subr.bf16.mxu0 0
        %2981 = vmatpush1.bf16.msra.mxu0 0
        %2982 = vmatprep.mubr.bf16.mxu0 0
        %2983 = vmatmul.mubr.bf16.gmra.mrb[0].mxu0 %v2752
        %v2984 = vpop.f32.mrb[0].mxu0
        %v2985 = vadd.f32 %v2417, %v2984
        %v2986 = vpop.f32.mrb[0].mxu0
        %v2987 = vpop.f32.mrb[0].mxu0
        %v2988 = vadd.f32 %v2417, %v2987
        %v2989 = vpop.f32.mrb[0].mxu0
        %2990 = vmatprep.mubr.bf16.mxu0 0
        %2991 = vmatmul.mubr.bf16.gmra.mrb[0].mxu0 %v2755
        %v2992 = vpop.f32.mrb[0].mxu0
        %v2993 = vadd.f32 %v2417, %v2992
        %v2994 = vpop.f32.mrb[0].mxu0
        %v2995 = vpop.f32.mrb[0].mxu0
        %v2996 = vadd.f32 %v2417, %v2995
        %v2997 = vpop.f32.mrb[0].mxu0
        %2998 = vmatprep.mubr.bf16.mxu0 0
        %2999 = vmatmul.mubr.bf16.gmra.mrb[0].mxu0 %v2758
        %v3000 = vpop.f32.mrb[0].mxu0
        %v3001 = vadd.f32 %v2417, %v3000
        %v3002 = vpop.f32.mrb[0].mxu0
        %v3003 = vpop.f32.mrb[0].mxu0
        %v3004 = vadd.f32 %v2417, %v3003
        %v3005 = vpop.f32.mrb[0].mxu0
        %3006 = vmatprep.mubr.bf16.mxu0 0
        %3007 = vmatmul.mubr.bf16.gmra.mrb[0].mxu0 %v2761
        %v3008 = vpop.f32.mrb[0].mxu0
        %v3009 = vadd.f32 %v2417, %v3008
        %v3010 = vpop.f32.mrb[0].mxu0
        %v3011 = vpop.f32.mrb[0].mxu0
        %v3012 = vadd.f32 %v2417, %v3011
        %v3013 = vpop.f32.mrb[0].mxu0
        %3014 = vmatprep.mubr.bf16.mxu0 0
        %3015 = vmatmul.mubr.bf16.gmra.mrb[0].mxu0 %v2764
        %v3016 = vpop.f32.mrb[0].mxu0
        %v3017 = vadd.f32 %v2417, %v3016
        %v3018 = vpop.f32.mrb[0].mxu0
        %v3019 = vpop.f32.mrb[0].mxu0
        %v3020 = vadd.f32 %v2417, %v3019
        %v3021 = vpop.f32.mrb[0].mxu0
        %3022 = vmatprep.mubr.bf16.mxu0 0
        %3023 = vmatmul.mubr.bf16.gmra.mrb[0].mxu0 %v2767
        %v3024 = vpop.f32.mrb[0].mxu0
        %v3025 = vadd.f32 %v2417, %v3024
        %v3026 = vpop.f32.mrb[0].mxu0
        %v3027 = vpop.f32.mrb[0].mxu0
        %v3028 = vadd.f32 %v2417, %v3027
        %v3029 = vpop.f32.mrb[0].mxu0
        %3030 = vmatprep.mubr.bf16.mxu0 0
        %3031 = vmatmul.mubr.bf16.gmra.mrb[0].mxu0 %v2770
        %v3032 = vpop.f32.mrb[0].mxu0
        %v3033 = vadd.f32 %v2417, %v3032
        %v3034 = vpop.f32.mrb[0].mxu0
        %v3035 = vpop.f32.mrb[0].mxu0
        %v3036 = vadd.f32 %v2417, %v3035
        %v3037 = vpop.f32.mrb[0].mxu0
        %3038 = vmatprep.mubr.bf16.mxu0 0
        %3039 = vmatmul.mubr.bf16.gmra.mrb[0].mxu0 %v2773
        %v3040 = vpop.f32.mrb[0].mxu0
        %v3041 = vadd.f32 %v2417, %v3040
        %v3042 = vpop.f32.mrb[0].mxu0
        %v3043 = vpop.f32.mrb[0].mxu0
        %v3044 = vadd.f32 %v2417, %v3043
        %v3045 = vpop.f32.mrb[0].mxu0
        %3046 = vmatprep.mubr.bf16.mxu0 0
        %3047 = vmatmul.mubr.bf16.gmra.mrb[0].mxu0 %v2776
        %v3048 = vpop.f32.mrb[0].mxu0
        %v3049 = vadd.f32 %v2417, %v3048
        %v3050 = vpop.f32.mrb[0].mxu0
        %v3051 = vpop.f32.mrb[0].mxu0
        %v3052 = vadd.f32 %v2417, %v3051
        %v3053 = vpop.f32.mrb[0].mxu0
        %3054 = vmatprep.mubr.bf16.mxu0 0
        %3055 = vmatmul.mubr.bf16.gmra.mrb[0].mxu0 %v2779
        %v3056 = vpop.f32.mrb[0].mxu0
        %v3057 = vadd.f32 %v2417, %v3056
        %v3058 = vpop.f32.mrb[0].mxu0
        %v3059 = vpop.f32.mrb[0].mxu0
        %v3060 = vadd.f32 %v2417, %v3059
        %v3061 = vpop.f32.mrb[0].mxu0
        %3062 = vmatprep.mubr.bf16.mxu0 0
        %3063 = vmatmul.mubr.bf16.gmra.mrb[0].mxu0 %v2782
        %v3064 = vpop.f32.mrb[0].mxu0
        %v3065 = vadd.f32 %v2417, %v3064
        %v3066 = vpop.f32.mrb[0].mxu0
        %v3067 = vpop.f32.mrb[0].mxu0
        %v3068 = vadd.f32 %v2417, %v3067
        %v3069 = vpop.f32.mrb[0].mxu0
        %3070 = vmatprep.mubr.bf16.mxu0 0
        %3071 = vmatmul.mubr.bf16.gmra.mrb[0].mxu0 %v2785
        %v3072 = vpop.f32.mrb[0].mxu0
        %v3073 = vadd.f32 %v2417, %v3072
        %v3074 = vpop.f32.mrb[0].mxu0
        %v3075 = vpop.f32.mrb[0].mxu0
        %v3076 = vadd.f32 %v2417, %v3075
        %v3077 = vpop.f32.mrb[0].mxu0
        %3078 = vmatprep.mubr.bf16.mxu0 0
        %3079 = vmatmul.mubr.bf16.gmra.mrb[0].mxu0 %v2788
        %v3080 = vpop.f32.mrb[0].mxu0
        %v3081 = vadd.f32 %v2417, %v3080
        %v3082 = vpop.f32.mrb[0].mxu0
        %v3083 = vpop.f32.mrb[0].mxu0
        %v3084 = vadd.f32 %v2417, %v3083
        %v3085 = vpop.f32.mrb[0].mxu0
        %3086 = vmatprep.mubr.bf16.mxu0 0
        %3087 = vmatmul.mubr.bf16.gmra.mrb[0].mxu0 %v2791
        %v3088 = vpop.f32.mrb[0].mxu0
        %v3089 = vadd.f32 %v2417, %v3088
        %v3090 = vpop.f32.mrb[0].mxu0
        %v3091 = vpop.f32.mrb[0].mxu0
        %v3092 = vadd.f32 %v2417, %v3091
        %v3093 = vpop.f32.mrb[0].mxu0
        %3094 = vmatprep.mubr.bf16.mxu0 0
        %3095 = vmatmul.mubr.bf16.gmra.mrb[0].mxu0 %v2794
        %v3096 = vpop.f32.mrb[0].mxu0
        %v3097 = vadd.f32 %v2417, %v3096
        %v3098 = vpop.f32.mrb[0].mxu0
        %v3099 = vpop.f32.mrb[0].mxu0
        %v3100 = vadd.f32 %v2417, %v3099
        %v3101 = vpop.f32.mrb[0].mxu0
        %3102 = vmatprep.mubr.bf16.mxu0 0
        %3103 = vmatmul.mubr.bf16.gmra.mrb[0].mxu0 %v2797
        %v3104 = vpop.f32.mrb[0].mxu0
        %v3105 = vadd.f32 %v2417, %v3104
        %v3106 = vpop.f32.mrb[0].mxu0
        %v3107 = vpop.f32.mrb[0].mxu0
        %v3108 = vadd.f32 %v2417, %v3107
        %v3109 = vpop.f32.mrb[0].mxu0
        %3110 = vmatprep.mubr.bf16.mxu0 0
        %3111 = vmatmul.mubr.bf16.gmra.mrb[0].mxu0 %v2800
        %v3112 = vpop.f32.mrb[0].mxu0
        %v3113 = vadd.f32 %v2417, %v3112
        %v3114 = vpop.f32.mrb[0].mxu0
        %v3115 = vpop.f32.mrb[0].mxu0
        %v3116 = vadd.f32 %v2417, %v3115
        %v3117 = vpop.f32.mrb[0].mxu0
        %3118 = vmatprep.mubr.bf16.mxu0 0
        %3119 = vmatmul.mubr.bf16.gmra.mrb[0].mxu0 %v2803
        %v3120 = vpop.f32.mrb[0].mxu0
        %v3121 = vadd.f32 %v2417, %v3120
        %v3122 = vpop.f32.mrb[0].mxu0
        %v3123 = vpop.f32.mrb[0].mxu0
        %v3124 = vadd.f32 %v2417, %v3123
        %v3125 = vpop.f32.mrb[0].mxu0
        %3126 = vmatprep.mubr.bf16.mxu0 0
        %3127 = vmatmul.mubr.bf16.gmra.mrb[0].mxu0 %v2806
        %v3128 = vpop.f32.mrb[0].mxu0
        %v3129 = vadd.f32 %v2417, %v3128
        %v3130 = vpop.f32.mrb[0].mxu0
        %v3131 = vpop.f32.mrb[0].mxu0
        %v3132 = vadd.f32 %v2417, %v3131
        %v3133 = vpop.f32.mrb[0].mxu0
        %3134 = vmatprep.mubr.bf16.mxu0 0
        %3135 = vmatmul.mubr.bf16.gmra.mrb[0].mxu0 %v2809
        %v3136 = vpop.f32.mrb[0].mxu0
        %v3137 = vadd.f32 %v2417, %v3136
        %v3138 = vpop.f32.mrb[0].mxu0
        %v3139 = vpop.f32.mrb[0].mxu0
        %v3140 = vadd.f32 %v2417, %v3139
        %v3141 = vpop.f32.mrb[0].mxu0
        %3142 = vmatprep.mubr.bf16.mxu0 0
        %3143 = vmatmul.mubr.bf16.gmra.mrb[0].mxu0 %v2812
        %v3144 = vpop.f32.mrb[0].mxu0
        %v3145 = vadd.f32 %v2417, %v3144
        %v3146 = vpop.f32.mrb[0].mxu0
        %v3147 = vpop.f32.mrb[0].mxu0
        %v3148 = vadd.f32 %v2417, %v3147
        %v3149 = vpop.f32.mrb[0].mxu0
        %3150 = vmatprep.mubr.bf16.mxu0 0
        %3151 = vmatmul.mubr.bf16.gmra.mrb[0].mxu0 %v2815
        %v3152 = vpop.f32.mrb[0].mxu0
        %v3153 = vadd.f32 %v2417, %v3152
        %v3154 = vpop.f32.mrb[0].mxu0
        %v3155 = vpop.f32.mrb[0].mxu0
        %v3156 = vadd.f32 %v2417, %v3155
        %v3157 = vpop.f32.mrb[0].mxu0
        %3158 = vmatprep.mubr.bf16.mxu0 0
        %3159 = vmatmul.mubr.bf16.gmra.mrb[0].mxu0 %v2818
        %v3160 = vpop.f32.mrb[0].mxu0
        %v3161 = vadd.f32 %v2417, %v3160
        %v3162 = vpop.f32.mrb[0].mxu0
        %v3163 = vpop.f32.mrb[0].mxu0
        %v3164 = vadd.f32 %v2417, %v3163
        %v3165 = vpop.f32.mrb[0].mxu0
        %3166 = vmatprep.mubr.bf16.mxu0 0
        %3167 = vmatmul.mubr.bf16.gmra.mrb[0].mxu0 %v2821
        %v3168 = vpop.f32.mrb[0].mxu0
        %v3169 = vadd.f32 %v2417, %v3168
        %v3170 = vpop.f32.mrb[0].mxu0
        %v3171 = vpop.f32.mrb[0].mxu0
        %v3172 = vadd.f32 %v2417, %v3171
        %v3173 = vpop.f32.mrb[0].mxu0
        %3174 = vmatprep.mubr.bf16.mxu0 0
        %3175 = vmatmul.mubr.bf16.gmra.mrb[0].mxu0 %v2824
        %v3176 = vpop.f32.mrb[0].mxu0
        %v3177 = vadd.f32 %v2417, %v3176
        %v3178 = vpop.f32.mrb[0].mxu0
        %v3179 = vpop.f32.mrb[0].mxu0
        %v3180 = vadd.f32 %v2417, %v3179
        %v3181 = vpop.f32.mrb[0].mxu0
        %3182 = vmatprep.mubr.bf16.mxu0 0
        %3183 = vmatmul.mubr.bf16.gmra.mrb[0].mxu0 %v2827
        %v3184 = vpop.f32.mrb[0].mxu0
        %v3185 = vadd.f32 %v2417, %v3184
        %v3186 = vpop.f32.mrb[0].mxu0
        %v3187 = vpop.f32.mrb[0].mxu0
        %v3188 = vadd.f32 %v2417, %v3187
        %v3189 = vpop.f32.mrb[0].mxu0
        %3190 = vmatprep.mubr.bf16.mxu0 0
        %3191 = vmatmul.mubr.bf16.gmra.mrb[0].mxu0 %v2830
        %v3192 = vpop.f32.mrb[0].mxu0
        %v3193 = vadd.f32 %v2417, %v3192
        %v3194 = vpop.f32.mrb[0].mxu0
        %v3195 = vpop.f32.mrb[0].mxu0
        %v3196 = vadd.f32 %v2417, %v3195
        %v3197 = vpop.f32.mrb[0].mxu0
        %3198 = vmatprep.mubr.bf16.mxu0 0
        %3199 = vmatmul.mubr.bf16.gmra.mrb[0].mxu0 %v2833
        %v3200 = vpop.f32.mrb[0].mxu0
        %v3201 = vadd.f32 %v2417, %v3200
        %v3202 = vpop.f32.mrb[0].mxu0
        %v3203 = vpop.f32.mrb[0].mxu0
        %v3204 = vadd.f32 %v2417, %v3203
        %v3205 = vpop.f32.mrb[0].mxu0
        %3206 = vmatprep.mubr.bf16.mxu0 0
        %3207 = vmatmul.mubr.bf16.gmra.mrb[0].mxu0 %v2836
        %v3208 = vpop.f32.mrb[0].mxu0
        %v3209 = vadd.f32 %v2417, %v3208
        %v3210 = vpop.f32.mrb[0].mxu0
        %v3211 = vpop.f32.mrb[0].mxu0
        %v3212 = vadd.f32 %v2417, %v3211
        %v3213 = vpop.f32.mrb[0].mxu0
        %3214 = vmatprep.mubr.bf16.mxu0 0
        %3215 = vmatmul.mubr.bf16.gmra.mrb[0].mxu0 %v2839
        %v3216 = vpop.f32.mrb[0].mxu0
        %v3217 = vadd.f32 %v2417, %v3216
        %v3218 = vpop.f32.mrb[0].mxu0
        %v3219 = vpop.f32.mrb[0].mxu0
        %v3220 = vadd.f32 %v2417, %v3219
        %v3221 = vpop.f32.mrb[0].mxu0
        %3222 = vmatprep.mubr.bf16.mxu0 0
        %3223 = vmatmul.mubr.bf16.gmra.mrb[0].mxu0 %v2842
        %v3224 = vpop.f32.mrb[0].mxu0
        %v3225 = vadd.f32 %v2417, %v3224
        %v3226 = vpop.f32.mrb[0].mxu0
        %v3227 = vpop.f32.mrb[0].mxu0
        %v3228 = vadd.f32 %v2417, %v3227
        %v3229 = vpop.f32.mrb[0].mxu0
        %3230 = vmatprep.mubr.bf16.mxu0 0
        %3231 = vmatmul.mubr.bf16.gmra.mrb[0].mxu0 %v2845
        %v3232 = vpop.f32.mrb[0].mxu0
        %v3233 = vadd.f32 %v2417, %v3232
        %v3234 = vpop.f32.mrb[0].mxu0
        %v3235 = vpop.f32.mrb[0].mxu0
        %v3236 = vadd.f32 %v2417, %v3235
        %v3237 = vpop.f32.mrb[0].mxu0
        %3238 = vmatprep.mubr.bf16.mxu0 0
        %3239 = vmatmul.mubr.bf16.gmra.mrb[0].mxu0 %v2848
        %v3240 = vpop.f32.mrb[0].mxu0
        %v3241 = vadd.f32 %v2417, %v3240
        %v3242 = vpop.f32.mrb[0].mxu0
        %v3243 = vpop.f32.mrb[0].mxu0
        %v3244 = vadd.f32 %v2417, %v3243
        %v3245 = vpop.f32.mrb[0].mxu0
        %3246 = vmatprep.mubr.bf16.mxu0 0
        %3247 = vmatmul.mubr.bf16.gmra.mrb[0].mxu0 %v2851
        %v3248 = vpop.f32.mrb[0].mxu0
        %v3249 = vadd.f32 %v2417, %v3248
        %v3250 = vpop.f32.mrb[0].mxu0
        %v3251 = vpop.f32.mrb[0].mxu0
        %v3252 = vadd.f32 %v2417, %v3251
        %v3253 = vpop.f32.mrb[0].mxu0
        %3254 = vmatprep.mubr.bf16.mxu0 0
        %3255 = vmatmul.mubr.bf16.gmra.mrb[0].mxu0 %v2854
        %v3256 = vpop.f32.mrb[0].mxu0
        %v3257 = vadd.f32 %v2417, %v3256
        %v3258 = vpop.f32.mrb[0].mxu0
        %v3259 = vpop.f32.mrb[0].mxu0
        %v3260 = vadd.f32 %v2417, %v3259
        %v3261 = vpop.f32.mrb[0].mxu0
        %3262 = vmatprep.mubr.bf16.mxu0 0
        %3263 = vmatmul.mubr.bf16.gmra.mrb[0].mxu0 %v2857
        %v3264 = vpop.f32.mrb[0].mxu0
        %v3265 = vadd.f32 %v2417, %v3264
        %v3266 = vpop.f32.mrb[0].mxu0
        %v3267 = vpop.f32.mrb[0].mxu0
        %v3268 = vadd.f32 %v2417, %v3267
        %v3269 = vpop.f32.mrb[0].mxu0
        %3270 = vmatprep.mubr.bf16.mxu0 0
        %3271 = vmatmul.mubr.bf16.gmra.mrb[0].mxu0 %v2860
        %v3272 = vpop.f32.mrb[0].mxu0
        %v3273 = vadd.f32 %v2417, %v3272
        %v3274 = vpop.f32.mrb[0].mxu0
        %v3275 = vpop.f32.mrb[0].mxu0
        %v3276 = vadd.f32 %v2417, %v3275
        %v3277 = vpop.f32.mrb[0].mxu0
        %3278 = vmatprep.mubr.bf16.mxu0 0
        %3279 = vmatmul.mubr.bf16.gmra.mrb[0].mxu0 %v2863
        %v3280 = vpop.f32.mrb[0].mxu0
        %v3281 = vadd.f32 %v2417, %v3280
        %v3282 = vpop.f32.mrb[0].mxu0
        %v3283 = vpop.f32.mrb[0].mxu0
        %v3284 = vadd.f32 %v2417, %v3283
        %v3285 = vpop.f32.mrb[0].mxu0
        %3286 = vmatprep.mubr.bf16.mxu0 0
        %3287 = vmatmul.mubr.bf16.gmra.mrb[0].mxu0 %v2866
        %v3288 = vpop.f32.mrb[0].mxu0
        %v3289 = vadd.f32 %v2417, %v3288
        %v3290 = vpop.f32.mrb[0].mxu0
        %v3291 = vpop.f32.mrb[0].mxu0
        %v3292 = vadd.f32 %v2417, %v3291
        %v3293 = vpop.f32.mrb[0].mxu0
        %3294 = vmatprep.mubr.bf16.mxu0 0
        %3295 = vmatmul.mubr.bf16.gmra.mrb[0].mxu0 %v2869
        %v3296 = vpop.f32.mrb[0].mxu0
        %v3297 = vadd.f32 %v2417, %v3296
        %v3298 = vpop.f32.mrb[0].mxu0
        %v3299 = vpop.f32.mrb[0].mxu0
        %v3300 = vadd.f32 %v2417, %v3299
        %v3301 = vpop.f32.mrb[0].mxu0
        %3302 = vmatprep.mubr.bf16.mxu0 0
        %3303 = vmatmul.mubr.bf16.gmra.mrb[0].mxu0 %v2872
        %v3304 = vpop.f32.mrb[0].mxu0
        %v3305 = vadd.f32 %v2417, %v3304
        %v3306 = vpop.f32.mrb[0].mxu0
        %v3307 = vpop.f32.mrb[0].mxu0
        %v3308 = vadd.f32 %v2417, %v3307
        %v3309 = vpop.f32.mrb[0].mxu0
        %3310 = vmatprep.mubr.bf16.mxu0 0
        %3311 = vmatmul.mubr.bf16.gmra.mrb[0].mxu0 %v2875
        %v3312 = vpop.f32.mrb[0].mxu0
        %v3313 = vadd.f32 %v2417, %v3312
        %v3314 = vpop.f32.mrb[0].mxu0
        %v3315 = vpop.f32.mrb[0].mxu0
        %v3316 = vadd.f32 %v2417, %v3315
        %v3317 = vpop.f32.mrb[0].mxu0
        %3318 = vmatprep.mubr.bf16.mxu0 0
        %3319 = vmatmul.mubr.bf16.gmra.mrb[0].mxu0 %v2878
        %v3320 = vpop.f32.mrb[0].mxu0
        %v3321 = vadd.f32 %v2417, %v3320
        %v3322 = vpop.f32.mrb[0].mxu0
        %v3323 = vpop.f32.mrb[0].mxu0
        %v3324 = vadd.f32 %v2417, %v3323
        %v3325 = vpop.f32.mrb[0].mxu0
        %3326 = vmatprep.mubr.bf16.mxu0 0
        %3327 = vmatmul.mubr.bf16.gmra.mrb[0].mxu0 %v2881
        %v3328 = vpop.f32.mrb[0].mxu0
        %v3329 = vadd.f32 %v2417, %v3328
        %v3330 = vpop.f32.mrb[0].mxu0
        %v3331 = vpop.f32.mrb[0].mxu0
        %v3332 = vadd.f32 %v2417, %v3331
        %v3333 = vpop.f32.mrb[0].mxu0
        %3334 = vmatprep.mubr.bf16.mxu0 0
        %3335 = vmatmul.mubr.bf16.gmra.mrb[0].mxu0 %v2884
        %v3336 = vpop.f32.mrb[0].mxu0
        %v3337 = vadd.f32 %v2417, %v3336
        %v3338 = vpop.f32.mrb[0].mxu0
        %v3339 = vpop.f32.mrb[0].mxu0
        %v3340 = vadd.f32 %v2417, %v3339
        %v3341 = vpop.f32.mrb[0].mxu0
        %3342 = vmatprep.mubr.bf16.mxu0 0
        %3343 = vmatmul.mubr.bf16.gmra.mrb[0].mxu0 %v2887
        %v3344 = vpop.f32.mrb[0].mxu0
        %v3345 = vadd.f32 %v2417, %v3344
        %v3346 = vpop.f32.mrb[0].mxu0
        %v3347 = vpop.f32.mrb[0].mxu0
        %v3348 = vadd.f32 %v2417, %v3347
        %v3349 = vpop.f32.mrb[0].mxu0
        %3350 = vmatprep.mubr.bf16.mxu0 0
        %3351 = vmatmul.mubr.bf16.gmra.mrb[0].mxu0 %v2890
        %v3352 = vpop.f32.mrb[0].mxu0
        %v3353 = vadd.f32 %v2417, %v3352
        %v3354 = vpop.f32.mrb[0].mxu0
        %v3355 = vpop.f32.mrb[0].mxu0
        %v3356 = vadd.f32 %v2417, %v3355
        %v3357 = vpop.f32.mrb[0].mxu0
        %3358 = vmatprep.mubr.bf16.mxu0 0
        %3359 = vmatmul.mubr.bf16.gmra.mrb[0].mxu0 %v2893
        %v3360 = vpop.f32.mrb[0].mxu0
        %v3361 = vadd.f32 %v2417, %v3360
        %v3362 = vpop.f32.mrb[0].mxu0
        %v3363 = vpop.f32.mrb[0].mxu0
        %v3364 = vadd.f32 %v2417, %v3363
        %v3365 = vpop.f32.mrb[0].mxu0
        %3366 = vmatprep.mubr.bf16.mxu0 0
        %3367 = vmatmul.mubr.bf16.gmra.mrb[0].mxu0 %v2896
        %v3368 = vpop.f32.mrb[0].mxu0
        %v3369 = vadd.f32 %v2417, %v3368
        %v3370 = vpop.f32.mrb[0].mxu0
        %v3371 = vpop.f32.mrb[0].mxu0
        %v3372 = vadd.f32 %v2417, %v3371
        %v3373 = vpop.f32.mrb[0].mxu0
        %3374 = vmatprep.mubr.bf16.mxu0 0
        %3375 = vmatmul.mubr.bf16.gmra.mrb[0].mxu0 %v2899
        %v3376 = vpop.f32.mrb[0].mxu0
        %v3377 = vadd.f32 %v2417, %v3376
        %v3378 = vpop.f32.mrb[0].mxu0
        %v3379 = vpop.f32.mrb[0].mxu0
        %v3380 = vadd.f32 %v2417, %v3379
        %v3381 = vpop.f32.mrb[0].mxu0
        %3382 = vmatprep.mubr.bf16.mxu0 0
        %3383 = vmatmul.mubr.bf16.gmra.mrb[0].mxu0 %v2902
        %v3384 = vpop.f32.mrb[0].mxu0
        %v3385 = vadd.f32 %v2417, %v3384
        %v3386 = vpop.f32.mrb[0].mxu0
        %v3387 = vpop.f32.mrb[0].mxu0
        %v3388 = vadd.f32 %v2417, %v3387
        %v3389 = vpop.f32.mrb[0].mxu0
        %3390 = vmatprep.mubr.bf16.mxu0 0
        %3391 = vmatmul.mubr.bf16.gmra.mrb[0].mxu0 %v2905
        %v3392 = vpop.f32.mrb[0].mxu0
        %v3393 = vadd.f32 %v2417, %v3392
        %v3394 = vpop.f32.mrb[0].mxu0
        %v3395 = vpop.f32.mrb[0].mxu0
        %v3396 = vadd.f32 %v2417, %v3395
        %v3397 = vpop.f32.mrb[0].mxu0
        %3398 = vmatprep.mubr.bf16.mxu0 0
        %3399 = vmatmul.mubr.bf16.gmra.mrb[0].mxu0 %v2908
        %v3400 = vpop.f32.mrb[0].mxu0
        %v3401 = vadd.f32 %v2417, %v3400
        %v3402 = vpop.f32.mrb[0].mxu0
        %v3403 = vpop.f32.mrb[0].mxu0
        %v3404 = vadd.f32 %v2417, %v3403
        %v3405 = vpop.f32.mrb[0].mxu0
        %3406 = vmatprep.mubr.bf16.mxu0 0
        %3407 = vmatmul.mubr.bf16.gmra.mrb[0].mxu0 %v2911
        %v3408 = vpop.f32.mrb[0].mxu0
        %v3409 = vadd.f32 %v2417, %v3408
        %v3410 = vpop.f32.mrb[0].mxu0
        %v3411 = vpop.f32.mrb[0].mxu0
        %v3412 = vadd.f32 %v2417, %v3411
        %v3413 = vpop.f32.mrb[0].mxu0
        %3414 = vmatprep.mubr.bf16.mxu0 0
        %3415 = vmatmul.mubr.bf16.gmra.mrb[0].mxu0 %v2914
        %v3416 = vpop.f32.mrb[0].mxu0
        %v3417 = vadd.f32 %v2417, %v3416
        %v3418 = vpop.f32.mrb[0].mxu0
        %v3419 = vpop.f32.mrb[0].mxu0
        %v3420 = vadd.f32 %v2417, %v3419
        %v3421 = vpop.f32.mrb[0].mxu0
        %3422 = vmatprep.mubr.bf16.mxu0 0
        %3423 = vmatmul.mubr.bf16.gmra.mrb[0].mxu0 %v2917
        %v3424 = vpop.f32.mrb[0].mxu0
        %v3425 = vadd.f32 %v2417, %v3424
        %v3426 = vpop.f32.mrb[0].mxu0
        %v3427 = vpop.f32.mrb[0].mxu0
        %v3428 = vadd.f32 %v2417, %v3427
        %v3429 = vpop.f32.mrb[0].mxu0
        %3430 = vmatprep.mubr.bf16.mxu0 0
        %3431 = vmatmul.mubr.bf16.gmra.mrb[0].mxu0 %v2920
        %v3432 = vpop.f32.mrb[0].mxu0
        %v3433 = vadd.f32 %v2417, %v3432
        %v3434 = vpop.f32.mrb[0].mxu0
        %v3435 = vpop.f32.mrb[0].mxu0
        %v3436 = vadd.f32 %v2417, %v3435
        %v3437 = vpop.f32.mrb[0].mxu0
        %3438 = vmatprep.mubr.bf16.mxu0 0
        %3439 = vmatmul.mubr.bf16.gmra.mrb[0].mxu0 %v2923
        %v3440 = vpop.f32.mrb[0].mxu0
        %v3441 = vadd.f32 %v2417, %v3440
        %v3442 = vpop.f32.mrb[0].mxu0
        %v3443 = vpop.f32.mrb[0].mxu0
        %v3444 = vadd.f32 %v2417, %v3443
        %v3445 = vpop.f32.mrb[0].mxu0
        %3446 = vmatprep.mubr.bf16.mxu0 0
        %3447 = vmatmul.mubr.bf16.gmra.mrb[0].mxu0 %v2926
        %v3448 = vpop.f32.mrb[0].mxu0
        %v3449 = vadd.f32 %v2417, %v3448
        %v3450 = vpop.f32.mrb[0].mxu0
        %v3451 = vpop.f32.mrb[0].mxu0
        %v3452 = vadd.f32 %v2417, %v3451
        %v3453 = vpop.f32.mrb[0].mxu0
        %3454 = vmatprep.mubr.bf16.mxu0 0
        %3455 = vmatmul.mubr.bf16.gmra.mrb[0].mxu0 %v2929
        %v3456 = vpop.f32.mrb[0].mxu0
        %v3457 = vadd.f32 %v2417, %v3456
        %v3458 = vpop.f32.mrb[0].mxu0
        %v3459 = vpop.f32.mrb[0].mxu0
        %v3460 = vadd.f32 %v2417, %v3459
        %v3461 = vpop.f32.mrb[0].mxu0
        %3462 = vmatprep.mubr.bf16.mxu0 0
        %3463 = vmatmul.mubr.bf16.gmra.mrb[0].mxu0 %v2932
        %v3464 = vpop.f32.mrb[0].mxu0
        %v3465 = vadd.f32 %v2417, %v3464
        %v3466 = vpop.f32.mrb[0].mxu0
        %v3467 = vpop.f32.mrb[0].mxu0
        %v3468 = vadd.f32 %v2417, %v3467
        %v3469 = vpop.f32.mrb[0].mxu0
        %3470 = vmatprep.mubr.bf16.mxu0 0
        %3471 = vmatmul.mubr.bf16.gmra.mrb[0].mxu0 %v2935
        %v3472 = vpop.f32.mrb[0].mxu0
        %v3473 = vadd.f32 %v2417, %v3472
        %v3474 = vpop.f32.mrb[0].mxu0
        %v3475 = vpop.f32.mrb[0].mxu0
        %v3476 = vadd.f32 %v2417, %v3475
        %v3477 = vpop.f32.mrb[0].mxu0
        %3478 = vmatprep.mubr.bf16.mxu0 0
        %3479 = vmatmul.mubr.bf16.gmra.mrb[0].mxu0 %v2938
        %v3480 = vpop.f32.mrb[0].mxu0
        %v3481 = vadd.f32 %v2417, %v3480
        %v3482 = vpop.f32.mrb[0].mxu0
        %v3483 = vpop.f32.mrb[0].mxu0
        %v3484 = vadd.f32 %v2417, %v3483
        %v3485 = vpop.f32.mrb[0].mxu0
        %3486 = vmatprep.mubr.bf16.mxu0 0
        %3487 = vmatmul.mubr.bf16.gmra.mrb[0].mxu0 %v2941
        %v3488 = vpop.f32.mrb[0].mxu0
        %v3489 = vadd.f32 %v2417, %v3488
        %v3490 = vpop.f32.mrb[0].mxu0
        %v3491 = vpop.f32.mrb[0].mxu0
        %v3492 = vadd.f32 %v2417, %v3491
        %v3493 = vpop.f32.mrb[0].mxu0
        %3494 = vdwg.mxu0
        %v3495 = vmax.f32 %v2985, 0.0
        %v3496 = vmax.f32 %v2988, 0.0
        %v3497 = vmax.f32 %v2993, 0.0
        %v3498 = vmax.f32 %v2996, 0.0
        %v3499 = vmax.f32 %v3001, 0.0
        %v3500 = vmax.f32 %v3004, 0.0
        %v3501 = vmax.f32 %v3009, 0.0
        %v3502 = vmax.f32 %v3012, 0.0
        %v3503 = vmax.f32 %v3017, 0.0
        %v3504 = vmax.f32 %v3020, 0.0
        %v3505 = vmax.f32 %v3025, 0.0
        %v3506 = vmax.f32 %v3028, 0.0
        %v3507 = vmax.f32 %v3033, 0.0
        %v3508 = vmax.f32 %v3036, 0.0
        %v3509 = vmax.f32 %v3041, 0.0
        %v3510 = vmax.f32 %v3044, 0.0
        %v3511 = vmax.f32 %v3049, 0.0
        %v3512 = vmax.f32 %v3052, 0.0
        %v3513 = vmax.f32 %v3057, 0.0
        %v3514 = vmax.f32 %v3060, 0.0
        %v3515 = vmax.f32 %v3065, 0.0
        %v3516 = vmax.f32 %v3068, 0.0
        %v3517 = vmax.f32 %v3073, 0.0
        %v3518 = vmax.f32 %v3076, 0.0
        %v3519 = vmax.f32 %v3081, 0.0
        %v3520 = vmax.f32 %v3084, 0.0
        %v3521 = vmax.f32 %v3089, 0.0
        %v3522 = vmax.f32 %v3092, 0.0
        %v3523 = vmax.f32 %v3097, 0.0
        %v3524 = vmax.f32 %v3100, 0.0
        %v3525 = vmax.f32 %v3105, 0.0
        %v3526 = vmax.f32 %v3108, 0.0
        %v3527 = vmax.f32 %v3113, 0.0
        %v3528 = vmax.f32 %v3116, 0.0
        %v3529 = vmax.f32 %v3121, 0.0
        %v3530 = vmax.f32 %v3124, 0.0
        %v3531 = vmax.f32 %v3129, 0.0
        %v3532 = vmax.f32 %v3132, 0.0
        %v3533 = vmax.f32 %v3137, 0.0
        %v3534 = vmax.f32 %v3140, 0.0
        %v3535 = vmax.f32 %v3145, 0.0
        %v3536 = vmax.f32 %v3148, 0.0
        %v3537 = vmax.f32 %v3153, 0.0
        %v3538 = vmax.f32 %v3156, 0.0
        %v3539 = vmax.f32 %v3161, 0.0
        %v3540 = vmax.f32 %v3164, 0.0
        %v3541 = vmax.f32 %v3169, 0.0
        %v3542 = vmax.f32 %v3172, 0.0
        %v3543 = vmax.f32 %v3177, 0.0
        %v3544 = vmax.f32 %v3180, 0.0
        %v3545 = vmax.f32 %v3185, 0.0
        %v3546 = vmax.f32 %v3188, 0.0
        %v3547 = vmax.f32 %v3193, 0.0
        %v3548 = vmax.f32 %v3196, 0.0
        %v3549 = vmax.f32 %v3201, 0.0
        %v3550 = vmax.f32 %v3204, 0.0
        %v3551 = vmax.f32 %v3209, 0.0
        %v3552 = vmax.f32 %v3212, 0.0
        %v3553 = vmax.f32 %v3217, 0.0
        %v3554 = vmax.f32 %v3220, 0.0
        %v3555 = vmax.f32 %v3225, 0.0
        %v3556 = vmax.f32 %v3228, 0.0
        %v3557 = vmax.f32 %v3233, 0.0
        %v3558 = vmax.f32 %v3236, 0.0
        %v3559 = vmax.f32 %v3241, 0.0
        %v3560 = vmax.f32 %v3244, 0.0
        %v3561 = vmax.f32 %v3249, 0.0
        %v3562 = vmax.f32 %v3252, 0.0
        %v3563 = vmax.f32 %v3257, 0.0
        %v3564 = vmax.f32 %v3260, 0.0
        %v3565 = vmax.f32 %v3265, 0.0
        %v3566 = vmax.f32 %v3268, 0.0
        %v3567 = vmax.f32 %v3273, 0.0
        %v3568 = vmax.f32 %v3276, 0.0
        %v3569 = vmax.f32 %v3281, 0.0
        %v3570 = vmax.f32 %v3284, 0.0
        %v3571 = vmax.f32 %v3289, 0.0
        %v3572 = vmax.f32 %v3292, 0.0
        %v3573 = vmax.f32 %v3297, 0.0
        %v3574 = vmax.f32 %v3300, 0.0
        %v3575 = vmax.f32 %v3305, 0.0
        %v3576 = vmax.f32 %v3308, 0.0
        %v3577 = vmax.f32 %v3313, 0.0
        %v3578 = vmax.f32 %v3316, 0.0
        %v3579 = vmax.f32 %v3321, 0.0
        %v3580 = vmax.f32 %v3324, 0.0
        %v3581 = vmax.f32 %v3329, 0.0
        %v3582 = vmax.f32 %v3332, 0.0
        %v3583 = vmax.f32 %v3337, 0.0
        %v3584 = vmax.f32 %v3340, 0.0
        %v3585 = vmax.f32 %v3345, 0.0
        %v3586 = vmax.f32 %v3348, 0.0
        %v3587 = vmax.f32 %v3353, 0.0
        %v3588 = vmax.f32 %v3356, 0.0
        %v3589 = vmax.f32 %v3361, 0.0
        %v3590 = vmax.f32 %v3364, 0.0
        %v3591 = vmax.f32 %v3369, 0.0
        %v3592 = vmax.f32 %v3372, 0.0
        %v3593 = vmax.f32 %v3377, 0.0
        %v3594 = vmax.f32 %v3380, 0.0
        %v3595 = vmax.f32 %v3385, 0.0
        %v3596 = vmax.f32 %v3388, 0.0
        %v3597 = vmax.f32 %v3393, 0.0
        %v3598 = vmax.f32 %v3396, 0.0
        %v3599 = vmax.f32 %v3401, 0.0
        %v3600 = vmax.f32 %v3404, 0.0
        %v3601 = vmax.f32 %v3409, 0.0
        %v3602 = vmax.f32 %v3412, 0.0
        %v3603 = vmax.f32 %v3417, 0.0
        %v3604 = vmax.f32 %v3420, 0.0
        %v3605 = vmax.f32 %v3425, 0.0
        %v3606 = vmax.f32 %v3428, 0.0
        %v3607 = vmax.f32 %v3433, 0.0
        %v3608 = vmax.f32 %v3436, 0.0
        %v3609 = vmax.f32 %v3441, 0.0
        %v3610 = vmax.f32 %v3444, 0.0
        %v3611 = vmax.f32 %v3449, 0.0
        %v3612 = vmax.f32 %v3452, 0.0
        %v3613 = vmax.f32 %v3457, 0.0
        %v3614 = vmax.f32 %v3460, 0.0
        %v3615 = vmax.f32 %v3465, 0.0
        %v3616 = vmax.f32 %v3468, 0.0
        %v3617 = vmax.f32 %v3473, 0.0
        %v3618 = vmax.f32 %v3476, 0.0
        %v3619 = vmax.f32 %v3481, 0.0
        %v3620 = vmax.f32 %v3484, 0.0
        %v3621 = vmax.f32 %v3489, 0.0
        %v3622 = vmax.f32 %v3492, 0.0
        %v3623 = vld [vmem:[#allocation2] sm:$0x3]
        %v3624 = vadd.f32 %v3495, %v3496
        %v3625 = vadd.f32 %v3624, %v3497
        %v3626 = vadd.f32 %v3625, %v3498
        %v3627 = vadd.f32 %v3626, %v3499
        %v3628 = vadd.f32 %v3627, %v3500
        %v3629 = vadd.f32 %v3628, %v3501
        %v3630 = vadd.f32 %v3629, %v3502
        %v3631 = vadd.f32 %v3630, %v3503
        %v3632 = vadd.f32 %v3631, %v3504
        %v3633 = vadd.f32 %v3632, %v3505
        %v3634 = vadd.f32 %v3633, %v3506
        %v3635 = vadd.f32 %v3634, %v3507
        %v3636 = vadd.f32 %v3635, %v3508
        %v3637 = vadd.f32 %v3636, %v3509
        %v3638 = vadd.f32 %v3637, %v3510
        %v3639 = vadd.f32 %v3638, %v3511
        %v3640 = vadd.f32 %v3639, %v3512
        %v3641 = vadd.f32 %v3640, %v3513
        %v3642 = vadd.f32 %v3641, %v3514
        %v3643 = vadd.f32 %v3642, %v3515
        %v3644 = vadd.f32 %v3643, %v3516
        %v3645 = vadd.f32 %v3644, %v3517
        %v3646 = vadd.f32 %v3645, %v3518
        %v3647 = vadd.f32 %v3646, %v3519
        %v3648 = vadd.f32 %v3647, %v3520
        %v3649 = vadd.f32 %v3648, %v3521
        %v3650 = vadd.f32 %v3649, %v3522
        %v3651 = vadd.f32 %v3650, %v3523
        %v3652 = vadd.f32 %v3651, %v3524
        %v3653 = vadd.f32 %v3652, %v3525
        %v3654 = vadd.f32 %v3653, %v3526
        %v3655 = vadd.f32 %v3654, %v3527
        %v3656 = vadd.f32 %v3655, %v3528
        %v3657 = vadd.f32 %v3656, %v3529
        %v3658 = vadd.f32 %v3657, %v3530
        %v3659 = vadd.f32 %v3658, %v3531
        %v3660 = vadd.f32 %v3659, %v3532
        %v3661 = vadd.f32 %v3660, %v3533
        %v3662 = vadd.f32 %v3661, %v3534
        %v3663 = vadd.f32 %v3662, %v3535
        %v3664 = vadd.f32 %v3663, %v3536
        %v3665 = vadd.f32 %v3664, %v3537
        %v3666 = vadd.f32 %v3665, %v3538
        %v3667 = vadd.f32 %v3666, %v3539
        %v3668 = vadd.f32 %v3667, %v3540
        %v3669 = vadd.f32 %v3668, %v3541
        %v3670 = vadd.f32 %v3669, %v3542
        %v3671 = vadd.f32 %v3670, %v3543
        %v3672 = vadd.f32 %v3671, %v3544
        %v3673 = vadd.f32 %v3672, %v3545
        %v3674 = vadd.f32 %v3673, %v3546
        %v3675 = vadd.f32 %v3674, %v3547
        %v3676 = vadd.f32 %v3675, %v3548
        %v3677 = vadd.f32 %v3676, %v3549
        %v3678 = vadd.f32 %v3677, %v3550
        %v3679 = vadd.f32 %v3678, %v3551
        %v3680 = vadd.f32 %v3679, %v3552
        %v3681 = vadd.f32 %v3680, %v3553
        %v3682 = vadd.f32 %v3681, %v3554
        %v3683 = vadd.f32 %v3682, %v3555
        %v3684 = vadd.f32 %v3683, %v3556
        %v3685 = vadd.f32 %v3684, %v3557
        %v3686 = vadd.f32 %v3685, %v3558
        %v3687 = vrot.slane %v3686, 4
        %v3688 = vadd.f32 %v3686, %v3687
        %v3689 = vrot.slane %v3688, 2
        %v3690 = vadd.f32 %v3688, %v3689
        %v3691 = vrot.slane %v3690, 1
        %v3692 = vadd.f32 %v3690, %v3691
        %v3693 = vadd.f32 %v3559, %v3560
        %v3694 = vadd.f32 %v3693, %v3561
        %v3695 = vadd.f32 %v3694, %v3562
        %v3696 = vadd.f32 %v3695, %v3563
        %v3697 = vadd.f32 %v3696, %v3564
        %v3698 = vadd.f32 %v3697, %v3565
        %v3699 = vadd.f32 %v3698, %v3566
        %v3700 = vadd.f32 %v3699, %v3567
        %v3701 = vadd.f32 %v3700, %v3568
        %v3702 = vadd.f32 %v3701, %v3569
        %v3703 = vadd.f32 %v3702, %v3570
        %v3704 = vadd.f32 %v3703, %v3571
        %v3705 = vadd.f32 %v3704, %v3572
        %v3706 = vadd.f32 %v3705, %v3573
        %v3707 = vadd.f32 %v3706, %v3574
        %v3708 = vadd.f32 %v3707, %v3575
        %v3709 = vadd.f32 %v3708, %v3576
        %v3710 = vadd.f32 %v3709, %v3577
        %v3711 = vadd.f32 %v3710, %v3578
        %v3712 = vadd.f32 %v3711, %v3579
        %v3713 = vadd.f32 %v3712, %v3580
        %v3714 = vadd.f32 %v3713, %v3581
        %v3715 = vadd.f32 %v3714, %v3582
        %v3716 = vadd.f32 %v3715, %v3583
        %v3717 = vadd.f32 %v3716, %v3584
        %v3718 = vadd.f32 %v3717, %v3585
        %v3719 = vadd.f32 %v3718, %v3586
        %v3720 = vadd.f32 %v3719, %v3587
        %v3721 = vadd.f32 %v3720, %v3588
        %v3722 = vadd.f32 %v3721, %v3589
        %v3723 = vadd.f32 %v3722, %v3590
        %v3724 = vadd.f32 %v3723, %v3591
        %v3725 = vadd.f32 %v3724, %v3592
        %v3726 = vadd.f32 %v3725, %v3593
        %v3727 = vadd.f32 %v3726, %v3594
        %v3728 = vadd.f32 %v3727, %v3595
        %v3729 = vadd.f32 %v3728, %v3596
        %v3730 = vadd.f32 %v3729, %v3597
        %v3731 = vadd.f32 %v3730, %v3598
        %v3732 = vadd.f32 %v3731, %v3599
        %v3733 = vadd.f32 %v3732, %v3600
        %v3734 = vadd.f32 %v3733, %v3601
        %v3735 = vadd.f32 %v3734, %v3602
        %v3736 = vadd.f32 %v3735, %v3603
        %v3737 = vadd.f32 %v3736, %v3604
        %v3738 = vadd.f32 %v3737, %v3605
        %v3739 = vadd.f32 %v3738, %v3606
        %v3740 = vadd.f32 %v3739, %v3607
        %v3741 = vadd.f32 %v3740, %v3608
        %v3742 = vadd.f32 %v3741, %v3609
        %v3743 = vadd.f32 %v3742, %v3610
        %v3744 = vadd.f32 %v3743, %v3611
        %v3745 = vadd.f32 %v3744, %v3612
        %v3746 = vadd.f32 %v3745, %v3613
        %v3747 = vadd.f32 %v3746, %v3614
        %v3748 = vadd.f32 %v3747, %v3615
        %v3749 = vadd.f32 %v3748, %v3616
        %v3750 = vadd.f32 %v3749, %v3617
        %v3751 = vadd.f32 %v3750, %v3618
        %v3752 = vadd.f32 %v3751, %v3619
        %v3753 = vadd.f32 %v3752, %v3620
        %v3754 = vadd.f32 %v3753, %v3621
        %v3755 = vadd.f32 %v3754, %v3622
        %v3756 = vrot.slane %v3755, 4
        %v3757 = vadd.f32 %v3755, %v3756
        %v3758 = vrot.slane %v3757, 2
        %v3759 = vadd.f32 %v3757, %v3758
        %v3760 = vrot.slane %v3759, 1
        %v3761 = vadd.f32 %v3759, %v3760
        %vm3764 = vcmask 1041409
        %v3765 = vsel %vm3764, %v3761, %v3692
        %v3767 = vadd.f32 %v3623, %v3765
        %3768 = vst [vmem:[#allocation2] sm:$0x3] %v3767
        %p3769 = scmp.eq.s32.totalorder %s32, 1
        // Predicated region
        $region130: #{tpu_custom_call.1} parent=108 // pred_check
          %p3770 = pneg %p3769
        $region131: #{tpu_custom_call.1} parent=108 // pred_check_branch
          %3772 = sbr.rel (%p3770) target = $region133
        $region132: #{tpu_custom_call.1} parent=108 // pred_region
          %v3773 = vld [vmem:[#allocation2] sm:$0x3]
          %v3774 = vmul.f32 %v3773, 0.0009765625
          %v3775 = vpack.c.bf16 %v3774, %v3774
          %v3776 = vld [vmem:[%s4] sm:$0xff]
          %v3777 = vld [vmem:[%s4 + $0x8] sm:$0xff]
          %v3778 = vld [vmem:[%s4 + $0x10] sm:$0xff]
          %v3779 = vld [vmem:[%s4 + $0x18] sm:$0xff]
          %v3780 = vld [vmem:[%s4 + $0x20] sm:$0xff]
          %v3781 = vld [vmem:[%s4 + $0x28] sm:$0xff]
          %v3782 = vld [vmem:[%s4 + $0x30] sm:$0xff]
          %v3783 = vld [vmem:[%s4 + $0x38] sm:$0xff]
          %v3784 = vld [vmem:[%s4 + $0x40] sm:$0xff]
          %v3785 = vld [vmem:[%s4 + $0x48] sm:$0xff]
          %v3786 = vld [vmem:[%s4 + $0x50] sm:$0xff]
          %v3787 = vld [vmem:[%s4 + $0x58] sm:$0xff]
          %v3788 = vld [vmem:[%s4 + $0x60] sm:$0xff]
          %v3789 = vld [vmem:[%s4 + $0x68] sm:$0xff]
          %v3790 = vld [vmem:[%s4 + $0x70] sm:$0xff]
          %v3791 = vld [vmem:[%s4 + $0x78] sm:$0xff]
          %v3792 = vld [vmem:[%s4 + $0x80] sm:$0xff]
          %v3793 = vld [vmem:[%s4 + $0x88] sm:$0xff]
          %v3794 = vld [vmem:[%s4 + $0x90] sm:$0xff]
          %v3795 = vld [vmem:[%s4 + $0x98] sm:$0xff]
          %v3796 = vld [vmem:[%s4 + $0xa0] sm:$0xff]
          %v3797 = vld [vmem:[%s4 + $0xa8] sm:$0xff]
          %v3798 = vld [vmem:[%s4 + $0xb0] sm:$0xff]
          %v3799 = vld [vmem:[%s4 + $0xb8] sm:$0xff]
          %v3800 = vld [vmem:[%s4 + $0xc0] sm:$0xff]
          %v3801 = vld [vmem:[%s4 + $0xc8] sm:$0xff]
          %v3802 = vld [vmem:[%s4 + $0xd0] sm:$0xff]
          %v3803 = vld [vmem:[%s4 + $0xd8] sm:$0xff]
          %v3804 = vld [vmem:[%s4 + $0xe0] sm:$0xff]
          %v3805 = vld [vmem:[%s4 + $0xe8] sm:$0xff]
          %v3806 = vld [vmem:[%s4 + $0xf0] sm:$0xff]
          %v3807 = vld [vmem:[%s4 + $0xf8] sm:$0xff]
          %v3808 = vld [vmem:[%s4 + $0x100] sm:$0xff]
          %v3809 = vld [vmem:[%s4 + $0x108] sm:$0xff]
          %v3810 = vld [vmem:[%s4 + $0x110] sm:$0xff]
          %v3811 = vld [vmem:[%s4 + $0x118] sm:$0xff]
          %v3812 = vld [vmem:[%s4 + $0x120] sm:$0xff]
          %v3813 = vld [vmem:[%s4 + $0x128] sm:$0xff]
          %v3814 = vld [vmem:[%s4 + $0x130] sm:$0xff]
          %v3815 = vld [vmem:[%s4 + $0x138] sm:$0xff]
          %v3816 = vld [vmem:[%s4 + $0x140] sm:$0xff]
          %v3817 = vld [vmem:[%s4 + $0x148] sm:$0xff]
          %v3818 = vld [vmem:[%s4 + $0x150] sm:$0xff]
          %v3819 = vld [vmem:[%s4 + $0x158] sm:$0xff]
          %v3820 = vld [vmem:[%s4 + $0x160] sm:$0xff]
          %v3821 = vld [vmem:[%s4 + $0x168] sm:$0xff]
          %v3822 = vld [vmem:[%s4 + $0x170] sm:$0xff]
          %v3823 = vld [vmem:[%s4 + $0x178] sm:$0xff]
          %v3824 = vld [vmem:[%s4 + $0x180] sm:$0xff]
          %v3825 = vld [vmem:[%s4 + $0x188] sm:$0xff]
          %v3826 = vld [vmem:[%s4 + $0x190] sm:$0xff]
          %v3827 = vld [vmem:[%s4 + $0x198] sm:$0xff]
          %v3828 = vld [vmem:[%s4 + $0x1a0] sm:$0xff]
          %v3829 = vld [vmem:[%s4 + $0x1a8] sm:$0xff]
          %v3830 = vld [vmem:[%s4 + $0x1b0] sm:$0xff]
          %v3831 = vld [vmem:[%s4 + $0x1b8] sm:$0xff]
          %v3832 = vld [vmem:[%s4 + $0x1c0] sm:$0xff]
          %v3833 = vld [vmem:[%s4 + $0x1c8] sm:$0xff]
          %v3834 = vld [vmem:[%s4 + $0x1d0] sm:$0xff]
          %v3835 = vld [vmem:[%s4 + $0x1d8] sm:$0xff]
          %v3836 = vld [vmem:[%s4 + $0x1e0] sm:$0xff]
          %v3837 = vld [vmem:[%s4 + $0x1e8] sm:$0xff]
          %v3838 = vld [vmem:[%s4 + $0x1f0] sm:$0xff]
          %v3839 = vld [vmem:[%s4 + $0x1f8] sm:$0xff]
          %v3840 = vld [vmem:[%s4 + $0x200] sm:$0xff]
          %v3841 = vld [vmem:[%s4 + $0x208] sm:$0xff]
          %v3842 = vld [vmem:[%s4 + $0x210] sm:$0xff]
          %v3843 = vld [vmem:[%s4 + $0x218] sm:$0xff]
          %v3844 = vld [vmem:[%s4 + $0x220] sm:$0xff]
          %v3845 = vld [vmem:[%s4 + $0x228] sm:$0xff]
          %v3846 = vld [vmem:[%s4 + $0x230] sm:$0xff]
          %v3847 = vld [vmem:[%s4 + $0x238] sm:$0xff]
          %v3848 = vld [vmem:[%s4 + $0x240] sm:$0xff]
          %v3849 = vld [vmem:[%s4 + $0x248] sm:$0xff]
          %v3850 = vld [vmem:[%s4 + $0x250] sm:$0xff]
          %v3851 = vld [vmem:[%s4 + $0x258] sm:$0xff]
          %v3852 = vld [vmem:[%s4 + $0x260] sm:$0xff]
          %v3853 = vld [vmem:[%s4 + $0x268] sm:$0xff]
          %v3854 = vld [vmem:[%s4 + $0x270] sm:$0xff]
          %v3855 = vld [vmem:[%s4 + $0x278] sm:$0xff]
          %v3856 = vld [vmem:[%s4 + $0x280] sm:$0xff]
          %v3857 = vld [vmem:[%s4 + $0x288] sm:$0xff]
          %v3858 = vld [vmem:[%s4 + $0x290] sm:$0xff]
          %v3859 = vld [vmem:[%s4 + $0x298] sm:$0xff]
          %v3860 = vld [vmem:[%s4 + $0x2a0] sm:$0xff]
          %v3861 = vld [vmem:[%s4 + $0x2a8] sm:$0xff]
          %v3862 = vld [vmem:[%s4 + $0x2b0] sm:$0xff]
          %v3863 = vld [vmem:[%s4 + $0x2b8] sm:$0xff]
          %v3864 = vld [vmem:[%s4 + $0x2c0] sm:$0xff]
          %v3865 = vld [vmem:[%s4 + $0x2c8] sm:$0xff]
          %v3866 = vld [vmem:[%s4 + $0x2d0] sm:$0xff]
          %v3867 = vld [vmem:[%s4 + $0x2d8] sm:$0xff]
          %v3868 = vld [vmem:[%s4 + $0x2e0] sm:$0xff]
          %v3869 = vld [vmem:[%s4 + $0x2e8] sm:$0xff]
          %v3870 = vld [vmem:[%s4 + $0x2f0] sm:$0xff]
          %v3871 = vld [vmem:[%s4 + $0x2f8] sm:$0xff]
          %v3872 = vld [vmem:[%s4 + $0x300] sm:$0xff]
          %v3873 = vld [vmem:[%s4 + $0x308] sm:$0xff]
          %v3874 = vld [vmem:[%s4 + $0x310] sm:$0xff]
          %v3875 = vld [vmem:[%s4 + $0x318] sm:$0xff]
          %v3876 = vld [vmem:[%s4 + $0x320] sm:$0xff]
          %v3877 = vld [vmem:[%s4 + $0x328] sm:$0xff]
          %v3878 = vld [vmem:[%s4 + $0x330] sm:$0xff]
          %v3879 = vld [vmem:[%s4 + $0x338] sm:$0xff]
          %v3880 = vld [vmem:[%s4 + $0x340] sm:$0xff]
          %v3881 = vld [vmem:[%s4 + $0x348] sm:$0xff]
          %v3882 = vld [vmem:[%s4 + $0x350] sm:$0xff]
          %v3883 = vld [vmem:[%s4 + $0x358] sm:$0xff]
          %v3884 = vld [vmem:[%s4 + $0x360] sm:$0xff]
          %v3885 = vld [vmem:[%s4 + $0x368] sm:$0xff]
          %v3886 = vld [vmem:[%s4 + $0x370] sm:$0xff]
          %v3887 = vld [vmem:[%s4 + $0x378] sm:$0xff]
          %v3888 = vld [vmem:[%s4 + $0x380] sm:$0xff]
          %v3889 = vld [vmem:[%s4 + $0x388] sm:$0xff]
          %v3890 = vld [vmem:[%s4 + $0x390] sm:$0xff]
          %v3891 = vld [vmem:[%s4 + $0x398] sm:$0xff]
          %v3892 = vld [vmem:[%s4 + $0x3a0] sm:$0xff]
          %v3893 = vld [vmem:[%s4 + $0x3a8] sm:$0xff]
          %v3894 = vld [vmem:[%s4 + $0x3b0] sm:$0xff]
          %v3895 = vld [vmem:[%s4 + $0x3b8] sm:$0xff]
          %v3896 = vld [vmem:[%s4 + $0x3c0] sm:$0xff]
          %v3897 = vld [vmem:[%s4 + $0x3c8] sm:$0xff]
          %v3898 = vld [vmem:[%s4 + $0x3d0] sm:$0xff]
          %v3899 = vld [vmem:[%s4 + $0x3d8] sm:$0xff]
          %v3900 = vld [vmem:[%s4 + $0x3e0] sm:$0xff]
          %v3901 = vld [vmem:[%s4 + $0x3e8] sm:$0xff]
          %v3902 = vld [vmem:[%s4 + $0x3f0] sm:$0xff]
          %v3903 = vld [vmem:[%s4 + $0x3f8] sm:$0xff]
          %v3904 = vld [vmem:[%s5] sm:$0xff]
          %v3905 = vld [vmem:[%s5 + $0x8] sm:$0xff]
          %v3908 = vlaneseq
          %v3909 = vshrl.u32 %v3908, 7
          %v3910 = vsub.s32 0, %v3909
          %v3911 = vrot.slane %v3904, %v3910
          %v3912 = vlaneseq
          %v3913 = vshrl.u32 %v3912, 7
          %v3914 = vsub.s32 1, %v3913
          %v3915 = vrot.slane %v3904, %v3914
          %v3916 = vlaneseq
          %v3917 = vshrl.u32 %v3916, 7
          %v3918 = vsub.s32 2, %v3917
          %v3919 = vrot.slane %v3904, %v3918
          %v3920 = vlaneseq
          %v3921 = vshrl.u32 %v3920, 7
          %v3922 = vsub.s32 3, %v3921
          %v3923 = vrot.slane %v3904, %v3922
          %v3924 = vlaneseq
          %v3925 = vshrl.u32 %v3924, 7
          %v3926 = vsub.s32 4, %v3925
          %v3927 = vrot.slane %v3904, %v3926
          %v3928 = vlaneseq
          %v3929 = vshrl.u32 %v3928, 7
          %v3930 = vsub.s32 5, %v3929
          %v3931 = vrot.slane %v3904, %v3930
          %v3932 = vlaneseq
          %v3933 = vshrl.u32 %v3932, 7
          %v3934 = vsub.s32 6, %v3933
          %v3935 = vrot.slane %v3904, %v3934
          %v3936 = vlaneseq
          %v3937 = vshrl.u32 %v3936, 7
          %v3938 = vsub.s32 7, %v3937
          %v3939 = vrot.slane %v3904, %v3938
          %v3940 = vlaneseq
          %v3941 = vshrl.u32 %v3940, 7
          %v3942 = vsub.s32 0, %v3941
          %v3943 = vrot.slane %v3905, %v3942
          %v3944 = vlaneseq
          %v3945 = vshrl.u32 %v3944, 7
          %v3946 = vsub.s32 1, %v3945
          %v3947 = vrot.slane %v3905, %v3946
          %v3948 = vlaneseq
          %v3949 = vshrl.u32 %v3948, 7
          %v3950 = vsub.s32 2, %v3949
          %v3951 = vrot.slane %v3905, %v3950
          %v3952 = vlaneseq
          %v3953 = vshrl.u32 %v3952, 7
          %v3954 = vsub.s32 3, %v3953
          %v3955 = vrot.slane %v3905, %v3954
          %v3956 = vlaneseq
          %v3957 = vshrl.u32 %v3956, 7
          %v3958 = vsub.s32 4, %v3957
          %v3959 = vrot.slane %v3905, %v3958
          %v3960 = vlaneseq
          %v3961 = vshrl.u32 %v3960, 7
          %v3962 = vsub.s32 5, %v3961
          %v3963 = vrot.slane %v3905, %v3962
          %v3964 = vlaneseq
          %v3965 = vshrl.u32 %v3964, 7
          %v3966 = vsub.s32 6, %v3965
          %v3967 = vrot.slane %v3905, %v3966
          %v3968 = vlaneseq
          %v3969 = vshrl.u32 %v3968, 7
          %v3970 = vsub.s32 7, %v3969
          %v3971 = vrot.slane %v3905, %v3970
          %v4116 = vunpack.c.l.b16 %v3776
          %v4117 = vunpack.c.h.b16 %v3776
          %v4118 = vunpack.c.l.b16 %v3777
          %v4119 = vunpack.c.h.b16 %v3777
          %v4120 = vunpack.c.l.b16 %v3778
          %v4121 = vunpack.c.h.b16 %v3778
          %v4122 = vunpack.c.l.b16 %v3779
          %v4123 = vunpack.c.h.b16 %v3779
          %v4124 = vunpack.c.l.b16 %v3780
          %v4125 = vunpack.c.h.b16 %v3780
          %v4126 = vunpack.c.l.b16 %v3781
          %v4127 = vunpack.c.h.b16 %v3781
          %v4128 = vunpack.c.l.b16 %v3782
          %v4129 = vunpack.c.h.b16 %v3782
          %v4130 = vunpack.c.l.b16 %v3783
          %v4131 = vunpack.c.h.b16 %v3783
          %v4132 = vunpack.c.l.b16 %v3784
          %v4133 = vunpack.c.h.b16 %v3784
          %v4134 = vunpack.c.l.b16 %v3785
          %v4135 = vunpack.c.h.b16 %v3785
          %v4136 = vunpack.c.l.b16 %v3786
          %v4137 = vunpack.c.h.b16 %v3786
          %v4138 = vunpack.c.l.b16 %v3787
          %v4139 = vunpack.c.h.b16 %v3787
          %v4140 = vunpack.c.l.b16 %v3788
          %v4141 = vunpack.c.h.b16 %v3788
          %v4142 = vunpack.c.l.b16 %v3789
          %v4143 = vunpack.c.h.b16 %v3789
          %v4144 = vunpack.c.l.b16 %v3790
          %v4145 = vunpack.c.h.b16 %v3790
          %v4146 = vunpack.c.l.b16 %v3791
          %v4147 = vunpack.c.h.b16 %v3791
          %v4148 = vunpack.c.l.b16 %v3792
          %v4149 = vunpack.c.h.b16 %v3792
          %v4150 = vunpack.c.l.b16 %v3793
          %v4151 = vunpack.c.h.b16 %v3793
          %v4152 = vunpack.c.l.b16 %v3794
          %v4153 = vunpack.c.h.b16 %v3794
          %v4154 = vunpack.c.l.b16 %v3795
          %v4155 = vunpack.c.h.b16 %v3795
          %v4156 = vunpack.c.l.b16 %v3796
          %v4157 = vunpack.c.h.b16 %v3796
          %v4158 = vunpack.c.l.b16 %v3797
          %v4159 = vunpack.c.h.b16 %v3797
          %v4160 = vunpack.c.l.b16 %v3798
          %v4161 = vunpack.c.h.b16 %v3798
          %v4162 = vunpack.c.l.b16 %v3799
          %v4163 = vunpack.c.h.b16 %v3799
          %v4164 = vunpack.c.l.b16 %v3800
          %v4165 = vunpack.c.h.b16 %v3800
          %v4166 = vunpack.c.l.b16 %v3801
          %v4167 = vunpack.c.h.b16 %v3801
          %v4168 = vunpack.c.l.b16 %v3802
          %v4169 = vunpack.c.h.b16 %v3802
          %v4170 = vunpack.c.l.b16 %v3803
          %v4171 = vunpack.c.h.b16 %v3803
          %v4172 = vunpack.c.l.b16 %v3804
          %v4173 = vunpack.c.h.b16 %v3804
          %v4174 = vunpack.c.l.b16 %v3805
          %v4175 = vunpack.c.h.b16 %v3805
          %v4176 = vunpack.c.l.b16 %v3806
          %v4177 = vunpack.c.h.b16 %v3806
          %v4178 = vunpack.c.l.b16 %v3807
          %v4179 = vunpack.c.h.b16 %v3807
          %v4180 = vunpack.c.l.b16 %v3808
          %v4181 = vunpack.c.h.b16 %v3808
          %v4182 = vunpack.c.l.b16 %v3809
          %v4183 = vunpack.c.h.b16 %v3809
          %v4184 = vunpack.c.l.b16 %v3810
          %v4185 = vunpack.c.h.b16 %v3810
          %v4186 = vunpack.c.l.b16 %v3811
          %v4187 = vunpack.c.h.b16 %v3811
          %v4188 = vunpack.c.l.b16 %v3812
          %v4189 = vunpack.c.h.b16 %v3812
          %v4190 = vunpack.c.l.b16 %v3813
          %v4191 = vunpack.c.h.b16 %v3813
          %v4192 = vunpack.c.l.b16 %v3814
          %v4193 = vunpack.c.h.b16 %v3814
          %v4194 = vunpack.c.l.b16 %v3815
          %v4195 = vunpack.c.h.b16 %v3815
          %v4196 = vunpack.c.l.b16 %v3816
          %v4197 = vunpack.c.h.b16 %v3816
          %v4198 = vunpack.c.l.b16 %v3817
          %v4199 = vunpack.c.h.b16 %v3817
          %v4200 = vunpack.c.l.b16 %v3818
          %v4201 = vunpack.c.h.b16 %v3818
          %v4202 = vunpack.c.l.b16 %v3819
          %v4203 = vunpack.c.h.b16 %v3819
          %v4204 = vunpack.c.l.b16 %v3820
          %v4205 = vunpack.c.h.b16 %v3820
          %v4206 = vunpack.c.l.b16 %v3821
          %v4207 = vunpack.c.h.b16 %v3821
          %v4208 = vunpack.c.l.b16 %v3822
          %v4209 = vunpack.c.h.b16 %v3822
          %v4210 = vunpack.c.l.b16 %v3823
          %v4211 = vunpack.c.h.b16 %v3823
          %v4212 = vunpack.c.l.b16 %v3824
          %v4213 = vunpack.c.h.b16 %v3824
          %v4214 = vunpack.c.l.b16 %v3825
          %v4215 = vunpack.c.h.b16 %v3825
          %v4216 = vunpack.c.l.b16 %v3826
          %v4217 = vunpack.c.h.b16 %v3826
          %v4218 = vunpack.c.l.b16 %v3827
          %v4219 = vunpack.c.h.b16 %v3827
          %v4220 = vunpack.c.l.b16 %v3828
          %v4221 = vunpack.c.h.b16 %v3828
          %v4222 = vunpack.c.l.b16 %v3829
          %v4223 = vunpack.c.h.b16 %v3829
          %v4224 = vunpack.c.l.b16 %v3830
          %v4225 = vunpack.c.h.b16 %v3830
          %v4226 = vunpack.c.l.b16 %v3831
          %v4227 = vunpack.c.h.b16 %v3831
          %v4228 = vunpack.c.l.b16 %v3832
          %v4229 = vunpack.c.h.b16 %v3832
          %v4230 = vunpack.c.l.b16 %v3833
          %v4231 = vunpack.c.h.b16 %v3833
          %v4232 = vunpack.c.l.b16 %v3834
          %v4233 = vunpack.c.h.b16 %v3834
          %v4234 = vunpack.c.l.b16 %v3835
          %v4235 = vunpack.c.h.b16 %v3835
          %v4236 = vunpack.c.l.b16 %v3836
          %v4237 = vunpack.c.h.b16 %v3836
          %v4238 = vunpack.c.l.b16 %v3837
          %v4239 = vunpack.c.h.b16 %v3837
          %v4240 = vunpack.c.l.b16 %v3838
          %v4241 = vunpack.c.h.b16 %v3838
          %v4242 = vunpack.c.l.b16 %v3839
          %v4243 = vunpack.c.h.b16 %v3839
          %v4244 = vunpack.c.l.b16 %v3840
          %v4245 = vunpack.c.h.b16 %v3840
          %v4246 = vunpack.c.l.b16 %v3841
          %v4247 = vunpack.c.h.b16 %v3841
          %v4248 = vunpack.c.l.b16 %v3842
          %v4249 = vunpack.c.h.b16 %v3842
          %v4250 = vunpack.c.l.b16 %v3843
          %v4251 = vunpack.c.h.b16 %v3843
          %v4252 = vunpack.c.l.b16 %v3844
          %v4253 = vunpack.c.h.b16 %v3844
          %v4254 = vunpack.c.l.b16 %v3845
          %v4255 = vunpack.c.h.b16 %v3845
          %v4256 = vunpack.c.l.b16 %v3846
          %v4257 = vunpack.c.h.b16 %v3846
          %v4258 = vunpack.c.l.b16 %v3847
          %v4259 = vunpack.c.h.b16 %v3847
          %v4260 = vunpack.c.l.b16 %v3848
          %v4261 = vunpack.c.h.b16 %v3848
          %v4262 = vunpack.c.l.b16 %v3849
          %v4263 = vunpack.c.h.b16 %v3849
          %v4264 = vunpack.c.l.b16 %v3850
          %v4265 = vunpack.c.h.b16 %v3850
          %v4266 = vunpack.c.l.b16 %v3851
          %v4267 = vunpack.c.h.b16 %v3851
          %v4268 = vunpack.c.l.b16 %v3852
          %v4269 = vunpack.c.h.b16 %v3852
          %v4270 = vunpack.c.l.b16 %v3853
          %v4271 = vunpack.c.h.b16 %v3853
          %v4272 = vunpack.c.l.b16 %v3854
          %v4273 = vunpack.c.h.b16 %v3854
          %v4274 = vunpack.c.l.b16 %v3855
          %v4275 = vunpack.c.h.b16 %v3855
          %v4276 = vunpack.c.l.b16 %v3856
          %v4277 = vunpack.c.h.b16 %v3856
          %v4278 = vunpack.c.l.b16 %v3857
          %v4279 = vunpack.c.h.b16 %v3857
          %v4280 = vunpack.c.l.b16 %v3858
          %v4281 = vunpack.c.h.b16 %v3858
          %v4282 = vunpack.c.l.b16 %v3859
          %v4283 = vunpack.c.h.b16 %v3859
          %v4284 = vunpack.c.l.b16 %v3860
          %v4285 = vunpack.c.h.b16 %v3860
          %v4286 = vunpack.c.l.b16 %v3861
          %v4287 = vunpack.c.h.b16 %v3861
          %v4288 = vunpack.c.l.b16 %v3862
          %v4289 = vunpack.c.h.b16 %v3862
          %v4290 = vunpack.c.l.b16 %v3863
          %v4291 = vunpack.c.h.b16 %v3863
          %v4292 = vunpack.c.l.b16 %v3864
          %v4293 = vunpack.c.h.b16 %v3864
          %v4294 = vunpack.c.l.b16 %v3865
          %v4295 = vunpack.c.h.b16 %v3865
          %v4296 = vunpack.c.l.b16 %v3866
          %v4297 = vunpack.c.h.b16 %v3866
          %v4298 = vunpack.c.l.b16 %v3867
          %v4299 = vunpack.c.h.b16 %v3867
          %v4300 = vunpack.c.l.b16 %v3868
          %v4301 = vunpack.c.h.b16 %v3868
          %v4302 = vunpack.c.l.b16 %v3869
          %v4303 = vunpack.c.h.b16 %v3869
          %v4304 = vunpack.c.l.b16 %v3870
          %v4305 = vunpack.c.h.b16 %v3870
          %v4306 = vunpack.c.l.b16 %v3871
          %v4307 = vunpack.c.h.b16 %v3871
          %v4308 = vunpack.c.l.b16 %v3872
          %v4309 = vunpack.c.h.b16 %v3872
          %v4310 = vunpack.c.l.b16 %v3873
          %v4311 = vunpack.c.h.b16 %v3873
          %v4312 = vunpack.c.l.b16 %v3874
          %v4313 = vunpack.c.h.b16 %v3874
          %v4314 = vunpack.c.l.b16 %v3875
          %v4315 = vunpack.c.h.b16 %v3875
          %v4316 = vunpack.c.l.b16 %v3876
          %v4317 = vunpack.c.h.b16 %v3876
          %v4318 = vunpack.c.l.b16 %v3877
          %v4319 = vunpack.c.h.b16 %v3877
          %v4320 = vunpack.c.l.b16 %v3878
          %v4321 = vunpack.c.h.b16 %v3878
          %v4322 = vunpack.c.l.b16 %v3879
          %v4323 = vunpack.c.h.b16 %v3879
          %v4324 = vunpack.c.l.b16 %v3880
          %v4325 = vunpack.c.h.b16 %v3880
          %v4326 = vunpack.c.l.b16 %v3881
          %v4327 = vunpack.c.h.b16 %v3881
          %v4328 = vunpack.c.l.b16 %v3882
          %v4329 = vunpack.c.h.b16 %v3882
          %v4330 = vunpack.c.l.b16 %v3883
          %v4331 = vunpack.c.h.b16 %v3883
          %v4332 = vunpack.c.l.b16 %v3884
          %v4333 = vunpack.c.h.b16 %v3884
          %v4334 = vunpack.c.l.b16 %v3885
          %v4335 = vunpack.c.h.b16 %v3885
          %v4336 = vunpack.c.l.b16 %v3886
          %v4337 = vunpack.c.h.b16 %v3886
          %v4338 = vunpack.c.l.b16 %v3887
          %v4339 = vunpack.c.h.b16 %v3887
          %v4340 = vunpack.c.l.b16 %v3888
          %v4341 = vunpack.c.h.b16 %v3888
          %v4342 = vunpack.c.l.b16 %v3889
          %v4343 = vunpack.c.h.b16 %v3889
          %v4344 = vunpack.c.l.b16 %v3890
          %v4345 = vunpack.c.h.b16 %v3890
          %v4346 = vunpack.c.l.b16 %v3891
          %v4347 = vunpack.c.h.b16 %v3891
          %v4348 = vunpack.c.l.b16 %v3892
          %v4349 = vunpack.c.h.b16 %v3892
          %v4350 = vunpack.c.l.b16 %v3893
          %v4351 = vunpack.c.h.b16 %v3893
          %v4352 = vunpack.c.l.b16 %v3894
          %v4353 = vunpack.c.h.b16 %v3894
          %v4354 = vunpack.c.l.b16 %v3895
          %v4355 = vunpack.c.h.b16 %v3895
          %v4356 = vunpack.c.l.b16 %v3896
          %v4357 = vunpack.c.h.b16 %v3896
          %v4358 = vunpack.c.l.b16 %v3897
          %v4359 = vunpack.c.h.b16 %v3897
          %v4360 = vunpack.c.l.b16 %v3898
          %v4361 = vunpack.c.h.b16 %v3898
          %v4362 = vunpack.c.l.b16 %v3899
          %v4363 = vunpack.c.h.b16 %v3899
          %v4364 = vunpack.c.l.b16 %v3900
          %v4365 = vunpack.c.h.b16 %v3900
          %v4366 = vunpack.c.l.b16 %v3901
          %v4367 = vunpack.c.h.b16 %v3901
          %v4368 = vunpack.c.l.b16 %v3902
          %v4369 = vunpack.c.h.b16 %v3902
          %v4370 = vunpack.c.l.b16 %v3903
          %v4371 = vunpack.c.h.b16 %v3903
          %v4372 = vpack.c.b16 %v4132, %v4116
          %v4373 = vpack.c.b16 %v4133, %v4117
          %v4374 = vpack.c.b16 %v4134, %v4118
          %v4375 = vpack.c.b16 %v4135, %v4119
          %v4376 = vpack.c.b16 %v4136, %v4120
          %v4377 = vpack.c.b16 %v4137, %v4121
          %v4378 = vpack.c.b16 %v4138, %v4122
          %v4379 = vpack.c.b16 %v4139, %v4123
          %v4380 = vpack.c.b16 %v4140, %v4124
          %v4381 = vpack.c.b16 %v4141, %v4125
          %v4382 = vpack.c.b16 %v4142, %v4126
          %v4383 = vpack.c.b16 %v4143, %v4127
          %v4384 = vpack.c.b16 %v4144, %v4128
          %v4385 = vpack.c.b16 %v4145, %v4129
          %v4386 = vpack.c.b16 %v4146, %v4130
          %v4387 = vpack.c.b16 %v4147, %v4131
          %v4388 = vpack.c.b16 %v4164, %v4148
          %v4389 = vpack.c.b16 %v4165, %v4149
          %v4390 = vpack.c.b16 %v4166, %v4150
          %v4391 = vpack.c.b16 %v4167, %v4151
          %v4392 = vpack.c.b16 %v4168, %v4152
          %v4393 = vpack.c.b16 %v4169, %v4153
          %v4394 = vpack.c.b16 %v4170, %v4154
          %v4395 = vpack.c.b16 %v4171, %v4155
          %v4396 = vpack.c.b16 %v4172, %v4156
          %v4397 = vpack.c.b16 %v4173, %v4157
          %v4398 = vpack.c.b16 %v4174, %v4158
          %v4399 = vpack.c.b16 %v4175, %v4159
          %v4400 = vpack.c.b16 %v4176, %v4160
          %v4401 = vpack.c.b16 %v4177, %v4161
          %v4402 = vpack.c.b16 %v4178, %v4162
          %v4403 = vpack.c.b16 %v4179, %v4163
          %v4404 = vpack.c.b16 %v4196, %v4180
          %v4405 = vpack.c.b16 %v4197, %v4181
          %v4406 = vpack.c.b16 %v4198, %v4182
          %v4407 = vpack.c.b16 %v4199, %v4183
          %v4408 = vpack.c.b16 %v4200, %v4184
          %v4409 = vpack.c.b16 %v4201, %v4185
          %v4410 = vpack.c.b16 %v4202, %v4186
          %v4411 = vpack.c.b16 %v4203, %v4187
          %v4412 = vpack.c.b16 %v4204, %v4188
          %v4413 = vpack.c.b16 %v4205, %v4189
          %v4414 = vpack.c.b16 %v4206, %v4190
          %v4415 = vpack.c.b16 %v4207, %v4191
          %v4416 = vpack.c.b16 %v4208, %v4192
          %v4417 = vpack.c.b16 %v4209, %v4193
          %v4418 = vpack.c.b16 %v4210, %v4194
          %v4419 = vpack.c.b16 %v4211, %v4195
          %v4420 = vpack.c.b16 %v4228, %v4212
          %v4421 = vpack.c.b16 %v4229, %v4213
          %v4422 = vpack.c.b16 %v4230, %v4214
          %v4423 = vpack.c.b16 %v4231, %v4215
          %v4424 = vpack.c.b16 %v4232, %v4216
          %v4425 = vpack.c.b16 %v4233, %v4217
          %v4426 = vpack.c.b16 %v4234, %v4218
          %v4427 = vpack.c.b16 %v4235, %v4219
          %v4428 = vpack.c.b16 %v4236, %v4220
          %v4429 = vpack.c.b16 %v4237, %v4221
          %v4430 = vpack.c.b16 %v4238, %v4222
          %v4431 = vpack.c.b16 %v4239, %v4223
          %v4432 = vpack.c.b16 %v4240, %v4224
          %v4433 = vpack.c.b16 %v4241, %v4225
          %v4434 = vpack.c.b16 %v4242, %v4226
          %v4435 = vpack.c.b16 %v4243, %v4227
          %v4436 = vpack.c.b16 %v4260, %v4244
          %v4437 = vpack.c.b16 %v4261, %v4245
          %v4438 = vpack.c.b16 %v4262, %v4246
          %v4439 = vpack.c.b16 %v4263, %v4247
          %v4440 = vpack.c.b16 %v4264, %v4248
          %v4441 = vpack.c.b16 %v4265, %v4249
          %v4442 = vpack.c.b16 %v4266, %v4250
          %v4443 = vpack.c.b16 %v4267, %v4251
          %v4444 = vpack.c.b16 %v4268, %v4252
          %v4445 = vpack.c.b16 %v4269, %v4253
          %v4446 = vpack.c.b16 %v4270, %v4254
          %v4447 = vpack.c.b16 %v4271, %v4255
          %v4448 = vpack.c.b16 %v4272, %v4256
          %v4449 = vpack.c.b16 %v4273, %v4257
          %v4450 = vpack.c.b16 %v4274, %v4258
          %v4451 = vpack.c.b16 %v4275, %v4259
          %v4452 = vpack.c.b16 %v4292, %v4276
          %v4453 = vpack.c.b16 %v4293, %v4277
          %v4454 = vpack.c.b16 %v4294, %v4278
          %v4455 = vpack.c.b16 %v4295, %v4279
          %v4456 = vpack.c.b16 %v4296, %v4280
          %v4457 = vpack.c.b16 %v4297, %v4281
          %v4458 = vpack.c.b16 %v4298, %v4282
          %v4459 = vpack.c.b16 %v4299, %v4283
          %v4460 = vpack.c.b16 %v4300, %v4284
          %v4461 = vpack.c.b16 %v4301, %v4285
          %v4462 = vpack.c.b16 %v4302, %v4286
          %v4463 = vpack.c.b16 %v4303, %v4287
          %v4464 = vpack.c.b16 %v4304, %v4288
          %v4465 = vpack.c.b16 %v4305, %v4289
          %v4466 = vpack.c.b16 %v4306, %v4290
          %v4467 = vpack.c.b16 %v4307, %v4291
          %v4468 = vpack.c.b16 %v4324, %v4308
          %v4469 = vpack.c.b16 %v4325, %v4309
          %v4470 = vpack.c.b16 %v4326, %v4310
          %v4471 = vpack.c.b16 %v4327, %v4311
          %v4472 = vpack.c.b16 %v4328, %v4312
          %v4473 = vpack.c.b16 %v4329, %v4313
          %v4474 = vpack.c.b16 %v4330, %v4314
          %v4475 = vpack.c.b16 %v4331, %v4315
          %v4476 = vpack.c.b16 %v4332, %v4316
          %v4477 = vpack.c.b16 %v4333, %v4317
          %v4478 = vpack.c.b16 %v4334, %v4318
          %v4479 = vpack.c.b16 %v4335, %v4319
          %v4480 = vpack.c.b16 %v4336, %v4320
          %v4481 = vpack.c.b16 %v4337, %v4321
          %v4482 = vpack.c.b16 %v4338, %v4322
          %v4483 = vpack.c.b16 %v4339, %v4323
          %v4484 = vpack.c.b16 %v4356, %v4340
          %v4485 = vpack.c.b16 %v4357, %v4341
          %v4486 = vpack.c.b16 %v4358, %v4342
          %v4487 = vpack.c.b16 %v4359, %v4343
          %v4488 = vpack.c.b16 %v4360, %v4344
          %v4489 = vpack.c.b16 %v4361, %v4345
          %v4490 = vpack.c.b16 %v4362, %v4346
          %v4491 = vpack.c.b16 %v4363, %v4347
          %v4492 = vpack.c.b16 %v4364, %v4348
          %v4493 = vpack.c.b16 %v4365, %v4349
          %v4494 = vpack.c.b16 %v4366, %v4350
          %v4495 = vpack.c.b16 %v4367, %v4351
          %v4496 = vpack.c.b16 %v4368, %v4352
          %v4497 = vpack.c.b16 %v4369, %v4353
          %v4498 = vpack.c.b16 %v4370, %v4354
          %v4499 = vpack.c.b16 %v4371, %v4355
          %4628 = vmatprep.subr.bf16.mxu0 %v4373
          %4629 = vmatpush1.bf16.msra.mxu0 %v4372
          %4630 = vmatprep.subr.bf16.mxu0 %v4389
          %4631 = vmatpush1.bf16.msra.mxu0 %v4388
          %4632 = vmatprep.subr.bf16.mxu0 %v4405
          %4633 = vmatpush1.bf16.msra.mxu0 %v4404
          %4634 = vmatprep.subr.bf16.mxu0 %v4421
          %4635 = vmatpush1.bf16.msra.mxu0 %v4420
          %4636 = vmatprep.subr.bf16.mxu0 %v4437
          %4637 = vmatpush1.bf16.msra.mxu0 %v4436
          %4638 = vmatprep.subr.bf16.mxu0 %v4453
          %4639 = vmatpush1.bf16.msra.mxu0 %v4452
          %4640 = vmatprep.subr.bf16.mxu0 %v4469
          %4641 = vmatpush1.bf16.msra.mxu0 %v4468
          %4642 = vmatprep.subr.bf16.mxu0 %v4485
          %4643 = vmatpush1.bf16.msra.mxu0 %v4484
          %4644 = vmatprep.subr.bf16.mxu0 0
          %4645 = vmatpush1.bf16.msra.mxu0 0
          %4646 = vmatprep.subr.bf16.mxu0 0
          %4647 = vmatpush1.bf16.msra.mxu0 0
          %4648 = vmatprep.subr.bf16.mxu0 0
          %4649 = vmatpush1.bf16.msra.mxu0 0
          %4650 = vmatprep.subr.bf16.mxu0 0
          %4651 = vmatpush1.bf16.msra.mxu0 0
          %4652 = vmatprep.subr.bf16.mxu0 0
          %4653 = vmatpush1.bf16.msra.mxu0 0
          %4654 = vmatprep.subr.bf16.mxu0 0
          %4655 = vmatpush1.bf16.msra.mxu0 0
          %4656 = vmatprep.subr.bf16.mxu0 0
          %4657 = vmatpush1.bf16.msra.mxu0 0
          %4658 = vmatprep.subr.bf16.mxu0 0
          %4659 = vmatpush1.bf16.msra.mxu0 0
          %4660 = vmatprep.mubr.bf16.mxu0 0
          %4661 = vmatmul.mubr.bf16.gmra.mrb[0].mxu0 %v3775
          %v4662 = vpop.f32.mrb[0].mxu0
          %v4663 = vadd.f32 %v3911, %v4662
          %v4664 = vpop.f32.mrb[0].mxu0
          %v4665 = vadd.f32 %v3915, %v4664
          %v4666 = vpop.f32.mrb[0].mxu0
          %v4667 = vpop.f32.mrb[0].mxu0
          %4668 = vdwg.mxu0
          %4669 = vmatprep.subr.bf16.mxu0 %v4375
          %4670 = vmatpush1.bf16.msra.mxu0 %v4374
          %4671 = vmatprep.subr.bf16.mxu0 %v4391
          %4672 = vmatpush1.bf16.msra.mxu0 %v4390
          %4673 = vmatprep.subr.bf16.mxu0 %v4407
          %4674 = vmatpush1.bf16.msra.mxu0 %v4406
          %4675 = vmatprep.subr.bf16.mxu0 %v4423
          %4676 = vmatpush1.bf16.msra.mxu0 %v4422
          %4677 = vmatprep.subr.bf16.mxu0 %v4439
          %4678 = vmatpush1.bf16.msra.mxu0 %v4438
          %4679 = vmatprep.subr.bf16.mxu0 %v4455
          %4680 = vmatpush1.bf16.msra.mxu0 %v4454
          %4681 = vmatprep.subr.bf16.mxu0 %v4471
          %4682 = vmatpush1.bf16.msra.mxu0 %v4470
          %4683 = vmatprep.subr.bf16.mxu0 %v4487
          %4684 = vmatpush1.bf16.msra.mxu0 %v4486
          %4685 = vmatprep.subr.bf16.mxu0 0
          %4686 = vmatpush1.bf16.msra.mxu0 0
          %4687 = vmatprep.subr.bf16.mxu0 0
          %4688 = vmatpush1.bf16.msra.mxu0 0
          %4689 = vmatprep.subr.bf16.mxu0 0
          %4690 = vmatpush1.bf16.msra.mxu0 0
          %4691 = vmatprep.subr.bf16.mxu0 0
          %4692 = vmatpush1.bf16.msra.mxu0 0
          %4693 = vmatprep.subr.bf16.mxu0 0
          %4694 = vmatpush1.bf16.msra.mxu0 0
          %4695 = vmatprep.subr.bf16.mxu0 0
          %4696 = vmatpush1.bf16.msra.mxu0 0
          %4697 = vmatprep.subr.bf16.mxu0 0
          %4698 = vmatpush1.bf16.msra.mxu0 0
          %4699 = vmatprep.subr.bf16.mxu0 0
          %4700 = vmatpush1.bf16.msra.mxu0 0
          %4701 = vmatprep.mubr.bf16.mxu0 0
          %4702 = vmatmul.mubr.bf16.gmra.mrb[0].mxu0 %v3775
          %v4703 = vpop.f32.mrb[0].mxu0
          %v4704 = vadd.f32 %v3919, %v4703
          %v4705 = vpop.f32.mrb[0].mxu0
          %v4706 = vadd.f32 %v3923, %v4705
          %v4707 = vpop.f32.mrb[0].mxu0
          %v4708 = vpop.f32.mrb[0].mxu0
          %4709 = vdwg.mxu0
          %4710 = vmatprep.subr.bf16.mxu0 %v4377
          %4711 = vmatpush1.bf16.msra.mxu0 %v4376
          %4712 = vmatprep.subr.bf16.mxu0 %v4393
          %4713 = vmatpush1.bf16.msra.mxu0 %v4392
          %4714 = vmatprep.subr.bf16.mxu0 %v4409
          %4715 = vmatpush1.bf16.msra.mxu0 %v4408
          %4716 = vmatprep.subr.bf16.mxu0 %v4425
          %4717 = vmatpush1.bf16.msra.mxu0 %v4424
          %4718 = vmatprep.subr.bf16.mxu0 %v4441
          %4719 = vmatpush1.bf16.msra.mxu0 %v4440
          %4720 = vmatprep.subr.bf16.mxu0 %v4457
          %4721 = vmatpush1.bf16.msra.mxu0 %v4456
          %4722 = vmatprep.subr.bf16.mxu0 %v4473
          %4723 = vmatpush1.bf16.msra.mxu0 %v4472
          %4724 = vmatprep.subr.bf16.mxu0 %v4489
          %4725 = vmatpush1.bf16.msra.mxu0 %v4488
          %4726 = vmatprep.subr.bf16.mxu0 0
          %4727 = vmatpush1.bf16.msra.mxu0 0
          %4728 = vmatprep.subr.bf16.mxu0 0
          %4729 = vmatpush1.bf16.msra.mxu0 0
          %4730 = vmatprep.subr.bf16.mxu0 0
          %4731 = vmatpush1.bf16.msra.mxu0 0
          %4732 = vmatprep.subr.bf16.mxu0 0
          %4733 = vmatpush1.bf16.msra.mxu0 0
          %4734 = vmatprep.subr.bf16.mxu0 0
          %4735 = vmatpush1.bf16.msra.mxu0 0
          %4736 = vmatprep.subr.bf16.mxu0 0
          %4737 = vmatpush1.bf16.msra.mxu0 0
          %4738 = vmatprep.subr.bf16.mxu0 0
          %4739 = vmatpush1.bf16.msra.mxu0 0
          %4740 = vmatprep.subr.bf16.mxu0 0
          %4741 = vmatpush1.bf16.msra.mxu0 0
          %4742 = vmatprep.mubr.bf16.mxu0 0
          %4743 = vmatmul.mubr.bf16.gmra.mrb[0].mxu0 %v3775
          %v4744 = vpop.f32.mrb[0].mxu0
          %v4745 = vadd.f32 %v3927, %v4744
          %v4746 = vpop.f32.mrb[0].mxu0
          %v4747 = vadd.f32 %v3931, %v4746
          %v4748 = vpop.f32.mrb[0].mxu0
          %v4749 = vpop.f32.mrb[0].mxu0
          %4750 = vdwg.mxu0
          %4751 = vmatprep.subr.bf16.mxu0 %v4379
          %4752 = vmatpush1.bf16.msra.mxu0 %v4378
          %4753 = vmatprep.subr.bf16.mxu0 %v4395
          %4754 = vmatpush1.bf16.msra.mxu0 %v4394
          %4755 = vmatprep.subr.bf16.mxu0 %v4411
          %4756 = vmatpush1.bf16.msra.mxu0 %v4410
          %4757 = vmatprep.subr.bf16.mxu0 %v4427
          %4758 = vmatpush1.bf16.msra.mxu0 %v4426
          %4759 = vmatprep.subr.bf16.mxu0 %v4443
          %4760 = vmatpush1.bf16.msra.mxu0 %v4442
          %4761 = vmatprep.subr.bf16.mxu0 %v4459
          %4762 = vmatpush1.bf16.msra.mxu0 %v4458
          %4763 = vmatprep.subr.bf16.mxu0 %v4475
          %4764 = vmatpush1.bf16.msra.mxu0 %v4474
          %4765 = vmatprep.subr.bf16.mxu0 %v4491
          %4766 = vmatpush1.bf16.msra.mxu0 %v4490
          %4767 = vmatprep.subr.bf16.mxu0 0
          %4768 = vmatpush1.bf16.msra.mxu0 0
          %4769 = vmatprep.subr.bf16.mxu0 0
          %4770 = vmatpush1.bf16.msra.mxu0 0
          %4771 = vmatprep.subr.bf16.mxu0 0
          %4772 = vmatpush1.bf16.msra.mxu0 0
          %4773 = vmatprep.subr.bf16.mxu0 0
          %4774 = vmatpush1.bf16.msra.mxu0 0
          %4775 = vmatprep.subr.bf16.mxu0 0
          %4776 = vmatpush1.bf16.msra.mxu0 0
          %4777 = vmatprep.subr.bf16.mxu0 0
          %4778 = vmatpush1.bf16.msra.mxu0 0
          %4779 = vmatprep.subr.bf16.mxu0 0
          %4780 = vmatpush1.bf16.msra.mxu0 0
          %4781 = vmatprep.subr.bf16.mxu0 0
          %4782 = vmatpush1.bf16.msra.mxu0 0
          %4783 = vmatprep.mubr.bf16.mxu0 0
          %4784 = vmatmul.mubr.bf16.gmra.mrb[0].mxu0 %v3775
          %v4785 = vpop.f32.mrb[0].mxu0
          %v4786 = vadd.f32 %v3935, %v4785
          %v4787 = vpop.f32.mrb[0].mxu0
          %v4788 = vadd.f32 %v3939, %v4787
          %v4789 = vpop.f32.mrb[0].mxu0
          %v4790 = vpop.f32.mrb[0].mxu0
          %4791 = vdwg.mxu0
          %4792 = vmatprep.subr.bf16.mxu0 %v4381
          %4793 = vmatpush1.bf16.msra.mxu0 %v4380
          %4794 = vmatprep.subr.bf16.mxu0 %v4397
          %4795 = vmatpush1.bf16.msra.mxu0 %v4396
          %4796 = vmatprep.subr.bf16.mxu0 %v4413
          %4797 = vmatpush1.bf16.msra.mxu0 %v4412
          %4798 = vmatprep.subr.bf16.mxu0 %v4429
          %4799 = vmatpush1.bf16.msra.mxu0 %v4428
          %4800 = vmatprep.subr.bf16.mxu0 %v4445
          %4801 = vmatpush1.bf16.msra.mxu0 %v4444
          %4802 = vmatprep.subr.bf16.mxu0 %v4461
          %4803 = vmatpush1.bf16.msra.mxu0 %v4460
          %4804 = vmatprep.subr.bf16.mxu0 %v4477
          %4805 = vmatpush1.bf16.msra.mxu0 %v4476
          %4806 = vmatprep.subr.bf16.mxu0 %v4493
          %4807 = vmatpush1.bf16.msra.mxu0 %v4492
          %4808 = vmatprep.subr.bf16.mxu0 0
          %4809 = vmatpush1.bf16.msra.mxu0 0
          %4810 = vmatprep.subr.bf16.mxu0 0
          %4811 = vmatpush1.bf16.msra.mxu0 0
          %4812 = vmatprep.subr.bf16.mxu0 0
          %4813 = vmatpush1.bf16.msra.mxu0 0
          %4814 = vmatprep.subr.bf16.mxu0 0
          %4815 = vmatpush1.bf16.msra.mxu0 0
          %4816 = vmatprep.subr.bf16.mxu0 0
          %4817 = vmatpush1.bf16.msra.mxu0 0
          %4818 = vmatprep.subr.bf16.mxu0 0
          %4819 = vmatpush1.bf16.msra.mxu0 0
          %4820 = vmatprep.subr.bf16.mxu0 0
          %4821 = vmatpush1.bf16.msra.mxu0 0
          %4822 = vmatprep.subr.bf16.mxu0 0
          %4823 = vmatpush1.bf16.msra.mxu0 0
          %4824 = vmatprep.mubr.bf16.mxu0 0
          %4825 = vmatmul.mubr.bf16.gmra.mrb[0].mxu0 %v3775
          %v4826 = vpop.f32.mrb[0].mxu0
          %v4827 = vadd.f32 %v3943, %v4826
          %v4828 = vpop.f32.mrb[0].mxu0
          %v4829 = vadd.f32 %v3947, %v4828
          %v4830 = vpop.f32.mrb[0].mxu0
          %v4831 = vpop.f32.mrb[0].mxu0
          %4832 = vdwg.mxu0
          %4833 = vmatprep.subr.bf16.mxu0 %v4383
          %4834 = vmatpush1.bf16.msra.mxu0 %v4382
          %4835 = vmatprep.subr.bf16.mxu0 %v4399
          %4836 = vmatpush1.bf16.msra.mxu0 %v4398
          %4837 = vmatprep.subr.bf16.mxu0 %v4415
          %4838 = vmatpush1.bf16.msra.mxu0 %v4414
          %4839 = vmatprep.subr.bf16.mxu0 %v4431
          %4840 = vmatpush1.bf16.msra.mxu0 %v4430
          %4841 = vmatprep.subr.bf16.mxu0 %v4447
          %4842 = vmatpush1.bf16.msra.mxu0 %v4446
          %4843 = vmatprep.subr.bf16.mxu0 %v4463
          %4844 = vmatpush1.bf16.msra.mxu0 %v4462
          %4845 = vmatprep.subr.bf16.mxu0 %v4479
          %4846 = vmatpush1.bf16.msra.mxu0 %v4478
          %4847 = vmatprep.subr.bf16.mxu0 %v4495
          %4848 = vmatpush1.bf16.msra.mxu0 %v4494
          %4849 = vmatprep.subr.bf16.mxu0 0
          %4850 = vmatpush1.bf16.msra.mxu0 0
          %4851 = vmatprep.subr.bf16.mxu0 0
          %4852 = vmatpush1.bf16.msra.mxu0 0
          %4853 = vmatprep.subr.bf16.mxu0 0
          %4854 = vmatpush1.bf16.msra.mxu0 0
          %4855 = vmatprep.subr.bf16.mxu0 0
          %4856 = vmatpush1.bf16.msra.mxu0 0
          %4857 = vmatprep.subr.bf16.mxu0 0
          %4858 = vmatpush1.bf16.msra.mxu0 0
          %4859 = vmatprep.subr.bf16.mxu0 0
          %4860 = vmatpush1.bf16.msra.mxu0 0
          %4861 = vmatprep.subr.bf16.mxu0 0
          %4862 = vmatpush1.bf16.msra.mxu0 0
          %4863 = vmatprep.subr.bf16.mxu0 0
          %4864 = vmatpush1.bf16.msra.mxu0 0
          %4865 = vmatprep.mubr.bf16.mxu0 0
          %4866 = vmatmul.mubr.bf16.gmra.mrb[0].mxu0 %v3775
          %v4867 = vpop.f32.mrb[0].mxu0
          %v4868 = vadd.f32 %v3951, %v4867
          %v4869 = vpop.f32.mrb[0].mxu0
          %v4870 = vadd.f32 %v3955, %v4869
          %v4871 = vpop.f32.mrb[0].mxu0
          %v4872 = vpop.f32.mrb[0].mxu0
          %4873 = vdwg.mxu0
          %4874 = vmatprep.subr.bf16.mxu0 %v4385
          %4875 = vmatpush1.bf16.msra.mxu0 %v4384
          %4876 = vmatprep.subr.bf16.mxu0 %v4401
          %4877 = vmatpush1.bf16.msra.mxu0 %v4400
          %4878 = vmatprep.subr.bf16.mxu0 %v4417
          %4879 = vmatpush1.bf16.msra.mxu0 %v4416
          %4880 = vmatprep.subr.bf16.mxu0 %v4433
          %4881 = vmatpush1.bf16.msra.mxu0 %v4432
          %4882 = vmatprep.subr.bf16.mxu0 %v4449
          %4883 = vmatpush1.bf16.msra.mxu0 %v4448
          %4884 = vmatprep.subr.bf16.mxu0 %v4465
          %4885 = vmatpush1.bf16.msra.mxu0 %v4464
          %4886 = vmatprep.subr.bf16.mxu0 %v4481
          %4887 = vmatpush1.bf16.msra.mxu0 %v4480
          %4888 = vmatprep.subr.bf16.mxu0 %v4497
          %4889 = vmatpush1.bf16.msra.mxu0 %v4496
          %4890 = vmatprep.subr.bf16.mxu0 0
          %4891 = vmatpush1.bf16.msra.mxu0 0
          %4892 = vmatprep.subr.bf16.mxu0 0
          %4893 = vmatpush1.bf16.msra.mxu0 0
          %4894 = vmatprep.subr.bf16.mxu0 0
          %4895 = vmatpush1.bf16.msra.mxu0 0
          %4896 = vmatprep.subr.bf16.mxu0 0
          %4897 = vmatpush1.bf16.msra.mxu0 0
          %4898 = vmatprep.subr.bf16.mxu0 0
          %4899 = vmatpush1.bf16.msra.mxu0 0
          %4900 = vmatprep.subr.bf16.mxu0 0
          %4901 = vmatpush1.bf16.msra.mxu0 0
          %4902 = vmatprep.subr.bf16.mxu0 0
          %4903 = vmatpush1.bf16.msra.mxu0 0
          %4904 = vmatprep.subr.bf16.mxu0 0
          %4905 = vmatpush1.bf16.msra.mxu0 0
          %4906 = vmatprep.mubr.bf16.mxu0 0
          %4907 = vmatmul.mubr.bf16.gmra.mrb[0].mxu0 %v3775
          %v4908 = vpop.f32.mrb[0].mxu0
          %v4909 = vadd.f32 %v3959, %v4908
          %v4910 = vpop.f32.mrb[0].mxu0
          %v4911 = vadd.f32 %v3963, %v4910
          %v4912 = vpop.f32.mrb[0].mxu0
          %v4913 = vpop.f32.mrb[0].mxu0
          %4914 = vdwg.mxu0
          %4915 = vmatprep.subr.bf16.mxu0 %v4387
          %4916 = vmatpush1.bf16.msra.mxu0 %v4386
          %4917 = vmatprep.subr.bf16.mxu0 %v4403
          %4918 = vmatpush1.bf16.msra.mxu0 %v4402
          %4919 = vmatprep.subr.bf16.mxu0 %v4419
          %4920 = vmatpush1.bf16.msra.mxu0 %v4418
          %4921 = vmatprep.subr.bf16.mxu0 %v4435
          %4922 = vmatpush1.bf16.msra.mxu0 %v4434
          %4923 = vmatprep.subr.bf16.mxu0 %v4451
          %4924 = vmatpush1.bf16.msra.mxu0 %v4450
          %4925 = vmatprep.subr.bf16.mxu0 %v4467
          %4926 = vmatpush1.bf16.msra.mxu0 %v4466
          %4927 = vmatprep.subr.bf16.mxu0 %v4483
          %4928 = vmatpush1.bf16.msra.mxu0 %v4482
          %4929 = vmatprep.subr.bf16.mxu0 %v4499
          %4930 = vmatpush1.bf16.msra.mxu0 %v4498
          %4931 = vmatprep.subr.bf16.mxu0 0
          %4932 = vmatpush1.bf16.msra.mxu0 0
          %4933 = vmatprep.subr.bf16.mxu0 0
          %4934 = vmatpush1.bf16.msra.mxu0 0
          %4935 = vmatprep.subr.bf16.mxu0 0
          %4936 = vmatpush1.bf16.msra.mxu0 0
          %4937 = vmatprep.subr.bf16.mxu0 0
          %4938 = vmatpush1.bf16.msra.mxu0 0
          %4939 = vmatprep.subr.bf16.mxu0 0
          %4940 = vmatpush1.bf16.msra.mxu0 0
          %4941 = vmatprep.subr.bf16.mxu0 0
          %4942 = vmatpush1.bf16.msra.mxu0 0
          %4943 = vmatprep.subr.bf16.mxu0 0
          %4944 = vmatpush1.bf16.msra.mxu0 0
          %4945 = vmatprep.subr.bf16.mxu0 0
          %4946 = vmatpush1.bf16.msra.mxu0 0
          %4947 = vmatprep.mubr.bf16.mxu0 0
          %4948 = vmatmul.mubr.bf16.gmra.mrb[0].mxu0 %v3775
          %v4949 = vpop.f32.mrb[0].mxu0
          %v4950 = vadd.f32 %v3967, %v4949
          %v4951 = vpop.f32.mrb[0].mxu0
          %v4952 = vadd.f32 %v3971, %v4951
          %v4953 = vpop.f32.mrb[0].mxu0
          %v4954 = vpop.f32.mrb[0].mxu0
          %4955 = vdwg.mxu0
          %v4956 = vmax.f32 %v4663, 0.0
          %v4957 = vmax.f32 %v4665, 0.0
          %v4958 = vmax.f32 %v4704, 0.0
          %v4959 = vmax.f32 %v4706, 0.0
          %v4960 = vmax.f32 %v4745, 0.0
          %v4961 = vmax.f32 %v4747, 0.0
          %v4962 = vmax.f32 %v4786, 0.0
          %v4963 = vmax.f32 %v4788, 0.0
          %v4964 = vmax.f32 %v4827, 0.0
          %v4965 = vmax.f32 %v4829, 0.0
          %v4966 = vmax.f32 %v4868, 0.0
          %v4967 = vmax.f32 %v4870, 0.0
          %v4968 = vmax.f32 %v4909, 0.0
          %v4969 = vmax.f32 %v4911, 0.0
          %v4970 = vmax.f32 %v4950, 0.0
          %v4971 = vmax.f32 %v4952, 0.0
          %v4972 = vld [vmem:[#allocation3] sm:$0x3]
          %v4973 = vpack.c.bf16 %v4956, %v4956
          %v4974 = vpack.c.bf16 %v4957, %v4957
          %v4975 = vpack.c.bf16 %v4958, %v4958
          %v4976 = vpack.c.bf16 %v4959, %v4959
          %v4977 = vpack.c.bf16 %v4960, %v4960
          %v4978 = vpack.c.bf16 %v4961, %v4961
          %v4979 = vpack.c.bf16 %v4962, %v4962
          %v4980 = vpack.c.bf16 %v4963, %v4963
          %v4981 = vpack.c.bf16 %v4964, %v4964
          %v4982 = vpack.c.bf16 %v4965, %v4965
          %v4983 = vpack.c.bf16 %v4966, %v4966
          %v4984 = vpack.c.bf16 %v4967, %v4967
          %v4985 = vpack.c.bf16 %v4968, %v4968
          %v4986 = vpack.c.bf16 %v4969, %v4969
          %v4987 = vpack.c.bf16 %v4970, %v4970
          %v4988 = vpack.c.bf16 %v4971, %v4971
          %v4989 = vld [vmem:[#allocation8] sm:$0xf]
          %v4990 = vld [vmem:[#allocation8 + $0x4] sm:$0xf]
          %v4991 = vld [vmem:[#allocation8 + $0x8] sm:$0xf]
          %v4992 = vld [vmem:[#allocation8 + $0xc] sm:$0xf]
          %v4993 = vld [vmem:[#allocation8 + $0x10] sm:$0xf]
          %v4994 = vld [vmem:[#allocation8 + $0x14] sm:$0xf]
          %v4995 = vld [vmem:[#allocation8 + $0x18] sm:$0xf]
          %v4996 = vld [vmem:[#allocation8 + $0x1c] sm:$0xf]
          %v4997 = vld [vmem:[#allocation8 + $0x20] sm:$0xf]
          %v4998 = vld [vmem:[#allocation8 + $0x24] sm:$0xf]
          %v4999 = vld [vmem:[#allocation8 + $0x28] sm:$0xf]
          %v5000 = vld [vmem:[#allocation8 + $0x2c] sm:$0xf]
          %v5001 = vld [vmem:[#allocation8 + $0x30] sm:$0xf]
          %v5002 = vld [vmem:[#allocation8 + $0x34] sm:$0xf]
          %v5003 = vld [vmem:[#allocation8 + $0x38] sm:$0xf]
          %v5004 = vld [vmem:[#allocation8 + $0x3c] sm:$0xf]
          %v5005 = vld [vmem:[#allocation8 + $0x40] sm:$0xf]
          %v5006 = vld [vmem:[#allocation8 + $0x44] sm:$0xf]
          %v5007 = vld [vmem:[#allocation8 + $0x48] sm:$0xf]
          %v5008 = vld [vmem:[#allocation8 + $0x4c] sm:$0xf]
          %v5009 = vld [vmem:[#allocation8 + $0x50] sm:$0xf]
          %v5010 = vld [vmem:[#allocation8 + $0x54] sm:$0xf]
          %v5011 = vld [vmem:[#allocation8 + $0x58] sm:$0xf]
          %v5012 = vld [vmem:[#allocation8 + $0x5c] sm:$0xf]
          %v5013 = vld [vmem:[#allocation8 + $0x60] sm:$0xf]
          %v5014 = vld [vmem:[#allocation8 + $0x64] sm:$0xf]
          %v5015 = vld [vmem:[#allocation8 + $0x68] sm:$0xf]
          %v5016 = vld [vmem:[#allocation8 + $0x6c] sm:$0xf]
          %v5017 = vld [vmem:[#allocation8 + $0x70] sm:$0xf]
          %v5018 = vld [vmem:[#allocation8 + $0x74] sm:$0xf]
          %v5019 = vld [vmem:[#allocation8 + $0x78] sm:$0xf]
          %v5020 = vld [vmem:[#allocation8 + $0x7c] sm:$0xf]
          %v5021 = vld [vmem:[#allocation8 + $0x80] sm:$0xf]
          %v5022 = vld [vmem:[#allocation8 + $0x84] sm:$0xf]
          %v5023 = vld [vmem:[#allocation8 + $0x88] sm:$0xf]
          %v5024 = vld [vmem:[#allocation8 + $0x8c] sm:$0xf]
          %v5025 = vld [vmem:[#allocation8 + $0x90] sm:$0xf]
          %v5026 = vld [vmem:[#allocation8 + $0x94] sm:$0xf]
          %v5027 = vld [vmem:[#allocation8 + $0x98] sm:$0xf]
          %v5028 = vld [vmem:[#allocation8 + $0x9c] sm:$0xf]
          %v5029 = vld [vmem:[#allocation8 + $0xa0] sm:$0xf]
          %v5030 = vld [vmem:[#allocation8 + $0xa4] sm:$0xf]
          %v5031 = vld [vmem:[#allocation8 + $0xa8] sm:$0xf]
          %v5032 = vld [vmem:[#allocation8 + $0xac] sm:$0xf]
          %v5033 = vld [vmem:[#allocation8 + $0xb0] sm:$0xf]
          %v5034 = vld [vmem:[#allocation8 + $0xb4] sm:$0xf]
          %v5035 = vld [vmem:[#allocation8 + $0xb8] sm:$0xf]
          %v5036 = vld [vmem:[#allocation8 + $0xbc] sm:$0xf]
          %v5037 = vld [vmem:[#allocation8 + $0xc0] sm:$0xf]
          %v5038 = vld [vmem:[#allocation8 + $0xc4] sm:$0xf]
          %v5039 = vld [vmem:[#allocation8 + $0xc8] sm:$0xf]
          %v5040 = vld [vmem:[#allocation8 + $0xcc] sm:$0xf]
          %v5041 = vld [vmem:[#allocation8 + $0xd0] sm:$0xf]
          %v5042 = vld [vmem:[#allocation8 + $0xd4] sm:$0xf]
          %v5043 = vld [vmem:[#allocation8 + $0xd8] sm:$0xf]
          %v5044 = vld [vmem:[#allocation8 + $0xdc] sm:$0xf]
          %v5045 = vld [vmem:[#allocation8 + $0xe0] sm:$0xf]
          %v5046 = vld [vmem:[#allocation8 + $0xe4] sm:$0xf]
          %v5047 = vld [vmem:[#allocation8 + $0xe8] sm:$0xf]
          %v5048 = vld [vmem:[#allocation8 + $0xec] sm:$0xf]
          %v5049 = vld [vmem:[#allocation8 + $0xf0] sm:$0xf]
          %v5050 = vld [vmem:[#allocation8 + $0xf4] sm:$0xf]
          %v5051 = vld [vmem:[#allocation8 + $0xf8] sm:$0xf]
          %v5052 = vld [vmem:[#allocation8 + $0xfc] sm:$0xf]
          %v5053 = vld [vmem:[#allocation8 + $0x100] sm:$0xf]
          %v5054 = vld [vmem:[#allocation8 + $0x104] sm:$0xf]
          %v5055 = vld [vmem:[#allocation8 + $0x108] sm:$0xf]
          %v5056 = vld [vmem:[#allocation8 + $0x10c] sm:$0xf]
          %v5057 = vld [vmem:[#allocation8 + $0x110] sm:$0xf]
          %v5058 = vld [vmem:[#allocation8 + $0x114] sm:$0xf]
          %v5059 = vld [vmem:[#allocation8 + $0x118] sm:$0xf]
          %v5060 = vld [vmem:[#allocation8 + $0x11c] sm:$0xf]
          %v5061 = vld [vmem:[#allocation8 + $0x120] sm:$0xf]
          %v5062 = vld [vmem:[#allocation8 + $0x124] sm:$0xf]
          %v5063 = vld [vmem:[#allocation8 + $0x128] sm:$0xf]
          %v5064 = vld [vmem:[#allocation8 + $0x12c] sm:$0xf]
          %v5065 = vld [vmem:[#allocation8 + $0x130] sm:$0xf]
          %v5066 = vld [vmem:[#allocation8 + $0x134] sm:$0xf]
          %v5067 = vld [vmem:[#allocation8 + $0x138] sm:$0xf]
          %v5068 = vld [vmem:[#allocation8 + $0x13c] sm:$0xf]
          %v5069 = vld [vmem:[#allocation8 + $0x140] sm:$0xf]
          %v5070 = vld [vmem:[#allocation8 + $0x144] sm:$0xf]
          %v5071 = vld [vmem:[#allocation8 + $0x148] sm:$0xf]
          %v5072 = vld [vmem:[#allocation8 + $0x14c] sm:$0xf]
          %v5073 = vld [vmem:[#allocation8 + $0x150] sm:$0xf]
          %v5074 = vld [vmem:[#allocation8 + $0x154] sm:$0xf]
          %v5075 = vld [vmem:[#allocation8 + $0x158] sm:$0xf]
          %v5076 = vld [vmem:[#allocation8 + $0x15c] sm:$0xf]
          %v5077 = vld [vmem:[#allocation8 + $0x160] sm:$0xf]
          %v5078 = vld [vmem:[#allocation8 + $0x164] sm:$0xf]
          %v5079 = vld [vmem:[#allocation8 + $0x168] sm:$0xf]
          %v5080 = vld [vmem:[#allocation8 + $0x16c] sm:$0xf]
          %v5081 = vld [vmem:[#allocation8 + $0x170] sm:$0xf]
          %v5082 = vld [vmem:[#allocation8 + $0x174] sm:$0xf]
          %v5083 = vld [vmem:[#allocation8 + $0x178] sm:$0xf]
          %v5084 = vld [vmem:[#allocation8 + $0x17c] sm:$0xf]
          %v5085 = vld [vmem:[#allocation8 + $0x180] sm:$0xf]
          %v5086 = vld [vmem:[#allocation8 + $0x184] sm:$0xf]
          %v5087 = vld [vmem:[#allocation8 + $0x188] sm:$0xf]
          %v5088 = vld [vmem:[#allocation8 + $0x18c] sm:$0xf]
          %v5089 = vld [vmem:[#allocation8 + $0x190] sm:$0xf]
          %v5090 = vld [vmem:[#allocation8 + $0x194] sm:$0xf]
          %v5091 = vld [vmem:[#allocation8 + $0x198] sm:$0xf]
          %v5092 = vld [vmem:[#allocation8 + $0x19c] sm:$0xf]
          %v5093 = vld [vmem:[#allocation8 + $0x1a0] sm:$0xf]
          %v5094 = vld [vmem:[#allocation8 + $0x1a4] sm:$0xf]
          %v5095 = vld [vmem:[#allocation8 + $0x1a8] sm:$0xf]
          %v5096 = vld [vmem:[#allocation8 + $0x1ac] sm:$0xf]
          %v5097 = vld [vmem:[#allocation8 + $0x1b0] sm:$0xf]
          %v5098 = vld [vmem:[#allocation8 + $0x1b4] sm:$0xf]
          %v5099 = vld [vmem:[#allocation8 + $0x1b8] sm:$0xf]
          %v5100 = vld [vmem:[#allocation8 + $0x1bc] sm:$0xf]
          %v5101 = vld [vmem:[#allocation8 + $0x1c0] sm:$0xf]
          %v5102 = vld [vmem:[#allocation8 + $0x1c4] sm:$0xf]
          %v5103 = vld [vmem:[#allocation8 + $0x1c8] sm:$0xf]
          %v5104 = vld [vmem:[#allocation8 + $0x1cc] sm:$0xf]
          %v5105 = vld [vmem:[#allocation8 + $0x1d0] sm:$0xf]
          %v5106 = vld [vmem:[#allocation8 + $0x1d4] sm:$0xf]
          %v5107 = vld [vmem:[#allocation8 + $0x1d8] sm:$0xf]
          %v5108 = vld [vmem:[#allocation8 + $0x1dc] sm:$0xf]
          %v5109 = vld [vmem:[#allocation8 + $0x1e0] sm:$0xf]
          %v5110 = vld [vmem:[#allocation8 + $0x1e4] sm:$0xf]
          %v5111 = vld [vmem:[#allocation8 + $0x1e8] sm:$0xf]
          %v5112 = vld [vmem:[#allocation8 + $0x1ec] sm:$0xf]
          %v5113 = vld [vmem:[#allocation8 + $0x1f0] sm:$0xf]
          %v5114 = vld [vmem:[#allocation8 + $0x1f4] sm:$0xf]
          %v5115 = vld [vmem:[#allocation8 + $0x1f8] sm:$0xf]
          %v5116 = vld [vmem:[#allocation8 + $0x1fc] sm:$0xf]
          %v5117 = vld [vmem:[#allocation8 + $0x200] sm:$0xf]
          %v5118 = vld [vmem:[#allocation8 + $0x204] sm:$0xf]
          %v5119 = vld [vmem:[#allocation8 + $0x208] sm:$0xf]
          %v5120 = vld [vmem:[#allocation8 + $0x20c] sm:$0xf]
          %v5121 = vld [vmem:[#allocation8 + $0x210] sm:$0xf]
          %v5122 = vld [vmem:[#allocation8 + $0x214] sm:$0xf]
          %v5123 = vld [vmem:[#allocation8 + $0x218] sm:$0xf]
          %v5124 = vld [vmem:[#allocation8 + $0x21c] sm:$0xf]
          %v5125 = vld [vmem:[#allocation8 + $0x220] sm:$0xf]
          %v5126 = vld [vmem:[#allocation8 + $0x224] sm:$0xf]
          %v5127 = vld [vmem:[#allocation8 + $0x228] sm:$0xf]
          %v5128 = vld [vmem:[#allocation8 + $0x22c] sm:$0xf]
          %v5129 = vld [vmem:[#allocation8 + $0x230] sm:$0xf]
          %v5130 = vld [vmem:[#allocation8 + $0x234] sm:$0xf]
          %v5131 = vld [vmem:[#allocation8 + $0x238] sm:$0xf]
          %v5132 = vld [vmem:[#allocation8 + $0x23c] sm:$0xf]
          %v5133 = vld [vmem:[#allocation8 + $0x240] sm:$0xf]
          %v5134 = vld [vmem:[#allocation8 + $0x244] sm:$0xf]
          %v5135 = vld [vmem:[#allocation8 + $0x248] sm:$0xf]
          %v5136 = vld [vmem:[#allocation8 + $0x24c] sm:$0xf]
          %v5137 = vld [vmem:[#allocation8 + $0x250] sm:$0xf]
          %v5138 = vld [vmem:[#allocation8 + $0x254] sm:$0xf]
          %v5139 = vld [vmem:[#allocation8 + $0x258] sm:$0xf]
          %v5140 = vld [vmem:[#allocation8 + $0x25c] sm:$0xf]
          %v5141 = vld [vmem:[#allocation8 + $0x260] sm:$0xf]
          %v5142 = vld [vmem:[#allocation8 + $0x264] sm:$0xf]
          %v5143 = vld [vmem:[#allocation8 + $0x268] sm:$0xf]
          %v5144 = vld [vmem:[#allocation8 + $0x26c] sm:$0xf]
          %v5145 = vld [vmem:[#allocation8 + $0x270] sm:$0xf]
          %v5146 = vld [vmem:[#allocation8 + $0x274] sm:$0xf]
          %v5147 = vld [vmem:[#allocation8 + $0x278] sm:$0xf]
          %v5148 = vld [vmem:[#allocation8 + $0x27c] sm:$0xf]
          %v5149 = vld [vmem:[#allocation8 + $0x280] sm:$0xf]
          %v5150 = vld [vmem:[#allocation8 + $0x284] sm:$0xf]
          %v5151 = vld [vmem:[#allocation8 + $0x288] sm:$0xf]
          %v5152 = vld [vmem:[#allocation8 + $0x28c] sm:$0xf]
          %v5153 = vld [vmem:[#allocation8 + $0x290] sm:$0xf]
          %v5154 = vld [vmem:[#allocation8 + $0x294] sm:$0xf]
          %v5155 = vld [vmem:[#allocation8 + $0x298] sm:$0xf]
          %v5156 = vld [vmem:[#allocation8 + $0x29c] sm:$0xf]
          %v5157 = vld [vmem:[#allocation8 + $0x2a0] sm:$0xf]
          %v5158 = vld [vmem:[#allocation8 + $0x2a4] sm:$0xf]
          %v5159 = vld [vmem:[#allocation8 + $0x2a8] sm:$0xf]
          %v5160 = vld [vmem:[#allocation8 + $0x2ac] sm:$0xf]
          %v5161 = vld [vmem:[#allocation8 + $0x2b0] sm:$0xf]
          %v5162 = vld [vmem:[#allocation8 + $0x2b4] sm:$0xf]
          %v5163 = vld [vmem:[#allocation8 + $0x2b8] sm:$0xf]
          %v5164 = vld [vmem:[#allocation8 + $0x2bc] sm:$0xf]
          %v5165 = vld [vmem:[#allocation8 + $0x2c0] sm:$0xf]
          %v5166 = vld [vmem:[#allocation8 + $0x2c4] sm:$0xf]
          %v5167 = vld [vmem:[#allocation8 + $0x2c8] sm:$0xf]
          %v5168 = vld [vmem:[#allocation8 + $0x2cc] sm:$0xf]
          %v5169 = vld [vmem:[#allocation8 + $0x2d0] sm:$0xf]
          %v5170 = vld [vmem:[#allocation8 + $0x2d4] sm:$0xf]
          %v5171 = vld [vmem:[#allocation8 + $0x2d8] sm:$0xf]
          %v5172 = vld [vmem:[#allocation8 + $0x2dc] sm:$0xf]
          %v5173 = vld [vmem:[#allocation8 + $0x2e0] sm:$0xf]
          %v5174 = vld [vmem:[#allocation8 + $0x2e4] sm:$0xf]
          %v5175 = vld [vmem:[#allocation8 + $0x2e8] sm:$0xf]
          %v5176 = vld [vmem:[#allocation8 + $0x2ec] sm:$0xf]
          %v5177 = vld [vmem:[#allocation8 + $0x2f0] sm:$0xf]
          %v5178 = vld [vmem:[#allocation8 + $0x2f4] sm:$0xf]
          %v5179 = vld [vmem:[#allocation8 + $0x2f8] sm:$0xf]
          %v5180 = vld [vmem:[#allocation8 + $0x2fc] sm:$0xf]
          %v5181 = vld [vmem:[#allocation8 + $0x300] sm:$0xf]
          %v5182 = vld [vmem:[#allocation8 + $0x304] sm:$0xf]
          %v5183 = vld [vmem:[#allocation8 + $0x308] sm:$0xf]
          %v5184 = vld [vmem:[#allocation8 + $0x30c] sm:$0xf]
          %v5185 = vld [vmem:[#allocation8 + $0x310] sm:$0xf]
          %v5186 = vld [vmem:[#allocation8 + $0x314] sm:$0xf]
          %v5187 = vld [vmem:[#allocation8 + $0x318] sm:$0xf]
          %v5188 = vld [vmem:[#allocation8 + $0x31c] sm:$0xf]
          %v5189 = vld [vmem:[#allocation8 + $0x320] sm:$0xf]
          %v5190 = vld [vmem:[#allocation8 + $0x324] sm:$0xf]
          %v5191 = vld [vmem:[#allocation8 + $0x328] sm:$0xf]
          %v5192 = vld [vmem:[#allocation8 + $0x32c] sm:$0xf]
          %v5193 = vld [vmem:[#allocation8 + $0x330] sm:$0xf]
          %v5194 = vld [vmem:[#allocation8 + $0x334] sm:$0xf]
          %v5195 = vld [vmem:[#allocation8 + $0x338] sm:$0xf]
          %v5196 = vld [vmem:[#allocation8 + $0x33c] sm:$0xf]
          %v5197 = vld [vmem:[#allocation8 + $0x340] sm:$0xf]
          %v5198 = vld [vmem:[#allocation8 + $0x344] sm:$0xf]
          %v5199 = vld [vmem:[#allocation8 + $0x348] sm:$0xf]
          %v5200 = vld [vmem:[#allocation8 + $0x34c] sm:$0xf]
          %v5201 = vld [vmem:[#allocation8 + $0x350] sm:$0xf]
          %v5202 = vld [vmem:[#allocation8 + $0x354] sm:$0xf]
          %v5203 = vld [vmem:[#allocation8 + $0x358] sm:$0xf]
          %v5204 = vld [vmem:[#allocation8 + $0x35c] sm:$0xf]
          %v5205 = vld [vmem:[#allocation8 + $0x360] sm:$0xf]
          %v5206 = vld [vmem:[#allocation8 + $0x364] sm:$0xf]
          %v5207 = vld [vmem:[#allocation8 + $0x368] sm:$0xf]
          %v5208 = vld [vmem:[#allocation8 + $0x36c] sm:$0xf]
          %v5209 = vld [vmem:[#allocation8 + $0x370] sm:$0xf]
          %v5210 = vld [vmem:[#allocation8 + $0x374] sm:$0xf]
          %v5211 = vld [vmem:[#allocation8 + $0x378] sm:$0xf]
          %v5212 = vld [vmem:[#allocation8 + $0x37c] sm:$0xf]
          %v5213 = vld [vmem:[#allocation8 + $0x380] sm:$0xf]
          %v5214 = vld [vmem:[#allocation8 + $0x384] sm:$0xf]
          %v5215 = vld [vmem:[#allocation8 + $0x388] sm:$0xf]
          %v5216 = vld [vmem:[#allocation8 + $0x38c] sm:$0xf]
          %v5217 = vld [vmem:[#allocation8 + $0x390] sm:$0xf]
          %v5218 = vld [vmem:[#allocation8 + $0x394] sm:$0xf]
          %v5219 = vld [vmem:[#allocation8 + $0x398] sm:$0xf]
          %v5220 = vld [vmem:[#allocation8 + $0x39c] sm:$0xf]
          %v5221 = vld [vmem:[#allocation8 + $0x3a0] sm:$0xf]
          %v5222 = vld [vmem:[#allocation8 + $0x3a4] sm:$0xf]
          %v5223 = vld [vmem:[#allocation8 + $0x3a8] sm:$0xf]
          %v5224 = vld [vmem:[#allocation8 + $0x3ac] sm:$0xf]
          %v5225 = vld [vmem:[#allocation8 + $0x3b0] sm:$0xf]
          %v5226 = vld [vmem:[#allocation8 + $0x3b4] sm:$0xf]
          %v5227 = vld [vmem:[#allocation8 + $0x3b8] sm:$0xf]
          %v5228 = vld [vmem:[#allocation8 + $0x3bc] sm:$0xf]
          %v5229 = vld [vmem:[#allocation8 + $0x3c0] sm:$0xf]
          %v5230 = vld [vmem:[#allocation8 + $0x3c4] sm:$0xf]
          %v5231 = vld [vmem:[#allocation8 + $0x3c8] sm:$0xf]
          %v5232 = vld [vmem:[#allocation8 + $0x3cc] sm:$0xf]
          %v5233 = vld [vmem:[#allocation8 + $0x3d0] sm:$0xf]
          %v5234 = vld [vmem:[#allocation8 + $0x3d4] sm:$0xf]
          %v5235 = vld [vmem:[#allocation8 + $0x3d8] sm:$0xf]
          %v5236 = vld [vmem:[#allocation8 + $0x3dc] sm:$0xf]
          %v5237 = vld [vmem:[#allocation8 + $0x3e0] sm:$0xf]
          %v5238 = vld [vmem:[#allocation8 + $0x3e4] sm:$0xf]
          %v5239 = vld [vmem:[#allocation8 + $0x3e8] sm:$0xf]
          %v5240 = vld [vmem:[#allocation8 + $0x3ec] sm:$0xf]
          %v5241 = vld [vmem:[#allocation8 + $0x3f0] sm:$0xf]
          %v5242 = vld [vmem:[#allocation8 + $0x3f4] sm:$0xf]
          %v5243 = vld [vmem:[#allocation8 + $0x3f8] sm:$0xf]
          %v5244 = vld [vmem:[#allocation8 + $0x3fc] sm:$0xf]
          %v5501 = vunpack.c.l.b16 %v4989
          %v5502 = vunpack.c.l.b16 %v4990
          %v5503 = vunpack.c.l.b16 %v4991
          %v5504 = vunpack.c.l.b16 %v4992
          %v5505 = vunpack.c.l.b16 %v4993
          %v5506 = vunpack.c.l.b16 %v4994
          %v5507 = vunpack.c.l.b16 %v4995
          %v5508 = vunpack.c.l.b16 %v4996
          %v5509 = vunpack.c.l.b16 %v4997
          %v5510 = vunpack.c.l.b16 %v4998
          %v5511 = vunpack.c.l.b16 %v4999
          %v5512 = vunpack.c.l.b16 %v5000
          %v5513 = vunpack.c.l.b16 %v5001
          %v5514 = vunpack.c.l.b16 %v5002
          %v5515 = vunpack.c.l.b16 %v5003
          %v5516 = vunpack.c.l.b16 %v5004
          %v5517 = vunpack.c.l.b16 %v5005
          %v5518 = vunpack.c.l.b16 %v5006
          %v5519 = vunpack.c.l.b16 %v5007
          %v5520 = vunpack.c.l.b16 %v5008
          %v5521 = vunpack.c.l.b16 %v5009
          %v5522 = vunpack.c.l.b16 %v5010
          %v5523 = vunpack.c.l.b16 %v5011
          %v5524 = vunpack.c.l.b16 %v5012
          %v5525 = vunpack.c.l.b16 %v5013
          %v5526 = vunpack.c.l.b16 %v5014
          %v5527 = vunpack.c.l.b16 %v5015
          %v5528 = vunpack.c.l.b16 %v5016
          %v5529 = vunpack.c.l.b16 %v5017
          %v5530 = vunpack.c.l.b16 %v5018
          %v5531 = vunpack.c.l.b16 %v5019
          %v5532 = vunpack.c.l.b16 %v5020
          %v5533 = vunpack.c.l.b16 %v5021
          %v5534 = vunpack.c.l.b16 %v5022
          %v5535 = vunpack.c.l.b16 %v5023
          %v5536 = vunpack.c.l.b16 %v5024
          %v5537 = vunpack.c.l.b16 %v5025
          %v5538 = vunpack.c.l.b16 %v5026
          %v5539 = vunpack.c.l.b16 %v5027
          %v5540 = vunpack.c.l.b16 %v5028
          %v5541 = vunpack.c.l.b16 %v5029
          %v5542 = vunpack.c.l.b16 %v5030
          %v5543 = vunpack.c.l.b16 %v5031
          %v5544 = vunpack.c.l.b16 %v5032
          %v5545 = vunpack.c.l.b16 %v5033
          %v5546 = vunpack.c.l.b16 %v5034
          %v5547 = vunpack.c.l.b16 %v5035
          %v5548 = vunpack.c.l.b16 %v5036
          %v5549 = vunpack.c.l.b16 %v5037
          %v5550 = vunpack.c.l.b16 %v5038
          %v5551 = vunpack.c.l.b16 %v5039
          %v5552 = vunpack.c.l.b16 %v5040
          %v5553 = vunpack.c.l.b16 %v5041
          %v5554 = vunpack.c.l.b16 %v5042
          %v5555 = vunpack.c.l.b16 %v5043
          %v5556 = vunpack.c.l.b16 %v5044
          %v5557 = vunpack.c.l.b16 %v5045
          %v5558 = vunpack.c.l.b16 %v5046
          %v5559 = vunpack.c.l.b16 %v5047
          %v5560 = vunpack.c.l.b16 %v5048
          %v5561 = vunpack.c.l.b16 %v5049
          %v5562 = vunpack.c.l.b16 %v5050
          %v5563 = vunpack.c.l.b16 %v5051
          %v5564 = vunpack.c.l.b16 %v5052
          %v5565 = vunpack.c.l.b16 %v5053
          %v5566 = vunpack.c.l.b16 %v5054
          %v5567 = vunpack.c.l.b16 %v5055
          %v5568 = vunpack.c.l.b16 %v5056
          %v5569 = vunpack.c.l.b16 %v5057
          %v5570 = vunpack.c.l.b16 %v5058
          %v5571 = vunpack.c.l.b16 %v5059
          %v5572 = vunpack.c.l.b16 %v5060
          %v5573 = vunpack.c.l.b16 %v5061
          %v5574 = vunpack.c.l.b16 %v5062
          %v5575 = vunpack.c.l.b16 %v5063
          %v5576 = vunpack.c.l.b16 %v5064
          %v5577 = vunpack.c.l.b16 %v5065
          %v5578 = vunpack.c.l.b16 %v5066
          %v5579 = vunpack.c.l.b16 %v5067
          %v5580 = vunpack.c.l.b16 %v5068
          %v5581 = vunpack.c.l.b16 %v5069
          %v5582 = vunpack.c.l.b16 %v5070
          %v5583 = vunpack.c.l.b16 %v5071
          %v5584 = vunpack.c.l.b16 %v5072
          %v5585 = vunpack.c.l.b16 %v5073
          %v5586 = vunpack.c.l.b16 %v5074
          %v5587 = vunpack.c.l.b16 %v5075
          %v5588 = vunpack.c.l.b16 %v5076
          %v5589 = vunpack.c.l.b16 %v5077
          %v5590 = vunpack.c.l.b16 %v5078
          %v5591 = vunpack.c.l.b16 %v5079
          %v5592 = vunpack.c.l.b16 %v5080
          %v5593 = vunpack.c.l.b16 %v5081
          %v5594 = vunpack.c.l.b16 %v5082
          %v5595 = vunpack.c.l.b16 %v5083
          %v5596 = vunpack.c.l.b16 %v5084
          %v5597 = vunpack.c.l.b16 %v5085
          %v5598 = vunpack.c.l.b16 %v5086
          %v5599 = vunpack.c.l.b16 %v5087
          %v5600 = vunpack.c.l.b16 %v5088
          %v5601 = vunpack.c.l.b16 %v5089
          %v5602 = vunpack.c.l.b16 %v5090
          %v5603 = vunpack.c.l.b16 %v5091
          %v5604 = vunpack.c.l.b16 %v5092
          %v5605 = vunpack.c.l.b16 %v5093
          %v5606 = vunpack.c.l.b16 %v5094
          %v5607 = vunpack.c.l.b16 %v5095
          %v5608 = vunpack.c.l.b16 %v5096
          %v5609 = vunpack.c.l.b16 %v5097
          %v5610 = vunpack.c.l.b16 %v5098
          %v5611 = vunpack.c.l.b16 %v5099
          %v5612 = vunpack.c.l.b16 %v5100
          %v5613 = vunpack.c.l.b16 %v5101
          %v5614 = vunpack.c.l.b16 %v5102
          %v5615 = vunpack.c.l.b16 %v5103
          %v5616 = vunpack.c.l.b16 %v5104
          %v5617 = vunpack.c.l.b16 %v5105
          %v5618 = vunpack.c.l.b16 %v5106
          %v5619 = vunpack.c.l.b16 %v5107
          %v5620 = vunpack.c.l.b16 %v5108
          %v5621 = vunpack.c.l.b16 %v5109
          %v5622 = vunpack.c.l.b16 %v5110
          %v5623 = vunpack.c.l.b16 %v5111
          %v5624 = vunpack.c.l.b16 %v5112
          %v5625 = vunpack.c.l.b16 %v5113
          %v5626 = vunpack.c.l.b16 %v5114
          %v5627 = vunpack.c.l.b16 %v5115
          %v5628 = vunpack.c.l.b16 %v5116
          %v5629 = vunpack.c.l.b16 %v5117
          %v5630 = vunpack.c.l.b16 %v5118
          %v5631 = vunpack.c.l.b16 %v5119
          %v5632 = vunpack.c.l.b16 %v5120
          %v5633 = vunpack.c.l.b16 %v5121
          %v5634 = vunpack.c.l.b16 %v5122
          %v5635 = vunpack.c.l.b16 %v5123
          %v5636 = vunpack.c.l.b16 %v5124
          %v5637 = vunpack.c.l.b16 %v5125
          %v5638 = vunpack.c.l.b16 %v5126
          %v5639 = vunpack.c.l.b16 %v5127
          %v5640 = vunpack.c.l.b16 %v5128
          %v5641 = vunpack.c.l.b16 %v5129
          %v5642 = vunpack.c.l.b16 %v5130
          %v5643 = vunpack.c.l.b16 %v5131
          %v5644 = vunpack.c.l.b16 %v5132
          %v5645 = vunpack.c.l.b16 %v5133
          %v5646 = vunpack.c.l.b16 %v5134
          %v5647 = vunpack.c.l.b16 %v5135
          %v5648 = vunpack.c.l.b16 %v5136
          %v5649 = vunpack.c.l.b16 %v5137
          %v5650 = vunpack.c.l.b16 %v5138
          %v5651 = vunpack.c.l.b16 %v5139
          %v5652 = vunpack.c.l.b16 %v5140
          %v5653 = vunpack.c.l.b16 %v5141
          %v5654 = vunpack.c.l.b16 %v5142
          %v5655 = vunpack.c.l.b16 %v5143
          %v5656 = vunpack.c.l.b16 %v5144
          %v5657 = vunpack.c.l.b16 %v5145
          %v5658 = vunpack.c.l.b16 %v5146
          %v5659 = vunpack.c.l.b16 %v5147
          %v5660 = vunpack.c.l.b16 %v5148
          %v5661 = vunpack.c.l.b16 %v5149
          %v5662 = vunpack.c.l.b16 %v5150
          %v5663 = vunpack.c.l.b16 %v5151
          %v5664 = vunpack.c.l.b16 %v5152
          %v5665 = vunpack.c.l.b16 %v5153
          %v5666 = vunpack.c.l.b16 %v5154
          %v5667 = vunpack.c.l.b16 %v5155
          %v5668 = vunpack.c.l.b16 %v5156
          %v5669 = vunpack.c.l.b16 %v5157
          %v5670 = vunpack.c.l.b16 %v5158
          %v5671 = vunpack.c.l.b16 %v5159
          %v5672 = vunpack.c.l.b16 %v5160
          %v5673 = vunpack.c.l.b16 %v5161
          %v5674 = vunpack.c.l.b16 %v5162
          %v5675 = vunpack.c.l.b16 %v5163
          %v5676 = vunpack.c.l.b16 %v5164
          %v5677 = vunpack.c.l.b16 %v5165
          %v5678 = vunpack.c.l.b16 %v5166
          %v5679 = vunpack.c.l.b16 %v5167
          %v5680 = vunpack.c.l.b16 %v5168
          %v5681 = vunpack.c.l.b16 %v5169
          %v5682 = vunpack.c.l.b16 %v5170
          %v5683 = vunpack.c.l.b16 %v5171
          %v5684 = vunpack.c.l.b16 %v5172
          %v5685 = vunpack.c.l.b16 %v5173
          %v5686 = vunpack.c.l.b16 %v5174
          %v5687 = vunpack.c.l.b16 %v5175
          %v5688 = vunpack.c.l.b16 %v5176
          %v5689 = vunpack.c.l.b16 %v5177
          %v5690 = vunpack.c.l.b16 %v5178
          %v5691 = vunpack.c.l.b16 %v5179
          %v5692 = vunpack.c.l.b16 %v5180
          %v5693 = vunpack.c.l.b16 %v5181
          %v5694 = vunpack.c.l.b16 %v5182
          %v5695 = vunpack.c.l.b16 %v5183
          %v5696 = vunpack.c.l.b16 %v5184
          %v5697 = vunpack.c.l.b16 %v5185
          %v5698 = vunpack.c.l.b16 %v5186
          %v5699 = vunpack.c.l.b16 %v5187
          %v5700 = vunpack.c.l.b16 %v5188
          %v5701 = vunpack.c.l.b16 %v5189
          %v5702 = vunpack.c.l.b16 %v5190
          %v5703 = vunpack.c.l.b16 %v5191
          %v5704 = vunpack.c.l.b16 %v5192
          %v5705 = vunpack.c.l.b16 %v5193
          %v5706 = vunpack.c.l.b16 %v5194
          %v5707 = vunpack.c.l.b16 %v5195
          %v5708 = vunpack.c.l.b16 %v5196
          %v5709 = vunpack.c.l.b16 %v5197
          %v5710 = vunpack.c.l.b16 %v5198
          %v5711 = vunpack.c.l.b16 %v5199
          %v5712 = vunpack.c.l.b16 %v5200
          %v5713 = vunpack.c.l.b16 %v5201
          %v5714 = vunpack.c.l.b16 %v5202
          %v5715 = vunpack.c.l.b16 %v5203
          %v5716 = vunpack.c.l.b16 %v5204
          %v5717 = vunpack.c.l.b16 %v5205
          %v5718 = vunpack.c.l.b16 %v5206
          %v5719 = vunpack.c.l.b16 %v5207
          %v5720 = vunpack.c.l.b16 %v5208
          %v5721 = vunpack.c.l.b16 %v5209
          %v5722 = vunpack.c.l.b16 %v5210
          %v5723 = vunpack.c.l.b16 %v5211
          %v5724 = vunpack.c.l.b16 %v5212
          %v5725 = vunpack.c.l.b16 %v5213
          %v5726 = vunpack.c.l.b16 %v5214
          %v5727 = vunpack.c.l.b16 %v5215
          %v5728 = vunpack.c.l.b16 %v5216
          %v5729 = vunpack.c.l.b16 %v5217
          %v5730 = vunpack.c.l.b16 %v5218
          %v5731 = vunpack.c.l.b16 %v5219
          %v5732 = vunpack.c.l.b16 %v5220
          %v5733 = vunpack.c.l.b16 %v5221
          %v5734 = vunpack.c.l.b16 %v5222
          %v5735 = vunpack.c.l.b16 %v5223
          %v5736 = vunpack.c.l.b16 %v5224
          %v5737 = vunpack.c.l.b16 %v5225
          %v5738 = vunpack.c.l.b16 %v5226
          %v5739 = vunpack.c.l.b16 %v5227
          %v5740 = vunpack.c.l.b16 %v5228
          %v5741 = vunpack.c.l.b16 %v5229
          %v5742 = vunpack.c.l.b16 %v5230
          %v5743 = vunpack.c.l.b16 %v5231
          %v5744 = vunpack.c.l.b16 %v5232
          %v5745 = vunpack.c.l.b16 %v5233
          %v5746 = vunpack.c.l.b16 %v5234
          %v5747 = vunpack.c.l.b16 %v5235
          %v5748 = vunpack.c.l.b16 %v5236
          %v5749 = vunpack.c.l.b16 %v5237
          %v5750 = vunpack.c.l.b16 %v5238
          %v5751 = vunpack.c.l.b16 %v5239
          %v5752 = vunpack.c.l.b16 %v5240
          %v5753 = vunpack.c.l.b16 %v5241
          %v5754 = vunpack.c.l.b16 %v5242
          %v5755 = vunpack.c.l.b16 %v5243
          %v5756 = vunpack.c.l.b16 %v5244
          %v5757 = vpack.c.b16 %v5502, %v5501
          %v5758 = vpack.c.b16 %v5504, %v5503
          %v5759 = vpack.c.b16 %v5506, %v5505
          %v5760 = vpack.c.b16 %v5508, %v5507
          %v5761 = vpack.c.b16 %v5510, %v5509
          %v5762 = vpack.c.b16 %v5512, %v5511
          %v5763 = vpack.c.b16 %v5514, %v5513
          %v5764 = vpack.c.b16 %v5516, %v5515
          %v5765 = vpack.c.b16 %v5518, %v5517
          %v5766 = vpack.c.b16 %v5520, %v5519
          %v5767 = vpack.c.b16 %v5522, %v5521
          %v5768 = vpack.c.b16 %v5524, %v5523
          %v5769 = vpack.c.b16 %v5526, %v5525
          %v5770 = vpack.c.b16 %v5528, %v5527
          %v5771 = vpack.c.b16 %v5530, %v5529
          %v5772 = vpack.c.b16 %v5532, %v5531
          %v5773 = vpack.c.b16 %v5534, %v5533
          %v5774 = vpack.c.b16 %v5536, %v5535
          %v5775 = vpack.c.b16 %v5538, %v5537
          %v5776 = vpack.c.b16 %v5540, %v5539
          %v5777 = vpack.c.b16 %v5542, %v5541
          %v5778 = vpack.c.b16 %v5544, %v5543
          %v5779 = vpack.c.b16 %v5546, %v5545
          %v5780 = vpack.c.b16 %v5548, %v5547
          %v5781 = vpack.c.b16 %v5550, %v5549
          %v5782 = vpack.c.b16 %v5552, %v5551
          %v5783 = vpack.c.b16 %v5554, %v5553
          %v5784 = vpack.c.b16 %v5556, %v5555
          %v5785 = vpack.c.b16 %v5558, %v5557
          %v5786 = vpack.c.b16 %v5560, %v5559
          %v5787 = vpack.c.b16 %v5562, %v5561
          %v5788 = vpack.c.b16 %v5564, %v5563
          %v5789 = vpack.c.b16 %v5566, %v5565
          %v5790 = vpack.c.b16 %v5568, %v5567
          %v5791 = vpack.c.b16 %v5570, %v5569
          %v5792 = vpack.c.b16 %v5572, %v5571
          %v5793 = vpack.c.b16 %v5574, %v5573
          %v5794 = vpack.c.b16 %v5576, %v5575
          %v5795 = vpack.c.b16 %v5578, %v5577
          %v5796 = vpack.c.b16 %v5580, %v5579
          %v5797 = vpack.c.b16 %v5582, %v5581
          %v5798 = vpack.c.b16 %v5584, %v5583
          %v5799 = vpack.c.b16 %v5586, %v5585
          %v5800 = vpack.c.b16 %v5588, %v5587
          %v5801 = vpack.c.b16 %v5590, %v5589
          %v5802 = vpack.c.b16 %v5592, %v5591
          %v5803 = vpack.c.b16 %v5594, %v5593
          %v5804 = vpack.c.b16 %v5596, %v5595
          %v5805 = vpack.c.b16 %v5598, %v5597
          %v5806 = vpack.c.b16 %v5600, %v5599
          %v5807 = vpack.c.b16 %v5602, %v5601
          %v5808 = vpack.c.b16 %v5604, %v5603
          %v5809 = vpack.c.b16 %v5606, %v5605
          %v5810 = vpack.c.b16 %v5608, %v5607
          %v5811 = vpack.c.b16 %v5610, %v5609
          %v5812 = vpack.c.b16 %v5612, %v5611
          %v5813 = vpack.c.b16 %v5614, %v5613
          %v5814 = vpack.c.b16 %v5616, %v5615
          %v5815 = vpack.c.b16 %v5618, %v5617
          %v5816 = vpack.c.b16 %v5620, %v5619
          %v5817 = vpack.c.b16 %v5622, %v5621
          %v5818 = vpack.c.b16 %v5624, %v5623
          %v5819 = vpack.c.b16 %v5626, %v5625
          %v5820 = vpack.c.b16 %v5628, %v5627
          %v5821 = vpack.c.b16 %v5630, %v5629
          %v5822 = vpack.c.b16 %v5632, %v5631
          %v5823 = vpack.c.b16 %v5634, %v5633
          %v5824 = vpack.c.b16 %v5636, %v5635
          %v5825 = vpack.c.b16 %v5638, %v5637
          %v5826 = vpack.c.b16 %v5640, %v5639
          %v5827 = vpack.c.b16 %v5642, %v5641
          %v5828 = vpack.c.b16 %v5644, %v5643
          %v5829 = vpack.c.b16 %v5646, %v5645
          %v5830 = vpack.c.b16 %v5648, %v5647
          %v5831 = vpack.c.b16 %v5650, %v5649
          %v5832 = vpack.c.b16 %v5652, %v5651
          %v5833 = vpack.c.b16 %v5654, %v5653
          %v5834 = vpack.c.b16 %v5656, %v5655
          %v5835 = vpack.c.b16 %v5658, %v5657
          %v5836 = vpack.c.b16 %v5660, %v5659
          %v5837 = vpack.c.b16 %v5662, %v5661
          %v5838 = vpack.c.b16 %v5664, %v5663
          %v5839 = vpack.c.b16 %v5666, %v5665
          %v5840 = vpack.c.b16 %v5668, %v5667
          %v5841 = vpack.c.b16 %v5670, %v5669
          %v5842 = vpack.c.b16 %v5672, %v5671
          %v5843 = vpack.c.b16 %v5674, %v5673
          %v5844 = vpack.c.b16 %v5676, %v5675
          %v5845 = vpack.c.b16 %v5678, %v5677
          %v5846 = vpack.c.b16 %v5680, %v5679
          %v5847 = vpack.c.b16 %v5682, %v5681
          %v5848 = vpack.c.b16 %v5684, %v5683
          %v5849 = vpack.c.b16 %v5686, %v5685
          %v5850 = vpack.c.b16 %v5688, %v5687
          %v5851 = vpack.c.b16 %v5690, %v5689
          %v5852 = vpack.c.b16 %v5692, %v5691
          %v5853 = vpack.c.b16 %v5694, %v5693
          %v5854 = vpack.c.b16 %v5696, %v5695
          %v5855 = vpack.c.b16 %v5698, %v5697
          %v5856 = vpack.c.b16 %v5700, %v5699
          %v5857 = vpack.c.b16 %v5702, %v5701
          %v5858 = vpack.c.b16 %v5704, %v5703
          %v5859 = vpack.c.b16 %v5706, %v5705
          %v5860 = vpack.c.b16 %v5708, %v5707
          %v5861 = vpack.c.b16 %v5710, %v5709
          %v5862 = vpack.c.b16 %v5712, %v5711
          %v5863 = vpack.c.b16 %v5714, %v5713
          %v5864 = vpack.c.b16 %v5716, %v5715
          %v5865 = vpack.c.b16 %v5718, %v5717
          %v5866 = vpack.c.b16 %v5720, %v5719
          %v5867 = vpack.c.b16 %v5722, %v5721
          %v5868 = vpack.c.b16 %v5724, %v5723
          %v5869 = vpack.c.b16 %v5726, %v5725
          %v5870 = vpack.c.b16 %v5728, %v5727
          %v5871 = vpack.c.b16 %v5730, %v5729
          %v5872 = vpack.c.b16 %v5732, %v5731
          %v5873 = vpack.c.b16 %v5734, %v5733
          %v5874 = vpack.c.b16 %v5736, %v5735
          %v5875 = vpack.c.b16 %v5738, %v5737
          %v5876 = vpack.c.b16 %v5740, %v5739
          %v5877 = vpack.c.b16 %v5742, %v5741
          %v5878 = vpack.c.b16 %v5744, %v5743
          %v5879 = vpack.c.b16 %v5746, %v5745
          %v5880 = vpack.c.b16 %v5748, %v5747
          %v5881 = vpack.c.b16 %v5750, %v5749
          %v5882 = vpack.c.b16 %v5752, %v5751
          %v5883 = vpack.c.b16 %v5754, %v5753
          %v5884 = vpack.c.b16 %v5756, %v5755
          %6013 = vmatprep.subr.bf16.mxu0 0
          %6014 = vmatpush1.bf16.msra.mxu0 %v5757
          %6015 = vmatprep.subr.bf16.mxu0 0
          %6016 = vmatpush1.bf16.msra.mxu0 %v5758
          %6017 = vmatprep.subr.bf16.mxu0 0
          %6018 = vmatpush1.bf16.msra.mxu0 %v5759
          %6019 = vmatprep.subr.bf16.mxu0 0
          %6020 = vmatpush1.bf16.msra.mxu0 %v5760
          %6021 = vmatprep.subr.bf16.mxu0 0
          %6022 = vmatpush1.bf16.msra.mxu0 %v5761
          %6023 = vmatprep.subr.bf16.mxu0 0
          %6024 = vmatpush1.bf16.msra.mxu0 %v5762
          %6025 = vmatprep.subr.bf16.mxu0 0
          %6026 = vmatpush1.bf16.msra.mxu0 %v5763
          %6027 = vmatprep.subr.bf16.mxu0 0
          %6028 = vmatpush1.bf16.msra.mxu0 %v5764
          %6029 = vmatprep.subr.bf16.mxu0 0
          %6030 = vmatpush1.bf16.msra.mxu0 %v5765
          %6031 = vmatprep.subr.bf16.mxu0 0
          %6032 = vmatpush1.bf16.msra.mxu0 %v5766
          %6033 = vmatprep.subr.bf16.mxu0 0
          %6034 = vmatpush1.bf16.msra.mxu0 %v5767
          %6035 = vmatprep.subr.bf16.mxu0 0
          %6036 = vmatpush1.bf16.msra.mxu0 %v5768
          %6037 = vmatprep.subr.bf16.mxu0 0
          %6038 = vmatpush1.bf16.msra.mxu0 %v5769
          %6039 = vmatprep.subr.bf16.mxu0 0
          %6040 = vmatpush1.bf16.msra.mxu0 %v5770
          %6041 = vmatprep.subr.bf16.mxu0 0
          %6042 = vmatpush1.bf16.msra.mxu0 %v5771
          %6043 = vmatprep.subr.bf16.mxu0 0
          %6044 = vmatpush1.bf16.msra.mxu0 %v5772
          %6045 = vmatprep.mubr.bf16.mxu0 %v4974
          %6046 = vmatmul.mubr.bf16.gmra.mrb[0].mxu0 %v4973
          %v6047 = vpop.f32.mrb[0].mxu0
          %v6048 = vadd.f32 0.0, %v6047
          %v6049 = vpop.f32.mrb[0].mxu0
          %v6050 = vpop.f32.mrb[0].mxu0
          %v6051 = vpop.f32.mrb[0].mxu0
          %6052 = vdwg.mxu0
          %6053 = vmatprep.subr.bf16.mxu0 0
          %6054 = vmatpush1.bf16.msra.mxu0 %v5773
          %6055 = vmatprep.subr.bf16.mxu0 0
          %6056 = vmatpush1.bf16.msra.mxu0 %v5774
          %6057 = vmatprep.subr.bf16.mxu0 0
          %6058 = vmatpush1.bf16.msra.mxu0 %v5775
          %6059 = vmatprep.subr.bf16.mxu0 0
          %6060 = vmatpush1.bf16.msra.mxu0 %v5776
          %6061 = vmatprep.subr.bf16.mxu0 0
          %6062 = vmatpush1.bf16.msra.mxu0 %v5777
          %6063 = vmatprep.subr.bf16.mxu0 0
          %6064 = vmatpush1.bf16.msra.mxu0 %v5778
          %6065 = vmatprep.subr.bf16.mxu0 0
          %6066 = vmatpush1.bf16.msra.mxu0 %v5779
          %6067 = vmatprep.subr.bf16.mxu0 0
          %6068 = vmatpush1.bf16.msra.mxu0 %v5780
          %6069 = vmatprep.subr.bf16.mxu0 0
          %6070 = vmatpush1.bf16.msra.mxu0 %v5781
          %6071 = vmatprep.subr.bf16.mxu0 0
          %6072 = vmatpush1.bf16.msra.mxu0 %v5782
          %6073 = vmatprep.subr.bf16.mxu0 0
          %6074 = vmatpush1.bf16.msra.mxu0 %v5783
          %6075 = vmatprep.subr.bf16.mxu0 0
          %6076 = vmatpush1.bf16.msra.mxu0 %v5784
          %6077 = vmatprep.subr.bf16.mxu0 0
          %6078 = vmatpush1.bf16.msra.mxu0 %v5785
          %6079 = vmatprep.subr.bf16.mxu0 0
          %6080 = vmatpush1.bf16.msra.mxu0 %v5786
          %6081 = vmatprep.subr.bf16.mxu0 0
          %6082 = vmatpush1.bf16.msra.mxu0 %v5787
          %6083 = vmatprep.subr.bf16.mxu0 0
          %6084 = vmatpush1.bf16.msra.mxu0 %v5788
          %6085 = vmatprep.mubr.bf16.mxu0 %v4976
          %6086 = vmatmul.mubr.bf16.gmra.mrb[0].mxu0 %v4975
          %v6087 = vpop.f32.mrb[0].mxu0
          %v6088 = vadd.f32 %v6048, %v6087
          %v6089 = vpop.f32.mrb[0].mxu0
          %v6090 = vpop.f32.mrb[0].mxu0
          %v6091 = vpop.f32.mrb[0].mxu0
          %6092 = vdwg.mxu0
          %6093 = vmatprep.subr.bf16.mxu0 0
          %6094 = vmatpush1.bf16.msra.mxu0 %v5789
          %6095 = vmatprep.subr.bf16.mxu0 0
          %6096 = vmatpush1.bf16.msra.mxu0 %v5790
          %6097 = vmatprep.subr.bf16.mxu0 0
          %6098 = vmatpush1.bf16.msra.mxu0 %v5791
          %6099 = vmatprep.subr.bf16.mxu0 0
          %6100 = vmatpush1.bf16.msra.mxu0 %v5792
          %6101 = vmatprep.subr.bf16.mxu0 0
          %6102 = vmatpush1.bf16.msra.mxu0 %v5793
          %6103 = vmatprep.subr.bf16.mxu0 0
          %6104 = vmatpush1.bf16.msra.mxu0 %v5794
          %6105 = vmatprep.subr.bf16.mxu0 0
          %6106 = vmatpush1.bf16.msra.mxu0 %v5795
          %6107 = vmatprep.subr.bf16.mxu0 0
          %6108 = vmatpush1.bf16.msra.mxu0 %v5796
          %6109 = vmatprep.subr.bf16.mxu0 0
          %6110 = vmatpush1.bf16.msra.mxu0 %v5797
          %6111 = vmatprep.subr.bf16.mxu0 0
          %6112 = vmatpush1.bf16.msra.mxu0 %v5798
          %6113 = vmatprep.subr.bf16.mxu0 0
          %6114 = vmatpush1.bf16.msra.mxu0 %v5799
          %6115 = vmatprep.subr.bf16.mxu0 0
          %6116 = vmatpush1.bf16.msra.mxu0 %v5800
          %6117 = vmatprep.subr.bf16.mxu0 0
          %6118 = vmatpush1.bf16.msra.mxu0 %v5801
          %6119 = vmatprep.subr.bf16.mxu0 0
          %6120 = vmatpush1.bf16.msra.mxu0 %v5802
          %6121 = vmatprep.subr.bf16.mxu0 0
          %6122 = vmatpush1.bf16.msra.mxu0 %v5803
          %6123 = vmatprep.subr.bf16.mxu0 0
          %6124 = vmatpush1.bf16.msra.mxu0 %v5804
          %6125 = vmatprep.mubr.bf16.mxu0 %v4978
          %6126 = vmatmul.mubr.bf16.gmra.mrb[0].mxu0 %v4977
          %v6127 = vpop.f32.mrb[0].mxu0
          %v6128 = vadd.f32 %v6088, %v6127
          %v6129 = vpop.f32.mrb[0].mxu0
          %v6130 = vpop.f32.mrb[0].mxu0
          %v6131 = vpop.f32.mrb[0].mxu0
          %6132 = vdwg.mxu0
          %6133 = vmatprep.subr.bf16.mxu0 0
          %6134 = vmatpush1.bf16.msra.mxu0 %v5805
          %6135 = vmatprep.subr.bf16.mxu0 0
          %6136 = vmatpush1.bf16.msra.mxu0 %v5806
          %6137 = vmatprep.subr.bf16.mxu0 0
          %6138 = vmatpush1.bf16.msra.mxu0 %v5807
          %6139 = vmatprep.subr.bf16.mxu0 0
          %6140 = vmatpush1.bf16.msra.mxu0 %v5808
          %6141 = vmatprep.subr.bf16.mxu0 0
          %6142 = vmatpush1.bf16.msra.mxu0 %v5809
          %6143 = vmatprep.subr.bf16.mxu0 0
          %6144 = vmatpush1.bf16.msra.mxu0 %v5810
          %6145 = vmatprep.subr.bf16.mxu0 0
          %6146 = vmatpush1.bf16.msra.mxu0 %v5811
          %6147 = vmatprep.subr.bf16.mxu0 0
          %6148 = vmatpush1.bf16.msra.mxu0 %v5812
          %6149 = vmatprep.subr.bf16.mxu0 0
          %6150 = vmatpush1.bf16.msra.mxu0 %v5813
          %6151 = vmatprep.subr.bf16.mxu0 0
          %6152 = vmatpush1.bf16.msra.mxu0 %v5814
          %6153 = vmatprep.subr.bf16.mxu0 0
          %6154 = vmatpush1.bf16.msra.mxu0 %v5815
          %6155 = vmatprep.subr.bf16.mxu0 0
          %6156 = vmatpush1.bf16.msra.mxu0 %v5816
          %6157 = vmatprep.subr.bf16.mxu0 0
          %6158 = vmatpush1.bf16.msra.mxu0 %v5817
          %6159 = vmatprep.subr.bf16.mxu0 0
          %6160 = vmatpush1.bf16.msra.mxu0 %v5818
          %6161 = vmatprep.subr.bf16.mxu0 0
          %6162 = vmatpush1.bf16.msra.mxu0 %v5819
          %6163 = vmatprep.subr.bf16.mxu0 0
          %6164 = vmatpush1.bf16.msra.mxu0 %v5820
          %6165 = vmatprep.mubr.bf16.mxu0 %v4980
          %6166 = vmatmul.mubr.bf16.gmra.mrb[0].mxu0 %v4979
          %v6167 = vpop.f32.mrb[0].mxu0
          %v6168 = vadd.f32 %v6128, %v6167
          %v6169 = vpop.f32.mrb[0].mxu0
          %v6170 = vpop.f32.mrb[0].mxu0
          %v6171 = vpop.f32.mrb[0].mxu0
          %6172 = vdwg.mxu0
          %6173 = vmatprep.subr.bf16.mxu0 0
          %6174 = vmatpush1.bf16.msra.mxu0 %v5821
          %6175 = vmatprep.subr.bf16.mxu0 0
          %6176 = vmatpush1.bf16.msra.mxu0 %v5822
          %6177 = vmatprep.subr.bf16.mxu0 0
          %6178 = vmatpush1.bf16.msra.mxu0 %v5823
          %6179 = vmatprep.subr.bf16.mxu0 0
          %6180 = vmatpush1.bf16.msra.mxu0 %v5824
          %6181 = vmatprep.subr.bf16.mxu0 0
          %6182 = vmatpush1.bf16.msra.mxu0 %v5825
          %6183 = vmatprep.subr.bf16.mxu0 0
          %6184 = vmatpush1.bf16.msra.mxu0 %v5826
          %6185 = vmatprep.subr.bf16.mxu0 0
          %6186 = vmatpush1.bf16.msra.mxu0 %v5827
          %6187 = vmatprep.subr.bf16.mxu0 0
          %6188 = vmatpush1.bf16.msra.mxu0 %v5828
          %6189 = vmatprep.subr.bf16.mxu0 0
          %6190 = vmatpush1.bf16.msra.mxu0 %v5829
          %6191 = vmatprep.subr.bf16.mxu0 0
          %6192 = vmatpush1.bf16.msra.mxu0 %v5830
          %6193 = vmatprep.subr.bf16.mxu0 0
          %6194 = vmatpush1.bf16.msra.mxu0 %v5831
          %6195 = vmatprep.subr.bf16.mxu0 0
          %6196 = vmatpush1.bf16.msra.mxu0 %v5832
          %6197 = vmatprep.subr.bf16.mxu0 0
          %6198 = vmatpush1.bf16.msra.mxu0 %v5833
          %6199 = vmatprep.subr.bf16.mxu0 0
          %6200 = vmatpush1.bf16.msra.mxu0 %v5834
          %6201 = vmatprep.subr.bf16.mxu0 0
          %6202 = vmatpush1.bf16.msra.mxu0 %v5835
          %6203 = vmatprep.subr.bf16.mxu0 0
          %6204 = vmatpush1.bf16.msra.mxu0 %v5836
          %6205 = vmatprep.mubr.bf16.mxu0 %v4982
          %6206 = vmatmul.mubr.bf16.gmra.mrb[0].mxu0 %v4981
          %v6207 = vpop.f32.mrb[0].mxu0
          %v6208 = vadd.f32 %v6168, %v6207
          %v6209 = vpop.f32.mrb[0].mxu0
          %v6210 = vpop.f32.mrb[0].mxu0
          %v6211 = vpop.f32.mrb[0].mxu0
          %6212 = vdwg.mxu0
          %6213 = vmatprep.subr.bf16.mxu0 0
          %6214 = vmatpush1.bf16.msra.mxu0 %v5837
          %6215 = vmatprep.subr.bf16.mxu0 0
          %6216 = vmatpush1.bf16.msra.mxu0 %v5838
          %6217 = vmatprep.subr.bf16.mxu0 0
          %6218 = vmatpush1.bf16.msra.mxu0 %v5839
          %6219 = vmatprep.subr.bf16.mxu0 0
          %6220 = vmatpush1.bf16.msra.mxu0 %v5840
          %6221 = vmatprep.subr.bf16.mxu0 0
          %6222 = vmatpush1.bf16.msra.mxu0 %v5841
          %6223 = vmatprep.subr.bf16.mxu0 0
          %6224 = vmatpush1.bf16.msra.mxu0 %v5842
          %6225 = vmatprep.subr.bf16.mxu0 0
          %6226 = vmatpush1.bf16.msra.mxu0 %v5843
          %6227 = vmatprep.subr.bf16.mxu0 0
          %6228 = vmatpush1.bf16.msra.mxu0 %v5844
          %6229 = vmatprep.subr.bf16.mxu0 0
          %6230 = vmatpush1.bf16.msra.mxu0 %v5845
          %6231 = vmatprep.subr.bf16.mxu0 0
          %6232 = vmatpush1.bf16.msra.mxu0 %v5846
          %6233 = vmatprep.subr.bf16.mxu0 0
          %6234 = vmatpush1.bf16.msra.mxu0 %v5847
          %6235 = vmatprep.subr.bf16.mxu0 0
          %6236 = vmatpush1.bf16.msra.mxu0 %v5848
          %6237 = vmatprep.subr.bf16.mxu0 0
          %6238 = vmatpush1.bf16.msra.mxu0 %v5849
          %6239 = vmatprep.subr.bf16.mxu0 0
          %6240 = vmatpush1.bf16.msra.mxu0 %v5850
          %6241 = vmatprep.subr.bf16.mxu0 0
          %6242 = vmatpush1.bf16.msra.mxu0 %v5851
          %6243 = vmatprep.subr.bf16.mxu0 0
          %6244 = vmatpush1.bf16.msra.mxu0 %v5852
          %6245 = vmatprep.mubr.bf16.mxu0 %v4984
          %6246 = vmatmul.mubr.bf16.gmra.mrb[0].mxu0 %v4983
          %v6247 = vpop.f32.mrb[0].mxu0
          %v6248 = vadd.f32 %v6208, %v6247
          %v6249 = vpop.f32.mrb[0].mxu0
          %v6250 = vpop.f32.mrb[0].mxu0
          %v6251 = vpop.f32.mrb[0].mxu0
          %6252 = vdwg.mxu0
          %6253 = vmatprep.subr.bf16.mxu0 0
          %6254 = vmatpush1.bf16.msra.mxu0 %v5853
          %6255 = vmatprep.subr.bf16.mxu0 0
          %6256 = vmatpush1.bf16.msra.mxu0 %v5854
          %6257 = vmatprep.subr.bf16.mxu0 0
          %6258 = vmatpush1.bf16.msra.mxu0 %v5855
          %6259 = vmatprep.subr.bf16.mxu0 0
          %6260 = vmatpush1.bf16.msra.mxu0 %v5856
          %6261 = vmatprep.subr.bf16.mxu0 0
          %6262 = vmatpush1.bf16.msra.mxu0 %v5857
          %6263 = vmatprep.subr.bf16.mxu0 0
          %6264 = vmatpush1.bf16.msra.mxu0 %v5858
          %6265 = vmatprep.subr.bf16.mxu0 0
          %6266 = vmatpush1.bf16.msra.mxu0 %v5859
          %6267 = vmatprep.subr.bf16.mxu0 0
          %6268 = vmatpush1.bf16.msra.mxu0 %v5860
          %6269 = vmatprep.subr.bf16.mxu0 0
          %6270 = vmatpush1.bf16.msra.mxu0 %v5861
          %6271 = vmatprep.subr.bf16.mxu0 0
          %6272 = vmatpush1.bf16.msra.mxu0 %v5862
          %6273 = vmatprep.subr.bf16.mxu0 0
          %6274 = vmatpush1.bf16.msra.mxu0 %v5863
          %6275 = vmatprep.subr.bf16.mxu0 0
          %6276 = vmatpush1.bf16.msra.mxu0 %v5864
          %6277 = vmatprep.subr.bf16.mxu0 0
          %6278 = vmatpush1.bf16.msra.mxu0 %v5865
          %6279 = vmatprep.subr.bf16.mxu0 0
          %6280 = vmatpush1.bf16.msra.mxu0 %v5866
          %6281 = vmatprep.subr.bf16.mxu0 0
          %6282 = vmatpush1.bf16.msra.mxu0 %v5867
          %6283 = vmatprep.subr.bf16.mxu0 0
          %6284 = vmatpush1.bf16.msra.mxu0 %v5868
          %6285 = vmatprep.mubr.bf16.mxu0 %v4986
          %6286 = vmatmul.mubr.bf16.gmra.mrb[0].mxu0 %v4985
          %v6287 = vpop.f32.mrb[0].mxu0
          %v6288 = vadd.f32 %v6248, %v6287
          %v6289 = vpop.f32.mrb[0].mxu0
          %v6290 = vpop.f32.mrb[0].mxu0
          %v6291 = vpop.f32.mrb[0].mxu0
          %6292 = vdwg.mxu0
          %6293 = vmatprep.subr.bf16.mxu0 0
          %6294 = vmatpush1.bf16.msra.mxu0 %v5869
          %6295 = vmatprep.subr.bf16.mxu0 0
          %6296 = vmatpush1.bf16.msra.mxu0 %v5870
          %6297 = vmatprep.subr.bf16.mxu0 0
          %6298 = vmatpush1.bf16.msra.mxu0 %v5871
          %6299 = vmatprep.subr.bf16.mxu0 0
          %6300 = vmatpush1.bf16.msra.mxu0 %v5872
          %6301 = vmatprep.subr.bf16.mxu0 0
          %6302 = vmatpush1.bf16.msra.mxu0 %v5873
          %6303 = vmatprep.subr.bf16.mxu0 0
          %6304 = vmatpush1.bf16.msra.mxu0 %v5874
          %6305 = vmatprep.subr.bf16.mxu0 0
          %6306 = vmatpush1.bf16.msra.mxu0 %v5875
          %6307 = vmatprep.subr.bf16.mxu0 0
          %6308 = vmatpush1.bf16.msra.mxu0 %v5876
          %6309 = vmatprep.subr.bf16.mxu0 0
          %6310 = vmatpush1.bf16.msra.mxu0 %v5877
          %6311 = vmatprep.subr.bf16.mxu0 0
          %6312 = vmatpush1.bf16.msra.mxu0 %v5878
          %6313 = vmatprep.subr.bf16.mxu0 0
          %6314 = vmatpush1.bf16.msra.mxu0 %v5879
          %6315 = vmatprep.subr.bf16.mxu0 0
          %6316 = vmatpush1.bf16.msra.mxu0 %v5880
          %6317 = vmatprep.subr.bf16.mxu0 0
          %6318 = vmatpush1.bf16.msra.mxu0 %v5881
          %6319 = vmatprep.subr.bf16.mxu0 0
          %6320 = vmatpush1.bf16.msra.mxu0 %v5882
          %6321 = vmatprep.subr.bf16.mxu0 0
          %6322 = vmatpush1.bf16.msra.mxu0 %v5883
          %6323 = vmatprep.subr.bf16.mxu0 0
          %6324 = vmatpush1.bf16.msra.mxu0 %v5884
          %6325 = vmatprep.mubr.bf16.mxu0 %v4988
          %6326 = vmatmul.mubr.bf16.gmra.mrb[0].mxu0 %v4987
          %v6327 = vpop.f32.mrb[0].mxu0
          %v6328 = vadd.f32 %v6288, %v6327
          %v6329 = vpop.f32.mrb[0].mxu0
          %v6330 = vpop.f32.mrb[0].mxu0
          %v6331 = vpop.f32.mrb[0].mxu0
          %6332 = vdwg.mxu0
          %v6333 = vadd.f32 %v4972, %v6328
          %6334 = vst [vmem:[#allocation11] sm:$0x3] %v6333
        $region133: #{tpu_custom_call.1} parent=108 // pred_fallthru
          _
        // Predicated region
        $region134: #{tpu_custom_call.1} parent=108 // pred_check
          %p6335 = pneg %p342
        $region135: #{tpu_custom_call.1} parent=108 // pred_check_branch
          %6337 = sbr.rel (%p6335) target = $region137
        $region136: #{tpu_custom_call.1} parent=108 // pred_region
          %s6339 = ssub.s32 32, 32
          %6340 = vsyncadd [#allocation7], %s6339
          %s6341 = smul.addr %s31, 32
          %s6342 = scalar_lea.hbm %s13, %s6341
          %s6344 = sshll.u32 [#allocation11], 4
          %s6345 = int_to_ptr.vmem [resolvable:$true] %s6344
          %6347 = dma.vmem_to_hbm [thread:$0]  %s6345, 32, %s6342, [#allocation7]
        $region137: #{tpu_custom_call.1} parent=108 // pred_fallthru
          _
        // Predicated region
        $region138: #{tpu_custom_call.1} parent=108 // pred_check
          %p6348 = pneg %p342
        $region139: #{tpu_custom_call.1} parent=108 // pred_check_branch
          %6350 = sbr.rel (%p6348) target = $region141
        $region140: #{tpu_custom_call.1} parent=108 // pred_region
          %6351 = dma.done [#allocation7], 32
        $region141: #{tpu_custom_call.1} parent=108 // pred_fallthru
          _
      $region109: #{tpu_custom_call.1} parent=5 // pred_fallthru
        _
      %p6352 = scmp.le.s32.totalorder 2, %s22
      // Predicated region
      $region142: #{tpu_custom_call.1} parent=5 // pred_check
        %p6353 = pneg %p6352
      $region143: #{tpu_custom_call.1} parent=5 // pred_check_branch
        %6355 = sbr.rel (%p6353) target = $region145
      $region144: #{tpu_custom_call.1} parent=5 // pred_region
        %s6356 = ssub.s32 %s22, 2
      $region145: #{tpu_custom_call.1} parent=5 // pred_fallthru
        _
    $region6: #{tpu_custom_call.1} parent=1 // loop_footer
      %s26 = sadd.s32 1, %s22
    $region7: #{tpu_custom_call.1} parent=1 // loop_footer_branch
      %21 = sbr.rel target = $region3
    $region8: #{tpu_custom_call.1} parent=1 // loop_exit
      _
    %6357 = vsyncpa [#allocation6], 1
    %s6358 = scalar_lea.sflag [#allocation6], 1
    %6359 = vsyncpa %s6358, 1
    %6360 = vsyncpa [#allocation9], 1
    %6361 = vsyncpa [#allocation7], 1
    %s6362 = scalar_lea.sflag [#allocation7], 1
    %6363 = vsyncpa %s6362, 1

</llo_original>
